<compile_context>
chip_gen: v6e
topology: v6e:2x2x1
jax: 0.10.0
libtpu: 0.0.40
codegen_flags: <defaults>
</compile_context>

<pallas_src>
import functools

import jax
import jax.numpy as jnp
from jax import lax
from jax.experimental import pallas as pl
from jax.experimental.pallas import tpu as pltpu


# ----------------------------------------------------------------------------
# VMEM budget / tiling helpers (generation-aware)
# ----------------------------------------------------------------------------
def _vmem_limit_bytes():
    try:
        cap = int(pltpu.get_tpu_info().vmem_capacity_bytes)
    except Exception:
        cap = 64 * 1024 * 1024                       # conservative (v7x per-TC)
    # leave headroom for compiler scratch / double-buffered IO tiles
    return max(32 * 1024 * 1024, min(cap - 16 * 1024 * 1024, 100 * 1024 * 1024))


def _pick_time_chunk(S, requested):
    ts = max(1, min(requested, S))
    while S % ts != 0:
        ts -= 1
    return ts


def _estimate_vmem_bytes(ts, B, Din, E, G, Dout, weight_bufs):
    rows = ts * B
    io = 2 * rows * (Din + Dout)                              # double-buffered x / out tiles
    weights = weight_bufs * (Din * E + E + 2 * E * G + G + 2 * E + E * Dout + Dout)
    scratch = 2 * B * E + rows * E                            # h, c, hbuf
    return 4 * (io + weights + scratch)                       # f32


def _fit_time_chunk(S, B, Din, E, G, Dout, requested, budget, weight_bufs):
    ts = _pick_time_chunk(S, requested)
    while ts > 1 and _estimate_vmem_bytes(ts, B, Din, E, G, Dout, weight_bufs) > budget:
        ts = _pick_time_chunk(S, ts - 1)
    return ts


# ----------------------------------------------------------------------------
# Fused kernel:  [linear1 + ReLU + LSTM-input-proj] -> LSTM recurrence with
# per-step LayerNorm -> linear2, all per time-chunk.
# ----------------------------------------------------------------------------
def _lit_fused_kernel(x_ref, w1_ref, b1_ref, wih_ref, bih_ref, whh_ref,
                      gamma_ref, beta_ref, w2_ref, b2_ref,
                      o_ref,
                      h_scr, c_scr, hbuf,
                      *, ts, batch, eps):
    # h/c carry persists in VMEM scratch across time chunks; init on chunk 0.
    @pl.when(pl.program_id(0) == 0)
    def _():
        h_scr[...] = jnp.zeros_like(h_scr)
        c_scr[...] = jnp.zeros_like(c_scr)

    E = h_scr.shape[1]

    # ---- Frontend for the whole chunk (two large matmuls, f32 accumulate) ---
    # dropout = identity (eval mode); activation = ReLU.
    h1 = jnp.dot(x_ref[...], w1_ref[...],
                 preferred_element_type=jnp.float32) + b1_ref[...]
    h1 = jnp.maximum(h1, 0.0)
    xp = jnp.dot(h1, wih_ref[...],
                 preferred_element_type=jnp.float32) + bih_ref[...]   # (ts*B, 4E)

    whh = whh_ref[...]                               # resident weight block (hoisted)
    gamma = gamma_ref[...]
    beta = beta_ref[...]

    h = h_scr[...]
    c = c_scr[...]
    inv_e = jnp.float32(1.0 / E)

    # Fully-unrolled timestep loop (ts is small); `t` is concrete so all slices
    # below are static.  PyTorch gate order [i, f, g, o].
    # NOTE: the recurrent matmul LHS has `batch` rows — filling it (larger B)
    # is the main MXU-utilization lever; at tiny B it is latency-bound.
    for t in range(ts):
        gates = xp[t * batch:(t + 1) * batch, :] + jnp.dot(
            h, whh, preferred_element_type=jnp.float32)               # (B, 4E)
        i_g = jax.nn.sigmoid(gates[:, 0 * E:1 * E])
        f_g = jax.nn.sigmoid(gates[:, 1 * E:2 * E])
        g_g = jnp.tanh(gates[:, 2 * E:3 * E])
        o_g = jax.nn.sigmoid(gates[:, 3 * E:4 * E])
        c = f_g * c + i_g * g_g
        h = o_g * jnp.tanh(c)

        # Per-step LayerNorm (one-pass moments): VPU/XLU filler that overlaps
        # the next step's serialized recurrent matmul.
        mean = jnp.sum(h, axis=-1, keepdims=True) * inv_e
        mean_sq = jnp.sum(h * h, axis=-1, keepdims=True) * inv_e
        var = mean_sq - mean * mean
        hn = (h - mean) * lax.rsqrt(var + eps) * gamma + beta
        hbuf[t * batch:(t + 1) * batch, :] = hn      # static slice into flat buf

    h_scr[...] = h
    c_scr[...] = c

    # ---- Epilogue: linear2 over the whole chunk (one matmul, lane-dense 2D) --
    y = jnp.dot(hbuf[...], w2_ref[...],
                preferred_element_type=jnp.float32) + b2_ref[...]
    o_ref[...] = y.astype(o_ref.dtype)


def pallas_lit_fused(x, params, *, time_chunk=8, eps=1e-5,
                     single_buffer_weights=True):
    S, B, Din = x.shape
    E = params["w1"].shape[1]
    G = 4 * E
    Dout = params["w2"].shape[1]

    vmem_limit = _vmem_limit_bytes()
    weight_bufs = 1 if single_buffer_weights else 2
    ts = _fit_time_chunk(S, B, Din, E, G, Dout, time_chunk,
                         int(0.8 * vmem_limit), weight_bufs)
    rows = ts * B

    # Flatten (S, B, D) -> (S*B, D): row-major, so rows of chunk c are the
    # contiguous slab [c*ts*B, (c+1)*ts*B) — pure layout change in the wrapper.
    x2d = x.reshape(S * B, Din)

    def w_spec(shape):
        # Constant-index resident weights: single-buffer them (halves their
        # VMEM footprint); fall back to default specs if rejected.
        if single_buffer_weights:
            return pl.BlockSpec(shape, lambda c: (0, 0),
                                pipeline_mode=pl.Buffered(1))
        return pl.BlockSpec(shape, lambda c: (0, 0))

    cost = pl.CostEstimate(
        flops=int(2 * S * B * (Din * E + 2 * E * G + E * Dout)),
        transcendentals=int(5 * S * B * E),
        bytes_accessed=int(4 * (S * B * Din + Din * E + E + 2 * E * G + G
                                + 2 * E + E * Dout + Dout + S * B * Dout)),
    )

    out2d = pl.pallas_call(
        functools.partial(_lit_fused_kernel, ts=ts, batch=B, eps=eps),
        out_shape=jax.ShapeDtypeStruct((S * B, Dout), jnp.float32),
        grid=(S // ts,),
        in_specs=[
            pl.BlockSpec((rows, Din), lambda c: (c, 0)),   # x chunk (pipelined)
            w_spec((Din, E)),                              # w1      (resident)
            w_spec((1, E)),                                # b1
            w_spec((E, G)),                                # w_ih
            w_spec((1, G)),                                # b_ih + b_hh
            w_spec((E, G)),                                # w_hh
            w_spec((1, E)),                                # gamma
            w_spec((1, E)),                                # beta
            w_spec((E, Dout)),                             # w2
            w_spec((1, Dout)),                             # b2
        ],
        out_specs=pl.BlockSpec((rows, Dout), lambda c: (c, 0)),
        scratch_shapes=[pltpu.VMEM((B, E), jnp.float32),       # h carry
                        pltpu.VMEM((B, E), jnp.float32),       # c carry
                        pltpu.VMEM((rows, E), jnp.float32)],   # normalized chunk
        compiler_params=pltpu.CompilerParams(
            # MUST stay "arbitrary": the recurrence carry in scratch requires
            # strictly in-order execution of the time axis on one core.
            dimension_semantics=("arbitrary",),
            vmem_limit_bytes=vmem_limit),
        cost_estimate=cost,
    )(x2d, params["w1"], params["b1"], params["w_ih"], params["b_lstm"],
      params["w_hh"], params["gamma"], params["beta"],
      params["w2"], params["b2"])

    return out2d.reshape(S, B, Dout)


# ----------------------------------------------------------------------------
# Full LITLayer forward (dropout is identity in eval mode; activation = ReLU)
# ----------------------------------------------------------------------------
def lit_layer_forward(x, params, *, time_chunk=8, single_buffer_weights=True):
    return pallas_lit_fused(x, params, time_chunk=time_chunk,
                            single_buffer_weights=single_buffer_weights)


# ----------------------------------------------------------------------------
# Pure-JAX reference (for correctness check)
# ----------------------------------------------------------------------------
def ref_forward(x, params):
    h1 = jnp.maximum(x @ params["w1"] + params["b1"][0], 0.0)
    x_proj = h1 @ params["w_ih"] + params["b_lstm"][0]
    S, B, _ = x.shape
    E = params["w_hh"].shape[0]

    def step(carry, xt):
        h_prev, c_prev = carry
        gates = xt + h_prev @ params["w_hh"]
        i_g = jax.nn.sigmoid(gates[:, 0 * E:1 * E])
        f_g = jax.nn.sigmoid(gates[:, 1 * E:2 * E])
        g_g = jnp.tanh(gates[:, 2 * E:3 * E])
        o_g = jax.nn.sigmoid(gates[:, 3 * E:4 * E])
        c_new = f_g * c_prev + i_g * g_g
        h_new = o_g * jnp.tanh(c_new)
        return (h_new, c_new), h_new

    init = (jnp.zeros((B, E), jnp.float32), jnp.zeros((B, E), jnp.float32))
    _, h_seq = lax.scan(step, init, x_proj)
    mean = jnp.mean(h_seq, axis=-1, keepdims=True)
    var = jnp.mean((h_seq - mean) ** 2, axis=-1, keepdims=True)
    hn = (h_seq - mean) * lax.rsqrt(var + 1e-5)
    hn = hn * params["gamma"][0] + params["beta"][0]
    return hn @ params["w2"] + params["b2"][0]


# ----------------------------------------------------------------------------
# Deterministic parameter construction
# ----------------------------------------------------------------------------
def make_params(key, input_dim, embed_dim):
    ks = jax.random.split(key, 8)
    s = 0.1
    return {
        # linear1: PyTorch weight (E, D) -> stored transposed (D, E)
        "w1": s * jax.random.normal(ks[0], (input_dim, embed_dim), jnp.float32),
        "b1": s * jax.random.normal(ks[1], (1, embed_dim), jnp.float32),
        # LSTM: W_ih (4E, E) / W_hh (4E, E) -> stored transposed
        "w_ih": s * jax.random.normal(ks[2], (embed_dim, 4 * embed_dim), jnp.float32),
        "w_hh": s * jax.random.normal(ks[3], (embed_dim, 4 * embed_dim), jnp.float32),
        # b_ih + b_hh fused
        "b_lstm": s * jax.random.normal(ks[4], (1, 4 * embed_dim), jnp.float32),
        # LayerNorm (PyTorch default init: weight=1, bias=0)
        "gamma": jnp.ones((1, embed_dim), jnp.float32),
        "beta": jnp.zeros((1, embed_dim), jnp.float32),
        # linear2: PyTorch weight (D, E) -> stored transposed (E, D)
        "w2": s * jax.random.normal(ks[5], (embed_dim, input_dim), jnp.float32),
        "b2": s * jax.random.normal(ks[6], (1, input_dim), jnp.float32),
    }


if __name__ == "__main__":
    S, B = 8, 2          # sequence length, batch
    INPUT_DIM = 16
    EMBED_DIM = 32
    # dropout=0.1 in the module; identity in eval mode (no-op here)

    key = jax.random.PRNGKey(0)
    kx, kp = jax.random.split(key)
    x = jax.random.normal(kx, (S, B, INPUT_DIM), jnp.float32)   # (S, B, D_in)
    params = make_params(kp, INPUT_DIM, EMBED_DIM)

    # time_chunk=4 so the time grid has 2 steps at this small size
    # (exercises pipelining and the cross-chunk h/c carry).
    try:
        out = jax.block_until_ready(
            lit_layer_forward(x, params, time_chunk=4))
    except Exception:
        # Fallback if this jax build rejects Buffered(1) single-buffering of
        # the resident weight blocks: default double-buffered specs.
        out = jax.block_until_ready(
            lit_layer_forward(x, params, time_chunk=4,
                              single_buffer_weights=False))

    ref = jax.block_until_ready(ref_forward(x, params))

    assert out.shape == (S, B, INPUT_DIM), out.shape
    assert jnp.allclose(out, ref, rtol=1e-4, atol=1e-4), \
        float(jnp.max(jnp.abs(out - ref)))
    print("KERNEL_OK")
</pallas_src>

<mosaic_0001>
module attributes {stable_mosaic.version = 11 : i64} {
  func.func @_lit_fused_kernel(%arg0: i32, %arg1: memref<8x16xf32, #tpu.memory_space<vmem>>, %arg2: memref<16x32xf32, #tpu.memory_space<vmem>>, %arg3: memref<1x32xf32, #tpu.memory_space<vmem>>, %arg4: memref<32x128xf32, #tpu.memory_space<vmem>>, %arg5: memref<1x128xf32, #tpu.memory_space<vmem>>, %arg6: memref<32x128xf32, #tpu.memory_space<vmem>>, %arg7: memref<1x32xf32, #tpu.memory_space<vmem>>, %arg8: memref<1x32xf32, #tpu.memory_space<vmem>>, %arg9: memref<32x16xf32, #tpu.memory_space<vmem>>, %arg10: memref<1x16xf32, #tpu.memory_space<vmem>>, %arg11: memref<8x16xf32, #tpu.memory_space<vmem>>, %arg12: memref<2x32xf32, #tpu.memory_space<vmem>>, %arg13: memref<2x32xf32, #tpu.memory_space<vmem>>, %arg14: memref<8x32xf32, #tpu.memory_space<vmem>>) attributes {dimension_semantics = [#tpu.dimension_semantics<arbitrary>], iteration_bounds = array<i64: 2>, scalar_prefetch = 0 : i64, scratch_operands = 3 : i64, tpu.core_type = #tpu.core_type<tc>, window_params = [{transform_indices = @transform_0, window_bounds = array<i64: 8, 16>}, {pipeline_mode = #tpu.pipeline_mode<synchronous>, transform_indices = @transform_1, window_bounds = array<i64: 16, 32>}, {pipeline_mode = #tpu.pipeline_mode<synchronous>, transform_indices = @transform_2, window_bounds = array<i64: 1, 32>}, {pipeline_mode = #tpu.pipeline_mode<synchronous>, transform_indices = @transform_3, window_bounds = array<i64: 32, 128>}, {pipeline_mode = #tpu.pipeline_mode<synchronous>, transform_indices = @transform_4, window_bounds = array<i64: 1, 128>}, {pipeline_mode = #tpu.pipeline_mode<synchronous>, transform_indices = @transform_5, window_bounds = array<i64: 32, 128>}, {pipeline_mode = #tpu.pipeline_mode<synchronous>, transform_indices = @transform_6, window_bounds = array<i64: 1, 32>}, {pipeline_mode = #tpu.pipeline_mode<synchronous>, transform_indices = @transform_7, window_bounds = array<i64: 1, 32>}, {pipeline_mode = #tpu.pipeline_mode<synchronous>, transform_indices = @transform_8, window_bounds = array<i64: 32, 16>}, {pipeline_mode = #tpu.pipeline_mode<synchronous>, transform_indices = @transform_9, window_bounds = array<i64: 1, 16>}, {transform_indices = @transform_10, window_bounds = array<i64: 8, 16>}]} {
    %c0_i32 = arith.constant 0 : i32
    %0 = arith.cmpi eq, %arg0, %c0_i32 : i32
    %1 = arith.extui %0 : i1 to i32
    %c0_i32_0 = arith.constant 0 : i32
    %2 = arith.cmpi ne, %1, %c0_i32_0 : i32
    scf.if %2 {
      %cst_76 = arith.constant 0.000000e+00 : f32
      %234 = vector.broadcast %cst_76 : f32 to vector<2x32xf32>
      %c0_77 = arith.constant 0 : index
      %c0_78 = arith.constant 0 : index
      %235 = vector.load %arg12[%c0_77, %c0_78] : memref<2x32xf32, #tpu.memory_space<vmem>>, vector<2x32xf32>
      tpu.vector_store %arg12[%c0_77, %c0_78], %234 {strides = array<i32>} : memref<2x32xf32, #tpu.memory_space<vmem>>, vector<2x32xf32>,
      %cst_79 = arith.constant 0.000000e+00 : f32
      %236 = vector.broadcast %cst_79 : f32 to vector<2x32xf32>
      %c0_80 = arith.constant 0 : index
      %c0_81 = arith.constant 0 : index
      %237 = vector.load %arg13[%c0_80, %c0_81] : memref<2x32xf32, #tpu.memory_space<vmem>>, vector<2x32xf32>
      tpu.vector_store %arg13[%c0_80, %c0_81], %236 {strides = array<i32>} : memref<2x32xf32, #tpu.memory_space<vmem>>, vector<2x32xf32>,
    } else {
    }
    %c0 = arith.constant 0 : index
    %c0_1 = arith.constant 0 : index
    %3 = vector.load %arg1[%c0, %c0_1] : memref<8x16xf32, #tpu.memory_space<vmem>>, vector<8x16xf32>
    %c0_2 = arith.constant 0 : index
    %c0_3 = arith.constant 0 : index
    %4 = vector.load %arg2[%c0_2, %c0_3] : memref<16x32xf32, #tpu.memory_space<vmem>>, vector<16x32xf32>
    %cst = arith.constant dense<0.000000e+00> : vector<8x32xf32>
    %5 = tpu.matmul %3, %4, %cst {dimension_numbers = #tpu.dot_dimension_numbers<[1], [0], [0], [1], [0, 0, 1, 1], [], []>} : vector<8x16xf32>, vector<16x32xf32>, vector<8x32xf32> -> vector<8x32xf32>
    %c0_4 = arith.constant 0 : index
    %c0_5 = arith.constant 0 : index
    %6 = vector.load %arg3[%c0_4, %c0_5] : memref<1x32xf32, #tpu.memory_space<vmem>>, vector<1x32xf32>
    %7 = vector.broadcast %6 : vector<1x32xf32> to vector<8x32xf32>
    %8 = arith.addf %5, %7 : vector<8x32xf32>
    %cst_6 = arith.constant 0.000000e+00 : f32
    %9 = vector.broadcast %cst_6 : f32 to vector<8x32xf32>
    %10 = arith.maximumf %8, %9 : vector<8x32xf32>
    %c0_7 = arith.constant 0 : index
    %c0_8 = arith.constant 0 : index
    %11 = vector.load %arg4[%c0_7, %c0_8] : memref<32x128xf32, #tpu.memory_space<vmem>>, vector<32x128xf32>
    %cst_9 = arith.constant dense<0.000000e+00> : vector<8x128xf32>
    %12 = tpu.matmul %10, %11, %cst_9 {dimension_numbers = #tpu.dot_dimension_numbers<[1], [0], [0], [1], [0, 0, 1, 1], [], []>} : vector<8x32xf32>, vector<32x128xf32>, vector<8x128xf32> -> vector<8x128xf32>
    %c0_10 = arith.constant 0 : index
    %c0_11 = arith.constant 0 : index
    %13 = vector.load %arg5[%c0_10, %c0_11] : memref<1x128xf32, #tpu.memory_space<vmem>>, vector<1x128xf32>
    %14 = vector.broadcast %13 : vector<1x128xf32> to vector<8x128xf32>
    %15 = arith.addf %12, %14 : vector<8x128xf32>
    %c0_12 = arith.constant 0 : index
    %c0_13 = arith.constant 0 : index
    %16 = vector.load %arg6[%c0_12, %c0_13] : memref<32x128xf32, #tpu.memory_space<vmem>>, vector<32x128xf32>
    %c0_14 = arith.constant 0 : index
    %c0_15 = arith.constant 0 : index
    %17 = vector.load %arg7[%c0_14, %c0_15] : memref<1x32xf32, #tpu.memory_space<vmem>>, vector<1x32xf32>
    %c0_16 = arith.constant 0 : index
    %c0_17 = arith.constant 0 : index
    %18 = vector.load %arg8[%c0_16, %c0_17] : memref<1x32xf32, #tpu.memory_space<vmem>>, vector<1x32xf32>
    %c0_18 = arith.constant 0 : index
    %c0_19 = arith.constant 0 : index
    %19 = vector.load %arg12[%c0_18, %c0_19] : memref<2x32xf32, #tpu.memory_space<vmem>>, vector<2x32xf32>
    %c0_20 = arith.constant 0 : index
    %c0_21 = arith.constant 0 : index
    %20 = vector.load %arg13[%c0_20, %c0_21] : memref<2x32xf32, #tpu.memory_space<vmem>>, vector<2x32xf32>
    %21 = vector.extract_strided_slice %15 {offsets = [0, 0], sizes = [2, 128], strides = [1, 1]} : vector<8x128xf32> to vector<2x128xf32>
    %cst_22 = arith.constant dense<0.000000e+00> : vector<2x128xf32>
    %22 = tpu.matmul %19, %16, %cst_22 {dimension_numbers = #tpu.dot_dimension_numbers<[1], [0], [0], [1], [0, 0, 1, 1], [], []>} : vector<2x32xf32>, vector<32x128xf32>, vector<2x128xf32> -> vector<2x128xf32>
    %23 = arith.addf %21, %22 : vector<2x128xf32>
    %24 = vector.extract_strided_slice %23 {offsets = [0, 0], sizes = [2, 32], strides = [1, 1]} : vector<2x128xf32> to vector<2x32xf32>
    %25 = arith.negf %24 : vector<2x32xf32>
    %26 = math.exp %25 : vector<2x32xf32>
    %cst_23 = arith.constant 1.000000e+00 : f32
    %27 = vector.broadcast %cst_23 : f32 to vector<2x32xf32>
    %28 = arith.addf %27, %26 : vector<2x32xf32>
    %29 = arith.divf %27, %28 : vector<2x32xf32>
    %30 = vector.extract_strided_slice %23 {offsets = [0, 32], sizes = [2, 32], strides = [1, 1]} : vector<2x128xf32> to vector<2x32xf32>
    %31 = arith.negf %30 : vector<2x32xf32>
    %32 = math.exp %31 : vector<2x32xf32>
    %cst_24 = arith.constant 1.000000e+00 : f32
    %33 = vector.broadcast %cst_24 : f32 to vector<2x32xf32>
    %34 = arith.addf %33, %32 : vector<2x32xf32>
    %35 = arith.divf %33, %34 : vector<2x32xf32>
    %36 = vector.extract_strided_slice %23 {offsets = [0, 64], sizes = [2, 32], strides = [1, 1]} : vector<2x128xf32> to vector<2x32xf32>
    %37 = math.tanh %36 : vector<2x32xf32>
    %38 = vector.extract_strided_slice %23 {offsets = [0, 96], sizes = [2, 32], strides = [1, 1]} : vector<2x128xf32> to vector<2x32xf32>
    %39 = arith.negf %38 : vector<2x32xf32>
    %40 = math.exp %39 : vector<2x32xf32>
    %cst_25 = arith.constant 1.000000e+00 : f32
    %41 = vector.broadcast %cst_25 : f32 to vector<2x32xf32>
    %42 = arith.addf %41, %40 : vector<2x32xf32>
    %43 = arith.divf %41, %42 : vector<2x32xf32>
    %44 = arith.mulf %35, %20 : vector<2x32xf32>
    %45 = arith.mulf %29, %37 : vector<2x32xf32>
    %46 = arith.addf %44, %45 : vector<2x32xf32>
    %47 = math.tanh %46 : vector<2x32xf32>
    %48 = arith.mulf %43, %47 : vector<2x32xf32>
    %cst_26 = arith.constant dense<0.000000e+00> : vector<2xf32>
    %49 = vector.multi_reduction <add>, %48, %cst_26 [1] : vector<2x32xf32> to vector<2xf32>
    %50 = vector.shape_cast %49 : vector<2xf32> to vector<2x1xf32>
    %cst_27 = arith.constant 3.125000e-02 : f32
    %51 = vector.broadcast %cst_27 : f32 to vector<2x1xf32>
    %52 = arith.mulf %50, %51 : vector<2x1xf32>
    %53 = arith.mulf %48, %48 : vector<2x32xf32>
    %cst_28 = arith.constant dense<0.000000e+00> : vector<2xf32>
    %54 = vector.multi_reduction <add>, %53, %cst_28 [1] : vector<2x32xf32> to vector<2xf32>
    %55 = vector.shape_cast %54 : vector<2xf32> to vector<2x1xf32>
    %cst_29 = arith.constant 3.125000e-02 : f32
    %56 = vector.broadcast %cst_29 : f32 to vector<2x1xf32>
    %57 = arith.mulf %55, %56 : vector<2x1xf32>
    %58 = arith.mulf %52, %52 : vector<2x1xf32>
    %59 = arith.subf %57, %58 : vector<2x1xf32>
    %60 = vector.broadcast %52 : vector<2x1xf32> to vector<2x32xf32>
    %61 = arith.subf %48, %60 : vector<2x32xf32>
    %cst_30 = arith.constant 9.99999974E-6 : f32
    %62 = vector.broadcast %cst_30 : f32 to vector<2x1xf32>
    %63 = arith.addf %59, %62 : vector<2x1xf32>
    %64 = math.rsqrt %63 : vector<2x1xf32>
    %65 = vector.broadcast %64 : vector<2x1xf32> to vector<2x32xf32>
    %66 = arith.mulf %61, %65 : vector<2x32xf32>
    %67 = vector.broadcast %17 : vector<1x32xf32> to vector<2x32xf32>
    %68 = arith.mulf %66, %67 : vector<2x32xf32>
    %69 = vector.broadcast %18 : vector<1x32xf32> to vector<2x32xf32>
    %70 = arith.addf %68, %69 : vector<2x32xf32>
    %c0_31 = arith.constant 0 : index
    %c0_32 = arith.constant 0 : index
    %71 = vector.load %arg14[%c0_31, %c0_32] : memref<8x32xf32, #tpu.memory_space<vmem>>, vector<2x32xf32>
    tpu.vector_store %arg14[%c0_31, %c0_32], %70 {strides = array<i32>} : memref<8x32xf32, #tpu.memory_space<vmem>>, vector<2x32xf32>,
    %72 = vector.extract_strided_slice %15 {offsets = [2, 0], sizes = [2, 128], strides = [1, 1]} : vector<8x128xf32> to vector<2x128xf32>
    %cst_33 = arith.constant dense<0.000000e+00> : vector<2x128xf32>
    %73 = tpu.matmul %48, %16, %cst_33 {dimension_numbers = #tpu.dot_dimension_numbers<[1], [0], [0], [1], [0, 0, 1, 1], [], []>} : vector<2x32xf32>, vector<32x128xf32>, vector<2x128xf32> -> vector<2x128xf32>
    %74 = arith.addf %72, %73 : vector<2x128xf32>
    %75 = vector.extract_strided_slice %74 {offsets = [0, 0], sizes = [2, 32], strides = [1, 1]} : vector<2x128xf32> to vector<2x32xf32>
    %76 = arith.negf %75 : vector<2x32xf32>
    %77 = math.exp %76 : vector<2x32xf32>
    %cst_34 = arith.constant 1.000000e+00 : f32
    %78 = vector.broadcast %cst_34 : f32 to vector<2x32xf32>
    %79 = arith.addf %78, %77 : vector<2x32xf32>
    %80 = arith.divf %78, %79 : vector<2x32xf32>
    %81 = vector.extract_strided_slice %74 {offsets = [0, 32], sizes = [2, 32], strides = [1, 1]} : vector<2x128xf32> to vector<2x32xf32>
    %82 = arith.negf %81 : vector<2x32xf32>
    %83 = math.exp %82 : vector<2x32xf32>
    %cst_35 = arith.constant 1.000000e+00 : f32
    %84 = vector.broadcast %cst_35 : f32 to vector<2x32xf32>
    %85 = arith.addf %84, %83 : vector<2x32xf32>
    %86 = arith.divf %84, %85 : vector<2x32xf32>
    %87 = vector.extract_strided_slice %74 {offsets = [0, 64], sizes = [2, 32], strides = [1, 1]} : vector<2x128xf32> to vector<2x32xf32>
    %88 = math.tanh %87 : vector<2x32xf32>
    %89 = vector.extract_strided_slice %74 {offsets = [0, 96], sizes = [2, 32], strides = [1, 1]} : vector<2x128xf32> to vector<2x32xf32>
    %90 = arith.negf %89 : vector<2x32xf32>
    %91 = math.exp %90 : vector<2x32xf32>
    %cst_36 = arith.constant 1.000000e+00 : f32
    %92 = vector.broadcast %cst_36 : f32 to vector<2x32xf32>
    %93 = arith.addf %92, %91 : vector<2x32xf32>
    %94 = arith.divf %92, %93 : vector<2x32xf32>
    %95 = arith.mulf %86, %46 : vector<2x32xf32>
    %96 = arith.mulf %80, %88 : vector<2x32xf32>
    %97 = arith.addf %95, %96 : vector<2x32xf32>
    %98 = math.tanh %97 : vector<2x32xf32>
    %99 = arith.mulf %94, %98 : vector<2x32xf32>
    %cst_37 = arith.constant dense<0.000000e+00> : vector<2xf32>
    %100 = vector.multi_reduction <add>, %99, %cst_37 [1] : vector<2x32xf32> to vector<2xf32>
    %101 = vector.shape_cast %100 : vector<2xf32> to vector<2x1xf32>
    %cst_38 = arith.constant 3.125000e-02 : f32
    %102 = vector.broadcast %cst_38 : f32 to vector<2x1xf32>
    %103 = arith.mulf %101, %102 : vector<2x1xf32>
    %104 = arith.mulf %99, %99 : vector<2x32xf32>
    %cst_39 = arith.constant dense<0.000000e+00> : vector<2xf32>
    %105 = vector.multi_reduction <add>, %104, %cst_39 [1] : vector<2x32xf32> to vector<2xf32>
    %106 = vector.shape_cast %105 : vector<2xf32> to vector<2x1xf32>
    %cst_40 = arith.constant 3.125000e-02 : f32
    %107 = vector.broadcast %cst_40 : f32 to vector<2x1xf32>
    %108 = arith.mulf %106, %107 : vector<2x1xf32>
    %109 = arith.mulf %103, %103 : vector<2x1xf32>
    %110 = arith.subf %108, %109 : vector<2x1xf32>
    %111 = vector.broadcast %103 : vector<2x1xf32> to vector<2x32xf32>
    %112 = arith.subf %99, %111 : vector<2x32xf32>
    %cst_41 = arith.constant 9.99999974E-6 : f32
    %113 = vector.broadcast %cst_41 : f32 to vector<2x1xf32>
    %114 = arith.addf %110, %113 : vector<2x1xf32>
    %115 = math.rsqrt %114 : vector<2x1xf32>
    %116 = vector.broadcast %115 : vector<2x1xf32> to vector<2x32xf32>
    %117 = arith.mulf %112, %116 : vector<2x32xf32>
    %118 = vector.broadcast %17 : vector<1x32xf32> to vector<2x32xf32>
    %119 = arith.mulf %117, %118 : vector<2x32xf32>
    %120 = vector.broadcast %18 : vector<1x32xf32> to vector<2x32xf32>
    %121 = arith.addf %119, %120 : vector<2x32xf32>
    %c2 = arith.constant 2 : index
    %c0_42 = arith.constant 0 : index
    %122 = vector.load %arg14[%c2, %c0_42] : memref<8x32xf32, #tpu.memory_space<vmem>>, vector<2x32xf32>
    tpu.vector_store %arg14[%c2, %c0_42], %121 {strides = array<i32>} : memref<8x32xf32, #tpu.memory_space<vmem>>, vector<2x32xf32>,
    %123 = vector.extract_strided_slice %15 {offsets = [4, 0], sizes = [2, 128], strides = [1, 1]} : vector<8x128xf32> to vector<2x128xf32>
    %cst_43 = arith.constant dense<0.000000e+00> : vector<2x128xf32>
    %124 = tpu.matmul %99, %16, %cst_43 {dimension_numbers = #tpu.dot_dimension_numbers<[1], [0], [0], [1], [0, 0, 1, 1], [], []>} : vector<2x32xf32>, vector<32x128xf32>, vector<2x128xf32> -> vector<2x128xf32>
    %125 = arith.addf %123, %124 : vector<2x128xf32>
    %126 = vector.extract_strided_slice %125 {offsets = [0, 0], sizes = [2, 32], strides = [1, 1]} : vector<2x128xf32> to vector<2x32xf32>
    %127 = arith.negf %126 : vector<2x32xf32>
    %128 = math.exp %127 : vector<2x32xf32>
    %cst_44 = arith.constant 1.000000e+00 : f32
    %129 = vector.broadcast %cst_44 : f32 to vector<2x32xf32>
    %130 = arith.addf %129, %128 : vector<2x32xf32>
    %131 = arith.divf %129, %130 : vector<2x32xf32>
    %132 = vector.extract_strided_slice %125 {offsets = [0, 32], sizes = [2, 32], strides = [1, 1]} : vector<2x128xf32> to vector<2x32xf32>
    %133 = arith.negf %132 : vector<2x32xf32>
    %134 = math.exp %133 : vector<2x32xf32>
    %cst_45 = arith.constant 1.000000e+00 : f32
    %135 = vector.broadcast %cst_45 : f32 to vector<2x32xf32>
    %136 = arith.addf %135, %134 : vector<2x32xf32>
    %137 = arith.divf %135, %136 : vector<2x32xf32>
    %138 = vector.extract_strided_slice %125 {offsets = [0, 64], sizes = [2, 32], strides = [1, 1]} : vector<2x128xf32> to vector<2x32xf32>
    %139 = math.tanh %138 : vector<2x32xf32>
    %140 = vector.extract_strided_slice %125 {offsets = [0, 96], sizes = [2, 32], strides = [1, 1]} : vector<2x128xf32> to vector<2x32xf32>
    %141 = arith.negf %140 : vector<2x32xf32>
    %142 = math.exp %141 : vector<2x32xf32>
    %cst_46 = arith.constant 1.000000e+00 : f32
    %143 = vector.broadcast %cst_46 : f32 to vector<2x32xf32>
    %144 = arith.addf %143, %142 : vector<2x32xf32>
    %145 = arith.divf %143, %144 : vector<2x32xf32>
    %146 = arith.mulf %137, %97 : vector<2x32xf32>
    %147 = arith.mulf %131, %139 : vector<2x32xf32>
    %148 = arith.addf %146, %147 : vector<2x32xf32>
    %149 = math.tanh %148 : vector<2x32xf32>
    %150 = arith.mulf %145, %149 : vector<2x32xf32>
    %cst_47 = arith.constant dense<0.000000e+00> : vector<2xf32>
    %151 = vector.multi_reduction <add>, %150, %cst_47 [1] : vector<2x32xf32> to vector<2xf32>
    %152 = vector.shape_cast %151 : vector<2xf32> to vector<2x1xf32>
    %cst_48 = arith.constant 3.125000e-02 : f32
    %153 = vector.broadcast %cst_48 : f32 to vector<2x1xf32>
    %154 = arith.mulf %152, %153 : vector<2x1xf32>
    %155 = arith.mulf %150, %150 : vector<2x32xf32>
    %cst_49 = arith.constant dense<0.000000e+00> : vector<2xf32>
    %156 = vector.multi_reduction <add>, %155, %cst_49 [1] : vector<2x32xf32> to vector<2xf32>
    %157 = vector.shape_cast %156 : vector<2xf32> to vector<2x1xf32>
    %cst_50 = arith.constant 3.125000e-02 : f32
    %158 = vector.broadcast %cst_50 : f32 to vector<2x1xf32>
    %159 = arith.mulf %157, %158 : vector<2x1xf32>
    %160 = arith.mulf %154, %154 : vector<2x1xf32>
    %161 = arith.subf %159, %160 : vector<2x1xf32>
    %162 = vector.broadcast %154 : vector<2x1xf32> to vector<2x32xf32>
    %163 = arith.subf %150, %162 : vector<2x32xf32>
    %cst_51 = arith.constant 9.99999974E-6 : f32
    %164 = vector.broadcast %cst_51 : f32 to vector<2x1xf32>
    %165 = arith.addf %161, %164 : vector<2x1xf32>
    %166 = math.rsqrt %165 : vector<2x1xf32>
    %167 = vector.broadcast %166 : vector<2x1xf32> to vector<2x32xf32>
    %168 = arith.mulf %163, %167 : vector<2x32xf32>
    %169 = vector.broadcast %17 : vector<1x32xf32> to vector<2x32xf32>
    %170 = arith.mulf %168, %169 : vector<2x32xf32>
    %171 = vector.broadcast %18 : vector<1x32xf32> to vector<2x32xf32>
    %172 = arith.addf %170, %171 : vector<2x32xf32>
    %c4 = arith.constant 4 : index
    %c0_52 = arith.constant 0 : index
    %173 = vector.load %arg14[%c4, %c0_52] : memref<8x32xf32, #tpu.memory_space<vmem>>, vector<2x32xf32>
    tpu.vector_store %arg14[%c4, %c0_52], %172 {strides = array<i32>} : memref<8x32xf32, #tpu.memory_space<vmem>>, vector<2x32xf32>,
    %174 = vector.extract_strided_slice %15 {offsets = [6, 0], sizes = [2, 128], strides = [1, 1]} : vector<8x128xf32> to vector<2x128xf32>
    %cst_53 = arith.constant dense<0.000000e+00> : vector<2x128xf32>
    %175 = tpu.matmul %150, %16, %cst_53 {dimension_numbers = #tpu.dot_dimension_numbers<[1], [0], [0], [1], [0, 0, 1, 1], [], []>} : vector<2x32xf32>, vector<32x128xf32>, vector<2x128xf32> -> vector<2x128xf32>
    %176 = arith.addf %174, %175 : vector<2x128xf32>
    %177 = vector.extract_strided_slice %176 {offsets = [0, 0], sizes = [2, 32], strides = [1, 1]} : vector<2x128xf32> to vector<2x32xf32>
    %178 = arith.negf %177 : vector<2x32xf32>
    %179 = math.exp %178 : vector<2x32xf32>
    %cst_54 = arith.constant 1.000000e+00 : f32
    %180 = vector.broadcast %cst_54 : f32 to vector<2x32xf32>
    %181 = arith.addf %180, %179 : vector<2x32xf32>
    %182 = arith.divf %180, %181 : vector<2x32xf32>
    %183 = vector.extract_strided_slice %176 {offsets = [0, 32], sizes = [2, 32], strides = [1, 1]} : vector<2x128xf32> to vector<2x32xf32>
    %184 = arith.negf %183 : vector<2x32xf32>
    %185 = math.exp %184 : vector<2x32xf32>
    %cst_55 = arith.constant 1.000000e+00 : f32
    %186 = vector.broadcast %cst_55 : f32 to vector<2x32xf32>
    %187 = arith.addf %186, %185 : vector<2x32xf32>
    %188 = arith.divf %186, %187 : vector<2x32xf32>
    %189 = vector.extract_strided_slice %176 {offsets = [0, 64], sizes = [2, 32], strides = [1, 1]} : vector<2x128xf32> to vector<2x32xf32>
    %190 = math.tanh %189 : vector<2x32xf32>
    %191 = vector.extract_strided_slice %176 {offsets = [0, 96], sizes = [2, 32], strides = [1, 1]} : vector<2x128xf32> to vector<2x32xf32>
    %192 = arith.negf %191 : vector<2x32xf32>
    %193 = math.exp %192 : vector<2x32xf32>
    %cst_56 = arith.constant 1.000000e+00 : f32
    %194 = vector.broadcast %cst_56 : f32 to vector<2x32xf32>
    %195 = arith.addf %194, %193 : vector<2x32xf32>
    %196 = arith.divf %194, %195 : vector<2x32xf32>
    %197 = arith.mulf %188, %148 : vector<2x32xf32>
    %198 = arith.mulf %182, %190 : vector<2x32xf32>
    %199 = arith.addf %197, %198 : vector<2x32xf32>
    %200 = math.tanh %199 : vector<2x32xf32>
    %201 = arith.mulf %196, %200 : vector<2x32xf32>
    %cst_57 = arith.constant dense<0.000000e+00> : vector<2xf32>
    %202 = vector.multi_reduction <add>, %201, %cst_57 [1] : vector<2x32xf32> to vector<2xf32>
    %203 = vector.shape_cast %202 : vector<2xf32> to vector<2x1xf32>
    %cst_58 = arith.constant 3.125000e-02 : f32
    %204 = vector.broadcast %cst_58 : f32 to vector<2x1xf32>
    %205 = arith.mulf %203, %204 : vector<2x1xf32>
    %206 = arith.mulf %201, %201 : vector<2x32xf32>
    %cst_59 = arith.constant dense<0.000000e+00> : vector<2xf32>
    %207 = vector.multi_reduction <add>, %206, %cst_59 [1] : vector<2x32xf32> to vector<2xf32>
    %208 = vector.shape_cast %207 : vector<2xf32> to vector<2x1xf32>
    %cst_60 = arith.constant 3.125000e-02 : f32
    %209 = vector.broadcast %cst_60 : f32 to vector<2x1xf32>
    %210 = arith.mulf %208, %209 : vector<2x1xf32>
    %211 = arith.mulf %205, %205 : vector<2x1xf32>
    %212 = arith.subf %210, %211 : vector<2x1xf32>
    %213 = vector.broadcast %205 : vector<2x1xf32> to vector<2x32xf32>
    %214 = arith.subf %201, %213 : vector<2x32xf32>
    %cst_61 = arith.constant 9.99999974E-6 : f32
    %215 = vector.broadcast %cst_61 : f32 to vector<2x1xf32>
    %216 = arith.addf %212, %215 : vector<2x1xf32>
    %217 = math.rsqrt %216 : vector<2x1xf32>
    %218 = vector.broadcast %217 : vector<2x1xf32> to vector<2x32xf32>
    %219 = arith.mulf %214, %218 : vector<2x32xf32>
    %220 = vector.broadcast %17 : vector<1x32xf32> to vector<2x32xf32>
    %221 = arith.mulf %219, %220 : vector<2x32xf32>
    %222 = vector.broadcast %18 : vector<1x32xf32> to vector<2x32xf32>
    %223 = arith.addf %221, %222 : vector<2x32xf32>
    %c6 = arith.constant 6 : index
    %c0_62 = arith.constant 0 : index
    %224 = vector.load %arg14[%c6, %c0_62] : memref<8x32xf32, #tpu.memory_space<vmem>>, vector<2x32xf32>
    tpu.vector_store %arg14[%c6, %c0_62], %223 {strides = array<i32>} : memref<8x32xf32, #tpu.memory_space<vmem>>, vector<2x32xf32>,
    %c0_63 = arith.constant 0 : index
    %c0_64 = arith.constant 0 : index
    %225 = vector.load %arg12[%c0_63, %c0_64] : memref<2x32xf32, #tpu.memory_space<vmem>>, vector<2x32xf32>
    tpu.vector_store %arg12[%c0_63, %c0_64], %201 {strides = array<i32>} : memref<2x32xf32, #tpu.memory_space<vmem>>, vector<2x32xf32>,
    %c0_65 = arith.constant 0 : index
    %c0_66 = arith.constant 0 : index
    %226 = vector.load %arg13[%c0_65, %c0_66] : memref<2x32xf32, #tpu.memory_space<vmem>>, vector<2x32xf32>
    tpu.vector_store %arg13[%c0_65, %c0_66], %199 {strides = array<i32>} : memref<2x32xf32, #tpu.memory_space<vmem>>, vector<2x32xf32>,
    %c0_67 = arith.constant 0 : index
    %c0_68 = arith.constant 0 : index
    %227 = vector.load %arg14[%c0_67, %c0_68] : memref<8x32xf32, #tpu.memory_space<vmem>>, vector<8x32xf32>
    %c0_69 = arith.constant 0 : index
    %c0_70 = arith.constant 0 : index
    %228 = vector.load %arg9[%c0_69, %c0_70] : memref<32x16xf32, #tpu.memory_space<vmem>>, vector<32x16xf32>
    %cst_71 = arith.constant dense<0.000000e+00> : vector<8x16xf32>
    %229 = tpu.matmul %227, %228, %cst_71 {dimension_numbers = #tpu.dot_dimension_numbers<[1], [0], [0], [1], [0, 0, 1, 1], [], []>} : vector<8x32xf32>, vector<32x16xf32>, vector<8x16xf32> -> vector<8x16xf32>
    %c0_72 = arith.constant 0 : index
    %c0_73 = arith.constant 0 : index
    %230 = vector.load %arg10[%c0_72, %c0_73] : memref<1x16xf32, #tpu.memory_space<vmem>>, vector<1x16xf32>
    %231 = vector.broadcast %230 : vector<1x16xf32> to vector<8x16xf32>
    %232 = arith.addf %229, %231 : vector<8x16xf32>
    %c0_74 = arith.constant 0 : index
    %c0_75 = arith.constant 0 : index
    %233 = vector.load %arg11[%c0_74, %c0_75] : memref<8x16xf32, #tpu.memory_space<vmem>>, vector<8x16xf32>
    tpu.vector_store %arg11[%c0_74, %c0_75], %232 {strides = array<i32>} : memref<8x16xf32, #tpu.memory_space<vmem>>, vector<8x16xf32>,
    return
  }
  func.func @transform_0(%arg0: i32) -> (i32, i32) {
    %c0_i32 = arith.constant 0 : i32
    %c0_i32_0 = arith.constant 0 : i32
    return %arg0, %c0_i32 : i32, i32
  }
  func.func @transform_1(%arg0: i32) -> (i32, i32) {
    %c0_i32 = arith.constant 0 : i32
    %c0_i32_0 = arith.constant 0 : i32
    %c0_i32_1 = arith.constant 0 : i32
    return %c0_i32, %c0_i32_0 : i32, i32
  }
  func.func @transform_2(%arg0: i32) -> (i32, i32) {
    %c0_i32 = arith.constant 0 : i32
    %c0_i32_0 = arith.constant 0 : i32
    %c0_i32_1 = arith.constant 0 : i32
    return %c0_i32, %c0_i32_0 : i32, i32
  }
  func.func @transform_3(%arg0: i32) -> (i32, i32) {
    %c0_i32 = arith.constant 0 : i32
    %c0_i32_0 = arith.constant 0 : i32
    %c0_i32_1 = arith.constant 0 : i32
    return %c0_i32, %c0_i32_0 : i32, i32
  }
  func.func @transform_4(%arg0: i32) -> (i32, i32) {
    %c0_i32 = arith.constant 0 : i32
    %c0_i32_0 = arith.constant 0 : i32
    %c0_i32_1 = arith.constant 0 : i32
    return %c0_i32, %c0_i32_0 : i32, i32
  }
  func.func @transform_5(%arg0: i32) -> (i32, i32) {
    %c0_i32 = arith.constant 0 : i32
    %c0_i32_0 = arith.constant 0 : i32
    %c0_i32_1 = arith.constant 0 : i32
    return %c0_i32, %c0_i32_0 : i32, i32
  }
  func.func @transform_6(%arg0: i32) -> (i32, i32) {
    %c0_i32 = arith.constant 0 : i32
    %c0_i32_0 = arith.constant 0 : i32
    %c0_i32_1 = arith.constant 0 : i32
    return %c0_i32, %c0_i32_0 : i32, i32
  }
  func.func @transform_7(%arg0: i32) -> (i32, i32) {
    %c0_i32 = arith.constant 0 : i32
    %c0_i32_0 = arith.constant 0 : i32
    %c0_i32_1 = arith.constant 0 : i32
    return %c0_i32, %c0_i32_0 : i32, i32
  }
  func.func @transform_8(%arg0: i32) -> (i32, i32) {
    %c0_i32 = arith.constant 0 : i32
    %c0_i32_0 = arith.constant 0 : i32
    %c0_i32_1 = arith.constant 0 : i32
    return %c0_i32, %c0_i32_0 : i32, i32
  }
  func.func @transform_9(%arg0: i32) -> (i32, i32) {
    %c0_i32 = arith.constant 0 : i32
    %c0_i32_0 = arith.constant 0 : i32
    %c0_i32_1 = arith.constant 0 : i32
    return %c0_i32, %c0_i32_0 : i32, i32
  }
  func.func @transform_10(%arg0: i32) -> (i32, i32) {
    %c0_i32 = arith.constant 0 : i32
    %c0_i32_0 = arith.constant 0 : i32
    return %arg0, %c0_i32 : i32, i32
  }
}

module attributes {stable_mosaic.version = 11 : i64} {
  func.func @_lit_fused_kernel(%arg0: i32, %arg1: memref<8x16xf32, #tpu.memory_space<vmem>>, %arg2: memref<16x32xf32, #tpu.memory_space<vmem>>, %arg3: memref<1x32xf32, #tpu.memory_space<vmem>>, %arg4: memref<32x128xf32, #tpu.memory_space<vmem>>, %arg5: memref<1x128xf32, #tpu.memory_space<vmem>>, %arg6: memref<32x128xf32, #tpu.memory_space<vmem>>, %arg7: memref<1x32xf32, #tpu.memory_space<vmem>>, %arg8: memref<1x32xf32, #tpu.memory_space<vmem>>, %arg9: memref<32x16xf32, #tpu.memory_space<vmem>>, %arg10: memref<1x16xf32, #tpu.memory_space<vmem>>, %arg11: memref<8x16xf32, #tpu.memory_space<vmem>>, %arg12: memref<2x32xf32, #tpu.memory_space<vmem>>, %arg13: memref<2x32xf32, #tpu.memory_space<vmem>>, %arg14: memref<8x32xf32, #tpu.memory_space<vmem>>) attributes {dimension_semantics = [#tpu.dimension_semantics<arbitrary>], iteration_bounds = array<i64: 2>, scalar_prefetch = 0 : i64, scratch_operands = 3 : i64, tpu.core_type = #tpu.core_type<tc>, window_params = [{transform_indices = @transform_0, window_bounds = array<i64: 8, 16>}, {pipeline_mode = #tpu.pipeline_mode<synchronous>, transform_indices = @transform_1, window_bounds = array<i64: 16, 32>}, {pipeline_mode = #tpu.pipeline_mode<synchronous>, transform_indices = @transform_2, window_bounds = array<i64: 1, 32>}, {pipeline_mode = #tpu.pipeline_mode<synchronous>, transform_indices = @transform_3, window_bounds = array<i64: 32, 128>}, {pipeline_mode = #tpu.pipeline_mode<synchronous>, transform_indices = @transform_4, window_bounds = array<i64: 1, 128>}, {pipeline_mode = #tpu.pipeline_mode<synchronous>, transform_indices = @transform_5, window_bounds = array<i64: 32, 128>}, {pipeline_mode = #tpu.pipeline_mode<synchronous>, transform_indices = @transform_6, window_bounds = array<i64: 1, 32>}, {pipeline_mode = #tpu.pipeline_mode<synchronous>, transform_indices = @transform_7, window_bounds = array<i64: 1, 32>}, {pipeline_mode = #tpu.pipeline_mode<synchronous>, transform_indices = @transform_8, window_bounds = array<i64: 32, 16>}, {pipeline_mode = #tpu.pipeline_mode<synchronous>, transform_indices = @transform_9, window_bounds = array<i64: 1, 16>}, {transform_indices = @transform_10, window_bounds = array<i64: 8, 16>}]} {
    %c0_i32 = arith.constant 0 : i32
    %0 = arith.cmpi eq, %arg0, %c0_i32 : i32
    %1 = arith.extui %0 : i1 to i32
    %c0_i32_0 = arith.constant 0 : i32
    %2 = arith.cmpi ne, %1, %c0_i32_0 : i32
    scf.if %2 {
      %cst_76 = arith.constant 0.000000e+00 : f32
      %234 = vector.broadcast %cst_76 : f32 to vector<2x32xf32>
      %c0_77 = arith.constant 0 : index
      %c0_78 = arith.constant 0 : index
      %235 = vector.load %arg12[%c0_77, %c0_78] : memref<2x32xf32, #tpu.memory_space<vmem>>, vector<2x32xf32>
      tpu.vector_store %arg12[%c0_77, %c0_78], %234 {strides = array<i32>} : memref<2x32xf32, #tpu.memory_space<vmem>>, vector<2x32xf32>,
      %cst_79 = arith.constant 0.000000e+00 : f32
      %236 = vector.broadcast %cst_79 : f32 to vector<2x32xf32>
      %c0_80 = arith.constant 0 : index
      %c0_81 = arith.constant 0 : index
      %237 = vector.load %arg13[%c0_80, %c0_81] : memref<2x32xf32, #tpu.memory_space<vmem>>, vector<2x32xf32>
      tpu.vector_store %arg13[%c0_80, %c0_81], %236 {strides = array<i32>} : memref<2x32xf32, #tpu.memory_space<vmem>>, vector<2x32xf32>,
    } else {
    }
    %c0 = arith.constant 0 : index
    %c0_1 = arith.constant 0 : index
    %3 = vector.load %arg1[%c0, %c0_1] : memref<8x16xf32, #tpu.memory_space<vmem>>, vector<8x16xf32>
    %c0_2 = arith.constant 0 : index
    %c0_3 = arith.constant 0 : index
    %4 = vector.load %arg2[%c0_2, %c0_3] : memref<16x32xf32, #tpu.memory_space<vmem>>, vector<16x32xf32>
    %cst = arith.constant dense<0.000000e+00> : vector<8x32xf32>
    %5 = tpu.matmul %3, %4, %cst {dimension_numbers = #tpu.dot_dimension_numbers<[1], [0], [0], [1], [0, 0, 1, 1], [], []>} : vector<8x16xf32>, vector<16x32xf32>, vector<8x32xf32> -> vector<8x32xf32>
    %c0_4 = arith.constant 0 : index
    %c0_5 = arith.constant 0 : index
    %6 = vector.load %arg3[%c0_4, %c0_5] : memref<1x32xf32, #tpu.memory_space<vmem>>, vector<1x32xf32>
    %7 = vector.broadcast %6 : vector<1x32xf32> to vector<8x32xf32>
    %8 = arith.addf %5, %7 : vector<8x32xf32>
    %cst_6 = arith.constant 0.000000e+00 : f32
    %9 = vector.broadcast %cst_6 : f32 to vector<8x32xf32>
    %10 = arith.maximumf %8, %9 : vector<8x32xf32>
    %c0_7 = arith.constant 0 : index
    %c0_8 = arith.constant 0 : index
    %11 = vector.load %arg4[%c0_7, %c0_8] : memref<32x128xf32, #tpu.memory_space<vmem>>, vector<32x128xf32>
    %cst_9 = arith.constant dense<0.000000e+00> : vector<8x128xf32>
    %12 = tpu.matmul %10, %11, %cst_9 {dimension_numbers = #tpu.dot_dimension_numbers<[1], [0], [0], [1], [0, 0, 1, 1], [], []>} : vector<8x32xf32>, vector<32x128xf32>, vector<8x128xf32> -> vector<8x128xf32>
    %c0_10 = arith.constant 0 : index
    %c0_11 = arith.constant 0 : index
    %13 = vector.load %arg5[%c0_10, %c0_11] : memref<1x128xf32, #tpu.memory_space<vmem>>, vector<1x128xf32>
    %14 = vector.broadcast %13 : vector<1x128xf32> to vector<8x128xf32>
    %15 = arith.addf %12, %14 : vector<8x128xf32>
    %c0_12 = arith.constant 0 : index
    %c0_13 = arith.constant 0 : index
    %16 = vector.load %arg6[%c0_12, %c0_13] : memref<32x128xf32, #tpu.memory_space<vmem>>, vector<32x128xf32>
    %c0_14 = arith.constant 0 : index
    %c0_15 = arith.constant 0 : index
    %17 = vector.load %arg7[%c0_14, %c0_15] : memref<1x32xf32, #tpu.memory_space<vmem>>, vector<1x32xf32>
    %c0_16 = arith.constant 0 : index
    %c0_17 = arith.constant 0 : index
    %18 = vector.load %arg8[%c0_16, %c0_17] : memref<1x32xf32, #tpu.memory_space<vmem>>, vector<1x32xf32>
    %c0_18 = arith.constant 0 : index
    %c0_19 = arith.constant 0 : index
    %19 = vector.load %arg12[%c0_18, %c0_19] : memref<2x32xf32, #tpu.memory_space<vmem>>, vector<2x32xf32>
    %c0_20 = arith.constant 0 : index
    %c0_21 = arith.constant 0 : index
    %20 = vector.load %arg13[%c0_20, %c0_21] : memref<2x32xf32, #tpu.memory_space<vmem>>, vector<2x32xf32>
    %21 = vector.extract_strided_slice %15 {offsets = [0, 0], sizes = [2, 128], strides = [1, 1]} : vector<8x128xf32> to vector<2x128xf32>
    %cst_22 = arith.constant dense<0.000000e+00> : vector<2x128xf32>
    %22 = tpu.matmul %19, %16, %cst_22 {dimension_numbers = #tpu.dot_dimension_numbers<[1], [0], [0], [1], [0, 0, 1, 1], [], []>} : vector<2x32xf32>, vector<32x128xf32>, vector<2x128xf32> -> vector<2x128xf32>
    %23 = arith.addf %21, %22 : vector<2x128xf32>
    %24 = vector.extract_strided_slice %23 {offsets = [0, 0], sizes = [2, 32], strides = [1, 1]} : vector<2x128xf32> to vector<2x32xf32>
    %25 = arith.negf %24 : vector<2x32xf32>
    %26 = math.exp %25 : vector<2x32xf32>
    %cst_23 = arith.constant 1.000000e+00 : f32
    %27 = vector.broadcast %cst_23 : f32 to vector<2x32xf32>
    %28 = arith.addf %27, %26 : vector<2x32xf32>
    %29 = arith.divf %27, %28 : vector<2x32xf32>
    %30 = vector.extract_strided_slice %23 {offsets = [0, 32], sizes = [2, 32], strides = [1, 1]} : vector<2x128xf32> to vector<2x32xf32>
    %31 = arith.negf %30 : vector<2x32xf32>
    %32 = math.exp %31 : vector<2x32xf32>
    %cst_24 = arith.constant 1.000000e+00 : f32
    %33 = vector.broadcast %cst_24 : f32 to vector<2x32xf32>
    %34 = arith.addf %33, %32 : vector<2x32xf32>
    %35 = arith.divf %33, %34 : vector<2x32xf32>
    %36 = vector.extract_strided_slice %23 {offsets = [0, 64], sizes = [2, 32], strides = [1, 1]} : vector<2x128xf32> to vector<2x32xf32>
    %37 = math.tanh %36 : vector<2x32xf32>
    %38 = vector.extract_strided_slice %23 {offsets = [0, 96], sizes = [2, 32], strides = [1, 1]} : vector<2x128xf32> to vector<2x32xf32>
    %39 = arith.negf %38 : vector<2x32xf32>
    %40 = math.exp %39 : vector<2x32xf32>
    %cst_25 = arith.constant 1.000000e+00 : f32
    %41 = vector.broadcast %cst_25 : f32 to vector<2x32xf32>
    %42 = arith.addf %41, %40 : vector<2x32xf32>
    %43 = arith.divf %41, %42 : vector<2x32xf32>
    %44 = arith.mulf %35, %20 : vector<2x32xf32>
    %45 = arith.mulf %29, %37 : vector<2x32xf32>
    %46 = arith.addf %44, %45 : vector<2x32xf32>
    %47 = math.tanh %46 : vector<2x32xf32>
    %48 = arith.mulf %43, %47 : vector<2x32xf32>
    %cst_26 = arith.constant dense<0.000000e+00> : vector<2xf32>
    %49 = vector.multi_reduction <add>, %48, %cst_26 [1] : vector<2x32xf32> to vector<2xf32>
    %50 = vector.shape_cast %49 : vector<2xf32> to vector<2x1xf32>
    %cst_27 = arith.constant 3.125000e-02 : f32
    %51 = vector.broadcast %cst_27 : f32 to vector<2x1xf32>
    %52 = arith.mulf %50, %51 : vector<2x1xf32>
    %53 = arith.mulf %48, %48 : vector<2x32xf32>
    %cst_28 = arith.constant dense<0.000000e+00> : vector<2xf32>
    %54 = vector.multi_reduction <add>, %53, %cst_28 [1] : vector<2x32xf32> to vector<2xf32>
    %55 = vector.shape_cast %54 : vector<2xf32> to vector<2x1xf32>
    %cst_29 = arith.constant 3.125000e-02 : f32
    %56 = vector.broadcast %cst_29 : f32 to vector<2x1xf32>
    %57 = arith.mulf %55, %56 : vector<2x1xf32>
    %58 = arith.mulf %52, %52 : vector<2x1xf32>
    %59 = arith.subf %57, %58 : vector<2x1xf32>
    %60 = vector.broadcast %52 : vector<2x1xf32> to vector<2x32xf32>
    %61 = arith.subf %48, %60 : vector<2x32xf32>
    %cst_30 = arith.constant 9.99999974E-6 : f32
    %62 = vector.broadcast %cst_30 : f32 to vector<2x1xf32>
    %63 = arith.addf %59, %62 : vector<2x1xf32>
    %64 = math.rsqrt %63 : vector<2x1xf32>
    %65 = vector.broadcast %64 : vector<2x1xf32> to vector<2x32xf32>
    %66 = arith.mulf %61, %65 : vector<2x32xf32>
    %67 = vector.broadcast %17 : vector<1x32xf32> to vector<2x32xf32>
    %68 = arith.mulf %66, %67 : vector<2x32xf32>
    %69 = vector.broadcast %18 : vector<1x32xf32> to vector<2x32xf32>
    %70 = arith.addf %68, %69 : vector<2x32xf32>
    %c0_31 = arith.constant 0 : index
    %c0_32 = arith.constant 0 : index
    %71 = vector.load %arg14[%c0_31, %c0_32] : memref<8x32xf32, #tpu.memory_space<vmem>>, vector<2x32xf32>
    tpu.vector_store %arg14[%c0_31, %c0_32], %70 {strides = array<i32>} : memref<8x32xf32, #tpu.memory_space<vmem>>, vector<2x32xf32>,
    %72 = vector.extract_strided_slice %15 {offsets = [2, 0], sizes = [2, 128], strides = [1, 1]} : vector<8x128xf32> to vector<2x128xf32>
    %cst_33 = arith.constant dense<0.000000e+00> : vector<2x128xf32>
    %73 = tpu.matmul %48, %16, %cst_33 {dimension_numbers = #tpu.dot_dimension_numbers<[1], [0], [0], [1], [0, 0, 1, 1], [], []>} : vector<2x32xf32>, vector<32x128xf32>, vector<2x128xf32> -> vector<2x128xf32>
    %74 = arith.addf %72, %73 : vector<2x128xf32>
    %75 = vector.extract_strided_slice %74 {offsets = [0, 0], sizes = [2, 32], strides = [1, 1]} : vector<2x128xf32> to vector<2x32xf32>
    %76 = arith.negf %75 : vector<2x32xf32>
    %77 = math.exp %76 : vector<2x32xf32>
    %cst_34 = arith.constant 1.000000e+00 : f32
    %78 = vector.broadcast %cst_34 : f32 to vector<2x32xf32>
    %79 = arith.addf %78, %77 : vector<2x32xf32>
    %80 = arith.divf %78, %79 : vector<2x32xf32>
    %81 = vector.extract_strided_slice %74 {offsets = [0, 32], sizes = [2, 32], strides = [1, 1]} : vector<2x128xf32> to vector<2x32xf32>
    %82 = arith.negf %81 : vector<2x32xf32>
    %83 = math.exp %82 : vector<2x32xf32>
    %cst_35 = arith.constant 1.000000e+00 : f32
    %84 = vector.broadcast %cst_35 : f32 to vector<2x32xf32>
    %85 = arith.addf %84, %83 : vector<2x32xf32>
    %86 = arith.divf %84, %85 : vector<2x32xf32>
    %87 = vector.extract_strided_slice %74 {offsets = [0, 64], sizes = [2, 32], strides = [1, 1]} : vector<2x128xf32> to vector<2x32xf32>
    %88 = math.tanh %87 : vector<2x32xf32>
    %89 = vector.extract_strided_slice %74 {offsets = [0, 96], sizes = [2, 32], strides = [1, 1]} : vector<2x128xf32> to vector<2x32xf32>
    %90 = arith.negf %89 : vector<2x32xf32>
    %91 = math.exp %90 : vector<2x32xf32>
    %cst_36 = arith.constant 1.000000e+00 : f32
    %92 = vector.broadcast %cst_36 : f32 to vector<2x32xf32>
    %93 = arith.addf %92, %91 : vector<2x32xf32>
    %94 = arith.divf %92, %93 : vector<2x32xf32>
    %95 = arith.mulf %86, %46 : vector<2x32xf32>
    %96 = arith.mulf %80, %88 : vector<2x32xf32>
    %97 = arith.addf %95, %96 : vector<2x32xf32>
    %98 = math.tanh %97 : vector<2x32xf32>
    %99 = arith.mulf %94, %98 : vector<2x32xf32>
    %cst_37 = arith.constant dense<0.000000e+00> : vector<2xf32>
    %100 = vector.multi_reduction <add>, %99, %cst_37 [1] : vector<2x32xf32> to vector<2xf32>
    %101 = vector.shape_cast %100 : vector<2xf32> to vector<2x1xf32>
    %cst_38 = arith.constant 3.125000e-02 : f32
    %102 = vector.broadcast %cst_38 : f32 to vector<2x1xf32>
    %103 = arith.mulf %101, %102 : vector<2x1xf32>
    %104 = arith.mulf %99, %99 : vector<2x32xf32>
    %cst_39 = arith.constant dense<0.000000e+00> : vector<2xf32>
    %105 = vector.multi_reduction <add>, %104, %cst_39 [1] : vector<2x32xf32> to vector<2xf32>
    %106 = vector.shape_cast %105 : vector<2xf32> to vector<2x1xf32>
    %cst_40 = arith.constant 3.125000e-02 : f32
    %107 = vector.broadcast %cst_40 : f32 to vector<2x1xf32>
    %108 = arith.mulf %106, %107 : vector<2x1xf32>
    %109 = arith.mulf %103, %103 : vector<2x1xf32>
    %110 = arith.subf %108, %109 : vector<2x1xf32>
    %111 = vector.broadcast %103 : vector<2x1xf32> to vector<2x32xf32>
    %112 = arith.subf %99, %111 : vector<2x32xf32>
    %cst_41 = arith.constant 9.99999974E-6 : f32
    %113 = vector.broadcast %cst_41 : f32 to vector<2x1xf32>
    %114 = arith.addf %110, %113 : vector<2x1xf32>
    %115 = math.rsqrt %114 : vector<2x1xf32>
    %116 = vector.broadcast %115 : vector<2x1xf32> to vector<2x32xf32>
    %117 = arith.mulf %112, %116 : vector<2x32xf32>
    %118 = vector.broadcast %17 : vector<1x32xf32> to vector<2x32xf32>
    %119 = arith.mulf %117, %118 : vector<2x32xf32>
    %120 = vector.broadcast %18 : vector<1x32xf32> to vector<2x32xf32>
    %121 = arith.addf %119, %120 : vector<2x32xf32>
    %c2 = arith.constant 2 : index
    %c0_42 = arith.constant 0 : index
    %122 = vector.load %arg14[%c2, %c0_42] : memref<8x32xf32, #tpu.memory_space<vmem>>, vector<2x32xf32>
    tpu.vector_store %arg14[%c2, %c0_42], %121 {strides = array<i32>} : memref<8x32xf32, #tpu.memory_space<vmem>>, vector<2x32xf32>,
    %123 = vector.extract_strided_slice %15 {offsets = [4, 0], sizes = [2, 128], strides = [1, 1]} : vector<8x128xf32> to vector<2x128xf32>
    %cst_43 = arith.constant dense<0.000000e+00> : vector<2x128xf32>
    %124 = tpu.matmul %99, %16, %cst_43 {dimension_numbers = #tpu.dot_dimension_numbers<[1], [0], [0], [1], [0, 0, 1, 1], [], []>} : vector<2x32xf32>, vector<32x128xf32>, vector<2x128xf32> -> vector<2x128xf32>
    %125 = arith.addf %123, %124 : vector<2x128xf32>
    %126 = vector.extract_strided_slice %125 {offsets = [0, 0], sizes = [2, 32], strides = [1, 1]} : vector<2x128xf32> to vector<2x32xf32>
    %127 = arith.negf %126 : vector<2x32xf32>
    %128 = math.exp %127 : vector<2x32xf32>
    %cst_44 = arith.constant 1.000000e+00 : f32
    %129 = vector.broadcast %cst_44 : f32 to vector<2x32xf32>
    %130 = arith.addf %129, %128 : vector<2x32xf32>
    %131 = arith.divf %129, %130 : vector<2x32xf32>
    %132 = vector.extract_strided_slice %125 {offsets = [0, 32], sizes = [2, 32], strides = [1, 1]} : vector<2x128xf32> to vector<2x32xf32>
    %133 = arith.negf %132 : vector<2x32xf32>
    %134 = math.exp %133 : vector<2x32xf32>
    %cst_45 = arith.constant 1.000000e+00 : f32
    %135 = vector.broadcast %cst_45 : f32 to vector<2x32xf32>
    %136 = arith.addf %135, %134 : vector<2x32xf32>
    %137 = arith.divf %135, %136 : vector<2x32xf32>
    %138 = vector.extract_strided_slice %125 {offsets = [0, 64], sizes = [2, 32], strides = [1, 1]} : vector<2x128xf32> to vector<2x32xf32>
    %139 = math.tanh %138 : vector<2x32xf32>
    %140 = vector.extract_strided_slice %125 {offsets = [0, 96], sizes = [2, 32], strides = [1, 1]} : vector<2x128xf32> to vector<2x32xf32>
    %141 = arith.negf %140 : vector<2x32xf32>
    %142 = math.exp %141 : vector<2x32xf32>
    %cst_46 = arith.constant 1.000000e+00 : f32
    %143 = vector.broadcast %cst_46 : f32 to vector<2x32xf32>
    %144 = arith.addf %143, %142 : vector<2x32xf32>
    %145 = arith.divf %143, %144 : vector<2x32xf32>
    %146 = arith.mulf %137, %97 : vector<2x32xf32>
    %147 = arith.mulf %131, %139 : vector<2x32xf32>
    %148 = arith.addf %146, %147 : vector<2x32xf32>
    %149 = math.tanh %148 : vector<2x32xf32>
    %150 = arith.mulf %145, %149 : vector<2x32xf32>
    %cst_47 = arith.constant dense<0.000000e+00> : vector<2xf32>
    %151 = vector.multi_reduction <add>, %150, %cst_47 [1] : vector<2x32xf32> to vector<2xf32>
    %152 = vector.shape_cast %151 : vector<2xf32> to vector<2x1xf32>
    %cst_48 = arith.constant 3.125000e-02 : f32
    %153 = vector.broadcast %cst_48 : f32 to vector<2x1xf32>
    %154 = arith.mulf %152, %153 : vector<2x1xf32>
    %155 = arith.mulf %150, %150 : vector<2x32xf32>
    %cst_49 = arith.constant dense<0.000000e+00> : vector<2xf32>
    %156 = vector.multi_reduction <add>, %155, %cst_49 [1] : vector<2x32xf32> to vector<2xf32>
    %157 = vector.shape_cast %156 : vector<2xf32> to vector<2x1xf32>
    %cst_50 = arith.constant 3.125000e-02 : f32
    %158 = vector.broadcast %cst_50 : f32 to vector<2x1xf32>
    %159 = arith.mulf %157, %158 : vector<2x1xf32>
    %160 = arith.mulf %154, %154 : vector<2x1xf32>
    %161 = arith.subf %159, %160 : vector<2x1xf32>
    %162 = vector.broadcast %154 : vector<2x1xf32> to vector<2x32xf32>
    %163 = arith.subf %150, %162 : vector<2x32xf32>
    %cst_51 = arith.constant 9.99999974E-6 : f32
    %164 = vector.broadcast %cst_51 : f32 to vector<2x1xf32>
    %165 = arith.addf %161, %164 : vector<2x1xf32>
    %166 = math.rsqrt %165 : vector<2x1xf32>
    %167 = vector.broadcast %166 : vector<2x1xf32> to vector<2x32xf32>
    %168 = arith.mulf %163, %167 : vector<2x32xf32>
    %169 = vector.broadcast %17 : vector<1x32xf32> to vector<2x32xf32>
    %170 = arith.mulf %168, %169 : vector<2x32xf32>
    %171 = vector.broadcast %18 : vector<1x32xf32> to vector<2x32xf32>
    %172 = arith.addf %170, %171 : vector<2x32xf32>
    %c4 = arith.constant 4 : index
    %c0_52 = arith.constant 0 : index
    %173 = vector.load %arg14[%c4, %c0_52] : memref<8x32xf32, #tpu.memory_space<vmem>>, vector<2x32xf32>
    tpu.vector_store %arg14[%c4, %c0_52], %172 {strides = array<i32>} : memref<8x32xf32, #tpu.memory_space<vmem>>, vector<2x32xf32>,
    %174 = vector.extract_strided_slice %15 {offsets = [6, 0], sizes = [2, 128], strides = [1, 1]} : vector<8x128xf32> to vector<2x128xf32>
    %cst_53 = arith.constant dense<0.000000e+00> : vector<2x128xf32>
    %175 = tpu.matmul %150, %16, %cst_53 {dimension_numbers = #tpu.dot_dimension_numbers<[1], [0], [0], [1], [0, 0, 1, 1], [], []>} : vector<2x32xf32>, vector<32x128xf32>, vector<2x128xf32> -> vector<2x128xf32>
    %176 = arith.addf %174, %175 : vector<2x128xf32>
    %177 = vector.extract_strided_slice %176 {offsets = [0, 0], sizes = [2, 32], strides = [1, 1]} : vector<2x128xf32> to vector<2x32xf32>
    %178 = arith.negf %177 : vector<2x32xf32>
    %179 = math.exp %178 : vector<2x32xf32>
    %cst_54 = arith.constant 1.000000e+00 : f32
    %180 = vector.broadcast %cst_54 : f32 to vector<2x32xf32>
    %181 = arith.addf %180, %179 : vector<2x32xf32>
    %182 = arith.divf %180, %181 : vector<2x32xf32>
    %183 = vector.extract_strided_slice %176 {offsets = [0, 32], sizes = [2, 32], strides = [1, 1]} : vector<2x128xf32> to vector<2x32xf32>
    %184 = arith.negf %183 : vector<2x32xf32>
    %185 = math.exp %184 : vector<2x32xf32>
    %cst_55 = arith.constant 1.000000e+00 : f32
    %186 = vector.broadcast %cst_55 : f32 to vector<2x32xf32>
    %187 = arith.addf %186, %185 : vector<2x32xf32>
    %188 = arith.divf %186, %187 : vector<2x32xf32>
    %189 = vector.extract_strided_slice %176 {offsets = [0, 64], sizes = [2, 32], strides = [1, 1]} : vector<2x128xf32> to vector<2x32xf32>
    %190 = math.tanh %189 : vector<2x32xf32>
    %191 = vector.extract_strided_slice %176 {offsets = [0, 96], sizes = [2, 32], strides = [1, 1]} : vector<2x128xf32> to vector<2x32xf32>
    %192 = arith.negf %191 : vector<2x32xf32>
    %193 = math.exp %192 : vector<2x32xf32>
    %cst_56 = arith.constant 1.000000e+00 : f32
    %194 = vector.broadcast %cst_56 : f32 to vector<2x32xf32>
    %195 = arith.addf %194, %193 : vector<2x32xf32>
    %196 = arith.divf %194, %195 : vector<2x32xf32>
    %197 = arith.mulf %188, %148 : vector<2x32xf32>
    %198 = arith.mulf %182, %190 : vector<2x32xf32>
    %199 = arith.addf %197, %198 : vector<2x32xf32>
    %200 = math.tanh %199 : vector<2x32xf32>
    %201 = arith.mulf %196, %200 : vector<2x32xf32>
    %cst_57 = arith.constant dense<0.000000e+00> : vector<2xf32>
    %202 = vector.multi_reduction <add>, %201, %cst_57 [1] : vector<2x32xf32> to vector<2xf32>
    %203 = vector.shape_cast %202 : vector<2xf32> to vector<2x1xf32>
    %cst_58 = arith.constant 3.125000e-02 : f32
    %204 = vector.broadcast %cst_58 : f32 to vector<2x1xf32>
    %205 = arith.mulf %203, %204 : vector<2x1xf32>
    %206 = arith.mulf %201, %201 : vector<2x32xf32>
    %cst_59 = arith.constant dense<0.000000e+00> : vector<2xf32>
    %207 = vector.multi_reduction <add>, %206, %cst_59 [1] : vector<2x32xf32> to vector<2xf32>
    %208 = vector.shape_cast %207 : vector<2xf32> to vector<2x1xf32>
    %cst_60 = arith.constant 3.125000e-02 : f32
    %209 = vector.broadcast %cst_60 : f32 to vector<2x1xf32>
    %210 = arith.mulf %208, %209 : vector<2x1xf32>
    %211 = arith.mulf %205, %205 : vector<2x1xf32>
    %212 = arith.subf %210, %211 : vector<2x1xf32>
    %213 = vector.broadcast %205 : vector<2x1xf32> to vector<2x32xf32>
    %214 = arith.subf %201, %213 : vector<2x32xf32>
    %cst_61 = arith.constant 9.99999974E-6 : f32
    %215 = vector.broadcast %cst_61 : f32 to vector<2x1xf32>
    %216 = arith.addf %212, %215 : vector<2x1xf32>
    %217 = math.rsqrt %216 : vector<2x1xf32>
    %218 = vector.broadcast %217 : vector<2x1xf32> to vector<2x32xf32>
    %219 = arith.mulf %214, %218 : vector<2x32xf32>
    %220 = vector.broadcast %17 : vector<1x32xf32> to vector<2x32xf32>
    %221 = arith.mulf %219, %220 : vector<2x32xf32>
    %222 = vector.broadcast %18 : vector<1x32xf32> to vector<2x32xf32>
    %223 = arith.addf %221, %222 : vector<2x32xf32>
    %c6 = arith.constant 6 : index
    %c0_62 = arith.constant 0 : index
    %224 = vector.load %arg14[%c6, %c0_62] : memref<8x32xf32, #tpu.memory_space<vmem>>, vector<2x32xf32>
    tpu.vector_store %arg14[%c6, %c0_62], %223 {strides = array<i32>} : memref<8x32xf32, #tpu.memory_space<vmem>>, vector<2x32xf32>,
    %c0_63 = arith.constant 0 : index
    %c0_64 = arith.constant 0 : index
    %225 = vector.load %arg12[%c0_63, %c0_64] : memref<2x32xf32, #tpu.memory_space<vmem>>, vector<2x32xf32>
    tpu.vector_store %arg12[%c0_63, %c0_64], %201 {strides = array<i32>} : memref<2x32xf32, #tpu.memory_space<vmem>>, vector<2x32xf32>,
    %c0_65 = arith.constant 0 : index
    %c0_66 = arith.constant 0 : index
    %226 = vector.load %arg13[%c0_65, %c0_66] : memref<2x32xf32, #tpu.memory_space<vmem>>, vector<2x32xf32>
    tpu.vector_store %arg13[%c0_65, %c0_66], %199 {strides = array<i32>} : memref<2x32xf32, #tpu.memory_space<vmem>>, vector<2x32xf32>,
    %c0_67 = arith.constant 0 : index
    %c0_68 = arith.constant 0 : index
    %227 = vector.load %arg14[%c0_67, %c0_68] : memref<8x32xf32, #tpu.memory_space<vmem>>, vector<8x32xf32>
    %c0_69 = arith.constant 0 : index
    %c0_70 = arith.constant 0 : index
    %228 = vector.load %arg9[%c0_69, %c0_70] : memref<32x16xf32, #tpu.memory_space<vmem>>, vector<32x16xf32>
    %cst_71 = arith.constant dense<0.000000e+00> : vector<8x16xf32>
    %229 = tpu.matmul %227, %228, %cst_71 {dimension_numbers = #tpu.dot_dimension_numbers<[1], [0], [0], [1], [0, 0, 1, 1], [], []>} : vector<8x32xf32>, vector<32x16xf32>, vector<8x16xf32> -> vector<8x16xf32>
    %c0_72 = arith.constant 0 : index
    %c0_73 = arith.constant 0 : index
    %230 = vector.load %arg10[%c0_72, %c0_73] : memref<1x16xf32, #tpu.memory_space<vmem>>, vector<1x16xf32>
    %231 = vector.broadcast %230 : vector<1x16xf32> to vector<8x16xf32>
    %232 = arith.addf %229, %231 : vector<8x16xf32>
    %c0_74 = arith.constant 0 : index
    %c0_75 = arith.constant 0 : index
    %233 = vector.load %arg11[%c0_74, %c0_75] : memref<8x16xf32, #tpu.memory_space<vmem>>, vector<8x16xf32>
    tpu.vector_store %arg11[%c0_74, %c0_75], %232 {strides = array<i32>} : memref<8x16xf32, #tpu.memory_space<vmem>>, vector<8x16xf32>,
    return
  }
  func.func @transform_0(%arg0: i32) -> (i32, i32) {
    %c0_i32 = arith.constant 0 : i32
    %c0_i32_0 = arith.constant 0 : i32
    return %arg0, %c0_i32 : i32, i32
  }
  func.func @transform_1(%arg0: i32) -> (i32, i32) {
    %c0_i32 = arith.constant 0 : i32
    %c0_i32_0 = arith.constant 0 : i32
    %c0_i32_1 = arith.constant 0 : i32
    return %c0_i32, %c0_i32_0 : i32, i32
  }
  func.func @transform_2(%arg0: i32) -> (i32, i32) {
    %c0_i32 = arith.constant 0 : i32
    %c0_i32_0 = arith.constant 0 : i32
    %c0_i32_1 = arith.constant 0 : i32
    return %c0_i32, %c0_i32_0 : i32, i32
  }
  func.func @transform_3(%arg0: i32) -> (i32, i32) {
    %c0_i32 = arith.constant 0 : i32
    %c0_i32_0 = arith.constant 0 : i32
    %c0_i32_1 = arith.constant 0 : i32
    return %c0_i32, %c0_i32_0 : i32, i32
  }
  func.func @transform_4(%arg0: i32) -> (i32, i32) {
    %c0_i32 = arith.constant 0 : i32
    %c0_i32_0 = arith.constant 0 : i32
    %c0_i32_1 = arith.constant 0 : i32
    return %c0_i32, %c0_i32_0 : i32, i32
  }
  func.func @transform_5(%arg0: i32) -> (i32, i32) {
    %c0_i32 = arith.constant 0 : i32
    %c0_i32_0 = arith.constant 0 : i32
    %c0_i32_1 = arith.constant 0 : i32
    return %c0_i32, %c0_i32_0 : i32, i32
  }
  func.func @transform_6(%arg0: i32) -> (i32, i32) {
    %c0_i32 = arith.constant 0 : i32
    %c0_i32_0 = arith.constant 0 : i32
    %c0_i32_1 = arith.constant 0 : i32
    return %c0_i32, %c0_i32_0 : i32, i32
  }
  func.func @transform_7(%arg0: i32) -> (i32, i32) {
    %c0_i32 = arith.constant 0 : i32
    %c0_i32_0 = arith.constant 0 : i32
    %c0_i32_1 = arith.constant 0 : i32
    return %c0_i32, %c0_i32_0 : i32, i32
  }
  func.func @transform_8(%arg0: i32) -> (i32, i32) {
    %c0_i32 = arith.constant 0 : i32
    %c0_i32_0 = arith.constant 0 : i32
    %c0_i32_1 = arith.constant 0 : i32
    return %c0_i32, %c0_i32_0 : i32, i32
  }
  func.func @transform_9(%arg0: i32) -> (i32, i32) {
    %c0_i32 = arith.constant 0 : i32
    %c0_i32_0 = arith.constant 0 : i32
    %c0_i32_1 = arith.constant 0 : i32
    return %c0_i32, %c0_i32_0 : i32, i32
  }
  func.func @transform_10(%arg0: i32) -> (i32, i32) {
    %c0_i32 = arith.constant 0 : i32
    %c0_i32_0 = arith.constant 0 : i32
    return %arg0, %c0_i32 : i32, i32
  }
}

</mosaic_0001>

<llo_original>
// kernel: tpu_custom_call.1
$region0: #{tpu_custom_call.1}
  #allocation0 [shape = 'u32[]', space=smem, size = 0x4, offset = 0x4, fixed_abs, tag = 'smem constant byte address 0x4 - core index']
  #allocation1 [shape = 'u32[144,128]{1,0:T(1,128)}', space=vmem, size = 0x12000, scoped, tag = 'internal scratch']
  #allocation2 [shape = 'f32[2,32]{1,0:T(2,128)}', space=vmem, size = 0x400, scoped, tag = 'scratch operand']
  #allocation3 [shape = 'f32[2,32]{1,0:T(2,128)}', space=vmem, size = 0x400, scoped, tag = 'scratch operand']
  #allocation4 [shape = 'f32[8,32]{1,0:T(8,128)}', space=vmem, size = 0x1000, scoped, tag = 'scratch operand']
  %s0 = inlined_call_operand.vmem [shape: f32[16,16], index: 0, kind: input, shape index: {}]
  %s1 = inlined_call_operand.hbm [shape: f32[16,32], index: 1, kind: input, shape index: {}]
  %s2 = inlined_call_operand.vmem [shape: f32[1,32], index: 2, kind: input, shape index: {}]
  %s3 = inlined_call_operand.vmem [shape: f32[32,128], index: 3, kind: input, shape index: {}]
  %s4 = inlined_call_operand.vmem [shape: f32[1,128], index: 4, kind: input, shape index: {}]
  %s5 = inlined_call_operand.hbm [shape: f32[32,128], index: 5, kind: input, shape index: {}]
  %s6 = inlined_call_operand.vmem [shape: f32[1,32], index: 6, kind: input, shape index: {}]
  %s7 = inlined_call_operand.vmem [shape: f32[1,32], index: 7, kind: input, shape index: {}]
  %s8 = inlined_call_operand.vmem [shape: f32[32,16], index: 8, kind: input, shape index: {}]
  %s9 = inlined_call_operand.vmem [shape: f32[1,16], index: 9, kind: input, shape index: {}]
  %s10 = inlined_call_operand.hbm [shape: f32[16,16], index: 10, kind: output, shape index: {}]
  %s11 = sld [smem:[#allocation0]]
  $region85: #{tpu_custom_call.1} parent=0
    _
  %s13 = ssub.s32 1, %s11
  %s14 = scalar_select 0, %s13, %s11
  $region1: #{tpu_custom_call.1} parent=0
    #allocation5 [shape = 'u8[8192]{0}', space=vmem, size = 0x2000, scoped, tag = 'input window, operand 1, single buffered']
    #allocation6 [shape = 's32[2]{0}', space=sflag, size = 0x8, scoped, tag = 'scoped memory for tpu_custom_call.1']
    #allocation7 [shape = 's32[2]{0}', space=sflag, size = 0x8, scoped, tag = 'scoped memory for tpu_custom_call.1']
    #allocation8 [shape = 'u8[16384]{0}', space=vmem, size = 0x4000, scoped, tag = 'input window, operand 5, single buffered']
    #allocation9 [shape = 's32[1]{0}', space=sflag, size = 0x4, scoped, tag = 'scoped memory for tpu_custom_call.1']
    #allocation10 [shape = 'u8[8192]{0}', space=vmem, size = 0x2000, scoped, tag = 'output window, operand 0']
    %15 = vsyncpa [#allocation6], 0
    %16 = vsyncpa [#allocation9], 0
    %17 = vsyncpa [#allocation7], 0
    %s18 = scalar_lea.sflag [#allocation7], 1
    %19 = vsyncpa %s18, 0
    loop: start=0, step=1, limit=4
    $region2: #{tpu_custom_call.1} parent=1 // loop_pre_header
      _
    $region3: #{tpu_custom_call.1} parent=1 // loop_header
      %s21 = sphi 0, %s25
      %p22 = scmp.ge.s32.totalorder %s21, 4
      %s31 = sphi 0, %s33
      %s34 = sphi 0, %s31
      %s35 = sphi 0, %s34
      %s51 = sphi 0, %s35
      %s55 = sphi 0, %s55
      %s57 = sphi 0, %s55
      %s58 = sphi 0, %s57
      %s72 = sphi 0, %s58
      %s76 = sphi 0, %s76
      %s78 = sphi 0, %s76
      %s79 = sphi 0, %s78
      %s93 = sphi 0, %s79
      %s97 = sphi 0, %s97
      %s99 = sphi 0, %s97
      %s100 = sphi 0, %s99
      %s114 = sphi 0, %s100
      %s118 = sphi 0, %s118
      %s120 = sphi 0, %s118
      %s121 = sphi 0, %s120
      %s135 = sphi 0, %s121
      %s139 = sphi 0, %s139
      %s141 = sphi 0, %s139
      %s142 = sphi 0, %s141
      %s156 = sphi 0, %s142
      %s160 = sphi 0, %s160
      %s162 = sphi 0, %s160
      %s163 = sphi 0, %s162
      %s177 = sphi 0, %s163
      %s181 = sphi 0, %s181
      %s183 = sphi 0, %s181
      %s184 = sphi 0, %s183
      %s198 = sphi 0, %s184
      %s202 = sphi 0, %s202
      %s204 = sphi 0, %s202
      %s205 = sphi 0, %s204
      %s219 = sphi 0, %s205
      %s223 = sphi 0, %s223
      %s225 = sphi 0, %s223
      %s226 = sphi 0, %s225
      %s240 = sphi 0, %s226
      %s246 = sphi 0, %s248
      %s249 = sphi 0, %s246
      %s250 = sphi 0, %s249
      %s266 = sphi 0, %s250
    $region4: #{tpu_custom_call.1} parent=1 // loop_header_branch
      %24 = sbr.rel (%p22) target = $region8
    $region5: #{tpu_custom_call.1} parent=1 // loop_body
      %s26 = ssub.s32 %s21, 1
      %s27 = ssub.s32 %s21, 2
      %s28 = sadd.s32 %s21, 1
      %s29 = ssub.s32 %s21, %s28
      %p30 = scmp.eq.s32.totalorder %s29, 0
      %s32 = sadd.s32 %s31, 1
      %s33 = scalar_select %p30, %s31, %s32
      %p36 = pneg %p30
      %p37 = scmp.eq.s32.totalorder %s21, 1
      %p38 = por %p36, %p37
      %p39 = scmp.ne.s32.totalorder %s31, %s34
      %p40 = scmp.eq.s32.totalorder %s21, 0
      %p41 = por %p39, %p40
      %p42 = scmp.ne.s32.totalorder %s31, %s34
      %p43 = scmp.eq.s32.totalorder %s26, 1
      %p44 = por %p42, %p43
      %p45 = scmp.ne.s32.totalorder %s34, %s35
      %p46 = scmp.eq.s32.totalorder %s26, 0
      %p47 = por %p45, %p46
      %p48 = scmp.ne.s32.totalorder %s34, %s35
      %p49 = scmp.eq.s32.totalorder %s27, 1
      %p50 = por %p48, %p49
      %p52 = scmp.ne.s32.totalorder %s35, %s51
      %p53 = scmp.eq.s32.totalorder %s27, 0
      %p54 = por %p52, %p53
      %s56 = sadd.s32 %s55, 1
      %p59 = scmp.eq.s32.totalorder %s21, 1
      %p60 = scmp.ne.s32.totalorder %s55, %s57
      %p61 = scmp.eq.s32.totalorder %s21, 0
      %p62 = por %p60, %p61
      %p63 = scmp.ne.s32.totalorder %s55, %s57
      %p64 = scmp.eq.s32.totalorder %s26, 1
      %p65 = por %p63, %p64
      %p66 = scmp.ne.s32.totalorder %s57, %s58
      %p67 = scmp.eq.s32.totalorder %s26, 0
      %p68 = por %p66, %p67
      %p69 = scmp.ne.s32.totalorder %s57, %s58
      %p70 = scmp.eq.s32.totalorder %s27, 1
      %p71 = por %p69, %p70
      %p73 = scmp.ne.s32.totalorder %s58, %s72
      %p74 = scmp.eq.s32.totalorder %s27, 0
      %p75 = por %p73, %p74
      %s77 = sadd.s32 %s76, 1
      %p80 = scmp.eq.s32.totalorder %s21, 1
      %p81 = scmp.ne.s32.totalorder %s76, %s78
      %p82 = scmp.eq.s32.totalorder %s21, 0
      %p83 = por %p81, %p82
      %p84 = scmp.ne.s32.totalorder %s76, %s78
      %p85 = scmp.eq.s32.totalorder %s26, 1
      %p86 = por %p84, %p85
      %p87 = scmp.ne.s32.totalorder %s78, %s79
      %p88 = scmp.eq.s32.totalorder %s26, 0
      %p89 = por %p87, %p88
      %p90 = scmp.ne.s32.totalorder %s78, %s79
      %p91 = scmp.eq.s32.totalorder %s27, 1
      %p92 = por %p90, %p91
      %p94 = scmp.ne.s32.totalorder %s79, %s93
      %p95 = scmp.eq.s32.totalorder %s27, 0
      %p96 = por %p94, %p95
      %s98 = sadd.s32 %s97, 1
      %p101 = scmp.eq.s32.totalorder %s21, 1
      %p102 = scmp.ne.s32.totalorder %s97, %s99
      %p103 = scmp.eq.s32.totalorder %s21, 0
      %p104 = por %p102, %p103
      %p105 = scmp.ne.s32.totalorder %s97, %s99
      %p106 = scmp.eq.s32.totalorder %s26, 1
      %p107 = por %p105, %p106
      %p108 = scmp.ne.s32.totalorder %s99, %s100
      %p109 = scmp.eq.s32.totalorder %s26, 0
      %p110 = por %p108, %p109
      %p111 = scmp.ne.s32.totalorder %s99, %s100
      %p112 = scmp.eq.s32.totalorder %s27, 1
      %p113 = por %p111, %p112
      %p115 = scmp.ne.s32.totalorder %s100, %s114
      %p116 = scmp.eq.s32.totalorder %s27, 0
      %p117 = por %p115, %p116
      %s119 = sadd.s32 %s118, 1
      %p122 = scmp.eq.s32.totalorder %s21, 1
      %p123 = scmp.ne.s32.totalorder %s118, %s120
      %p124 = scmp.eq.s32.totalorder %s21, 0
      %p125 = por %p123, %p124
      %p126 = scmp.ne.s32.totalorder %s118, %s120
      %p127 = scmp.eq.s32.totalorder %s26, 1
      %p128 = por %p126, %p127
      %p129 = scmp.ne.s32.totalorder %s120, %s121
      %p130 = scmp.eq.s32.totalorder %s26, 0
      %p131 = por %p129, %p130
      %p132 = scmp.ne.s32.totalorder %s120, %s121
      %p133 = scmp.eq.s32.totalorder %s27, 1
      %p134 = por %p132, %p133
      %p136 = scmp.ne.s32.totalorder %s121, %s135
      %p137 = scmp.eq.s32.totalorder %s27, 0
      %p138 = por %p136, %p137
      %s140 = sadd.s32 %s139, 1
      %p143 = scmp.eq.s32.totalorder %s21, 1
      %p144 = scmp.ne.s32.totalorder %s139, %s141
      %p145 = scmp.eq.s32.totalorder %s21, 0
      %p146 = por %p144, %p145
      %p147 = scmp.ne.s32.totalorder %s139, %s141
      %p148 = scmp.eq.s32.totalorder %s26, 1
      %p149 = por %p147, %p148
      %p150 = scmp.ne.s32.totalorder %s141, %s142
      %p151 = scmp.eq.s32.totalorder %s26, 0
      %p152 = por %p150, %p151
      %p153 = scmp.ne.s32.totalorder %s141, %s142
      %p154 = scmp.eq.s32.totalorder %s27, 1
      %p155 = por %p153, %p154
      %p157 = scmp.ne.s32.totalorder %s142, %s156
      %p158 = scmp.eq.s32.totalorder %s27, 0
      %p159 = por %p157, %p158
      %s161 = sadd.s32 %s160, 1
      %p164 = scmp.eq.s32.totalorder %s21, 1
      %p165 = scmp.ne.s32.totalorder %s160, %s162
      %p166 = scmp.eq.s32.totalorder %s21, 0
      %p167 = por %p165, %p166
      %p168 = scmp.ne.s32.totalorder %s160, %s162
      %p169 = scmp.eq.s32.totalorder %s26, 1
      %p170 = por %p168, %p169
      %p171 = scmp.ne.s32.totalorder %s162, %s163
      %p172 = scmp.eq.s32.totalorder %s26, 0
      %p173 = por %p171, %p172
      %p174 = scmp.ne.s32.totalorder %s162, %s163
      %p175 = scmp.eq.s32.totalorder %s27, 1
      %p176 = por %p174, %p175
      %p178 = scmp.ne.s32.totalorder %s163, %s177
      %p179 = scmp.eq.s32.totalorder %s27, 0
      %p180 = por %p178, %p179
      %s182 = sadd.s32 %s181, 1
      %p185 = scmp.eq.s32.totalorder %s21, 1
      %p186 = scmp.ne.s32.totalorder %s181, %s183
      %p187 = scmp.eq.s32.totalorder %s21, 0
      %p188 = por %p186, %p187
      %p189 = scmp.ne.s32.totalorder %s181, %s183
      %p190 = scmp.eq.s32.totalorder %s26, 1
      %p191 = por %p189, %p190
      %p192 = scmp.ne.s32.totalorder %s183, %s184
      %p193 = scmp.eq.s32.totalorder %s26, 0
      %p194 = por %p192, %p193
      %p195 = scmp.ne.s32.totalorder %s183, %s184
      %p196 = scmp.eq.s32.totalorder %s27, 1
      %p197 = por %p195, %p196
      %p199 = scmp.ne.s32.totalorder %s184, %s198
      %p200 = scmp.eq.s32.totalorder %s27, 0
      %p201 = por %p199, %p200
      %s203 = sadd.s32 %s202, 1
      %p206 = scmp.eq.s32.totalorder %s21, 1
      %p207 = scmp.ne.s32.totalorder %s202, %s204
      %p208 = scmp.eq.s32.totalorder %s21, 0
      %p209 = por %p207, %p208
      %p210 = scmp.ne.s32.totalorder %s202, %s204
      %p211 = scmp.eq.s32.totalorder %s26, 1
      %p212 = por %p210, %p211
      %p213 = scmp.ne.s32.totalorder %s204, %s205
      %p214 = scmp.eq.s32.totalorder %s26, 0
      %p215 = por %p213, %p214
      %p216 = scmp.ne.s32.totalorder %s204, %s205
      %p217 = scmp.eq.s32.totalorder %s27, 1
      %p218 = por %p216, %p217
      %p220 = scmp.ne.s32.totalorder %s205, %s219
      %p221 = scmp.eq.s32.totalorder %s27, 0
      %p222 = por %p220, %p221
      %s224 = sadd.s32 %s223, 1
      %p227 = scmp.eq.s32.totalorder %s21, 1
      %p228 = scmp.ne.s32.totalorder %s223, %s225
      %p229 = scmp.eq.s32.totalorder %s21, 0
      %p230 = por %p228, %p229
      %p231 = scmp.ne.s32.totalorder %s223, %s225
      %p232 = scmp.eq.s32.totalorder %s26, 1
      %p233 = por %p231, %p232
      %p234 = scmp.ne.s32.totalorder %s225, %s226
      %p235 = scmp.eq.s32.totalorder %s26, 0
      %p236 = por %p234, %p235
      %p237 = scmp.ne.s32.totalorder %s225, %s226
      %p238 = scmp.eq.s32.totalorder %s27, 1
      %p239 = por %p237, %p238
      %p241 = scmp.ne.s32.totalorder %s226, %s240
      %p242 = scmp.eq.s32.totalorder %s27, 0
      %p243 = por %p241, %p242
      %s244 = ssub.s32 %s21, %s28
      %p245 = scmp.eq.s32.totalorder %s244, 0
      %s247 = sadd.s32 %s246, 1
      %s248 = scalar_select %p245, %s246, %s247
      %p251 = pneg %p245
      %p252 = scmp.eq.s32.totalorder %s21, 1
      %p253 = por %p251, %p252
      %p254 = scmp.ne.s32.totalorder %s246, %s249
      %p255 = scmp.eq.s32.totalorder %s21, 0
      %p256 = por %p254, %p255
      %p257 = scmp.ne.s32.totalorder %s246, %s249
      %p258 = scmp.eq.s32.totalorder %s26, 1
      %p259 = por %p257, %p258
      %p260 = scmp.ne.s32.totalorder %s249, %s250
      %p261 = scmp.eq.s32.totalorder %s26, 0
      %p262 = por %p260, %p261
      %p263 = scmp.ne.s32.totalorder %s249, %s250
      %p264 = scmp.eq.s32.totalorder %s27, 1
      %p265 = por %p263, %p264
      %p267 = scmp.ne.s32.totalorder %s250, %s266
      %p268 = scmp.eq.s32.totalorder %s27, 0
      %p269 = por %p267, %p268
      %p270 = scmp.le.s32.totalorder 1, %s21
      %p271 = scmp.lt.s32.totalorder %s21, 3
      %p272 = pnand %p270, %p271
      %p273 = pneg %p272
      // Predicated region
      $region9: #{tpu_custom_call.1} parent=5 // pred_check
        _
      $region10: #{tpu_custom_call.1} parent=5 // pred_check_branch
        %275 = sbr.rel (%p272) target = $region12
      $region11: #{tpu_custom_call.1} parent=5 // pred_region
        %s276 = ssub.s32 %s21, 1
        // Predicated region
        $region13: #{tpu_custom_call.1} parent=11 // pred_check
          %p277 = pneg %p68
        $region14: #{tpu_custom_call.1} parent=11 // pred_check_branch
          %279 = sbr.rel (%p277) target = $region16
        $region15: #{tpu_custom_call.1} parent=11 // pred_region
          %s281 = ssub.s32 256, 256
          %282 = vsyncadd [#allocation6], %s281
          %s283 = sshll.u32 [#allocation5], 4
          %s284 = int_to_ptr.vmem [resolvable:$true] %s283
          %289 = dma.hbm_to_vmem [thread:$0]  %s1, 256, %s284, [#allocation6], 128, 128, 8
        $region16: #{tpu_custom_call.1} parent=11 // pred_fallthru
          _
        // Predicated region
        $region17: #{tpu_custom_call.1} parent=11 // pred_check
          %p290 = pneg %p89
        $region18: #{tpu_custom_call.1} parent=11 // pred_check_branch
          %292 = sbr.rel (%p290) target = $region20
        $region19: #{tpu_custom_call.1} parent=11 // pred_region
          _
        $region20: #{tpu_custom_call.1} parent=11 // pred_fallthru
          _
        // Predicated region
        $region21: #{tpu_custom_call.1} parent=11 // pred_check
          %p293 = pneg %p110
        $region22: #{tpu_custom_call.1} parent=11 // pred_check_branch
          %295 = sbr.rel (%p293) target = $region24
        $region23: #{tpu_custom_call.1} parent=11 // pred_region
          _
        $region24: #{tpu_custom_call.1} parent=11 // pred_fallthru
          _
        // Predicated region
        $region25: #{tpu_custom_call.1} parent=11 // pred_check
          %p296 = pneg %p131
        $region26: #{tpu_custom_call.1} parent=11 // pred_check_branch
          %298 = sbr.rel (%p296) target = $region28
        $region27: #{tpu_custom_call.1} parent=11 // pred_region
          _
        $region28: #{tpu_custom_call.1} parent=11 // pred_fallthru
          _
        // Predicated region
        $region29: #{tpu_custom_call.1} parent=11 // pred_check
          %p299 = pneg %p152
        $region30: #{tpu_custom_call.1} parent=11 // pred_check_branch
          %301 = sbr.rel (%p299) target = $region32
        $region31: #{tpu_custom_call.1} parent=11 // pred_region
          %s303 = ssub.s32 512, 512
          %304 = vsyncadd [#allocation9], %s303
          %s305 = sshll.u32 [#allocation8], 4
          %s306 = int_to_ptr.vmem [resolvable:$true] %s305
          %311 = dma.hbm_to_vmem [thread:$0]  %s5, 512, %s306, [#allocation9], 128, 128, 8
        $region32: #{tpu_custom_call.1} parent=11 // pred_fallthru
          _
        // Predicated region
        $region33: #{tpu_custom_call.1} parent=11 // pred_check
          %p312 = pneg %p173
        $region34: #{tpu_custom_call.1} parent=11 // pred_check_branch
          %314 = sbr.rel (%p312) target = $region36
        $region35: #{tpu_custom_call.1} parent=11 // pred_region
          _
        $region36: #{tpu_custom_call.1} parent=11 // pred_fallthru
          _
        // Predicated region
        $region37: #{tpu_custom_call.1} parent=11 // pred_check
          %p315 = pneg %p194
        $region38: #{tpu_custom_call.1} parent=11 // pred_check_branch
          %317 = sbr.rel (%p315) target = $region40
        $region39: #{tpu_custom_call.1} parent=11 // pred_region
          _
        $region40: #{tpu_custom_call.1} parent=11 // pred_fallthru
          _
        // Predicated region
        $region41: #{tpu_custom_call.1} parent=11 // pred_check
          %p318 = pneg %p215
        $region42: #{tpu_custom_call.1} parent=11 // pred_check_branch
          %320 = sbr.rel (%p318) target = $region44
        $region43: #{tpu_custom_call.1} parent=11 // pred_region
          _
        $region44: #{tpu_custom_call.1} parent=11 // pred_fallthru
          _
        // Predicated region
        $region45: #{tpu_custom_call.1} parent=11 // pred_check
          %p321 = pneg %p236
        $region46: #{tpu_custom_call.1} parent=11 // pred_check_branch
          %323 = sbr.rel (%p321) target = $region48
        $region47: #{tpu_custom_call.1} parent=11 // pred_region
          _
        $region48: #{tpu_custom_call.1} parent=11 // pred_fallthru
          _
      $region12: #{tpu_custom_call.1} parent=5 // pred_fallthru
        _
      %p324 = scmp.lt.s32.totalorder %s21, 2
      // Predicated region
      $region49: #{tpu_custom_call.1} parent=5 // pred_check
        %p325 = pneg %p324
      $region50: #{tpu_custom_call.1} parent=5 // pred_check_branch
        %327 = sbr.rel (%p325) target = $region52
      $region51: #{tpu_custom_call.1} parent=5 // pred_region
        // Predicated region
        $region53: #{tpu_custom_call.1} parent=51 // pred_check
          %p328 = pneg %p41
        $region54: #{tpu_custom_call.1} parent=51 // pred_check_branch
          %330 = sbr.rel (%p328) target = $region56
        $region55: #{tpu_custom_call.1} parent=51 // pred_region
          %p331 = scmp.lt.s32.totalorder %s21, 1
          %s332 = scalar_select %p331, %s21, 1
          %s333 = smul.addr %s332, 8
          %s334 = scalar_lea.vmem %s0, %s333
        $region56: #{tpu_custom_call.1} parent=51 // pred_fallthru
          _
      $region52: #{tpu_custom_call.1} parent=5 // pred_fallthru
        _
      %p335 = scmp.le.s32.totalorder 1, %s21
      %p336 = scmp.lt.s32.totalorder %s21, 3
      %p337 = pnand %p335, %p336
      %p338 = pneg %p337
      // Predicated region
      $region57: #{tpu_custom_call.1} parent=5 // pred_check
        _
      $region58: #{tpu_custom_call.1} parent=5 // pred_check_branch
        %340 = sbr.rel (%p337) target = $region60
      $region59: #{tpu_custom_call.1} parent=5 // pred_region
        %s341 = ssub.s32 %s21, 1
        // Predicated region
        $region61: #{tpu_custom_call.1} parent=59 // pred_check
          %p342 = pneg %p68
        $region62: #{tpu_custom_call.1} parent=59 // pred_check_branch
          %344 = sbr.rel (%p342) target = $region64
        $region63: #{tpu_custom_call.1} parent=59 // pred_region
          %345 = dma.done [#allocation6], 256
        $region64: #{tpu_custom_call.1} parent=59 // pred_fallthru
          _
        // Predicated region
        $region65: #{tpu_custom_call.1} parent=59 // pred_check
          %p346 = pneg %p152
        $region66: #{tpu_custom_call.1} parent=59 // pred_check_branch
          %348 = sbr.rel (%p346) target = $region68
        $region67: #{tpu_custom_call.1} parent=59 // pred_region
          %349 = dma.done [#allocation9], 512
        $region68: #{tpu_custom_call.1} parent=59 // pred_fallthru
          _
        %p350 = scmp.lt.s32.totalorder %s26, 1
        %s351 = scalar_select %p350, %s26, 1
        %s352 = smul.addr %s351, 8
        %s353 = scalar_lea.vmem %s0, %s352
        %p354 = pneg %p47
        %p355 = pneg %p44
        %p356 = pneg %p68
        %p357 = pneg %p65
        %p358 = pneg %p89
        %p359 = pneg %p86
        %p360 = pneg %p110
        %p361 = pneg %p107
        %p362 = pneg %p131
        %p363 = pneg %p128
        %p364 = pneg %p152
        %p365 = pneg %p149
        %p366 = pneg %p173
        %p367 = pneg %p170
        %p368 = pneg %p194
        %p369 = pneg %p191
        %p370 = pneg %p215
        %p371 = pneg %p212
        %p372 = pneg %p236
        %p373 = pneg %p233
        %p374 = pneg %p262
        %p375 = pneg %p259
        %s376 = sand.u32 %s249, 1
        %s377 = scalar_lea.sflag [#allocation7], %s376
        %s378 = sand.u32 %s249, 1
        %s379 = smul.addr %s378, 8
        %s380 = scalar_lea.vmem [#allocation10], %s379
        %p381 = scmp.lt.s32.totalorder %s26, 1
        %s382 = scalar_select %p381, %s26, 1
        %s383 = smul.addr %s382, 8
        %s384 = scalar_lea.vmem %s0, %s383
        %p385 = scmp.eq.s32.totalorder %s26, 0
        // Predicated region
        $region69: #{tpu_custom_call.1} parent=59 // pred_check
          %p386 = pneg %p385
        $region70: #{tpu_custom_call.1} parent=59 // pred_check_branch
          %388 = sbr.rel (%p386) target = $region72
        $region71: #{tpu_custom_call.1} parent=59 // pred_region
          %vm389 = vcmask 254976
          %390 = vst.msk [vmem:[#allocation2] sm:$0x3] %vm389, 0.0
          %391 = vst.msk [vmem:[#allocation3] sm:$0x3] %vm389, 0.0
        $region72: #{tpu_custom_call.1} parent=59 // pred_fallthru
          _
        %v392 = vld [vmem:[%s384] sm:$0xff]
        %v393 = vld [vmem:[#allocation5] sm:$0xff]
        %v394 = vld [vmem:[#allocation5 + $0x8] sm:$0xff]
        %v395 = vld [vmem:[%s2] sm:$0x1]
        %v397 = vlaneseq
        %v398 = vshrl.u32 %v397, 7
        %v399 = vsub.s32 0, %v398
        %v400 = vrot.slane %v395, %v399
        %vm402 = vcmask 130048
        %v404 = vsel %vm402, %v392, 0
        %406 = vmatprep.subr.mxu0 0.0
        %407 = vmatpush1.msra.mxu0 0.0
        %408 = vmatprep.subr.mxu0 0.0
        %409 = vmatpush1.msra.mxu0 0.0
        %410 = vmatprep.subr.mxu0 0.0
        %411 = vmatpush1.msra.mxu0 0.0
        %412 = vmatprep.subr.mxu0 0.0
        %413 = vmatpush1.msra.mxu0 0.0
        %414 = vmatprep.subr.mxu0 0.0
        %415 = vmatpush1.msra.mxu0 0.0
        %416 = vmatprep.subr.mxu0 0.0
        %417 = vmatpush1.msra.mxu0 0.0
        %418 = vmatprep.subr.mxu0 0.0
        %419 = vmatpush1.msra.mxu0 0.0
        %420 = vmatprep.subr.mxu0 0.0
        %421 = vmatpush1.msra.mxu0 0.0
        %422 = vmatprep.subr.mxu0 0.0
        %423 = vmatpush1.msra.mxu0 0.0
        %424 = vmatprep.subr.mxu0 0.0
        %425 = vmatpush1.msra.mxu0 0.0
        %426 = vmatprep.subr.mxu0 0.0
        %427 = vmatpush1.msra.mxu0 0.0
        %428 = vmatprep.subr.mxu0 0.0
        %429 = vmatpush1.msra.mxu0 0.0
        %430 = vmatprep.subr.mxu0 0.0
        %431 = vmatpush1.msra.mxu0 0.0
        %432 = vmatprep.subr.mxu0 0.0
        %433 = vmatpush1.msra.mxu0 0.0
        %434 = vmatprep.subr.mxu0 0.0
        %435 = vmatpush1.msra.mxu0 %v394
        %436 = vmatprep.subr.mxu0 0.0
        %437 = vmatpush1.msra.mxu0 %v393
        %438 = vmatprep.subr.mxu0 0.0
        %439 = vmatpush2.msra.mxu0 0.0
        %440 = vmatprep.subr.mxu0 0.0
        %441 = vmatpush2.msra.mxu0 0.0
        %442 = vmatprep.subr.mxu0 0.0
        %443 = vmatpush2.msra.mxu0 0.0
        %444 = vmatprep.subr.mxu0 0.0
        %445 = vmatpush2.msra.mxu0 0.0
        %446 = vmatprep.subr.mxu0 0.0
        %447 = vmatpush2.msra.mxu0 0.0
        %448 = vmatprep.subr.mxu0 0.0
        %449 = vmatpush2.msra.mxu0 0.0
        %450 = vmatprep.subr.mxu0 0.0
        %451 = vmatpush2.msra.mxu0 0.0
        %452 = vmatprep.subr.mxu0 0.0
        %453 = vmatpush2.msra.mxu0 0.0
        %454 = vmatprep.subr.mxu0 0.0
        %455 = vmatpush2.msra.mxu0 0.0
        %456 = vmatprep.subr.mxu0 0.0
        %457 = vmatpush2.msra.mxu0 0.0
        %458 = vmatprep.subr.mxu0 0.0
        %459 = vmatpush2.msra.mxu0 0.0
        %460 = vmatprep.subr.mxu0 0.0
        %461 = vmatpush2.msra.mxu0 0.0
        %462 = vmatprep.subr.mxu0 0.0
        %463 = vmatpush2.msra.mxu0 0.0
        %464 = vmatprep.subr.mxu0 0.0
        %465 = vmatpush2.msra.mxu0 0.0
        %466 = vmatprep.subr.mxu0 0.0
        %467 = vmatpush2.msra.mxu0 0.0
        %468 = vmatprep.subr.mxu0 0.0
        %469 = vmatpush2.msra.mxu0 0.0
        %470 = vmatprep.mubr.f32.mxu0 0.0
        %471 = vmatmul.mubr.f32.gmra.mxu0 %v404
        %v472 = vpop.f32.mrf.mxu0
        %v473 = vadd.f32 %v400, %v472
        %v474 = vpop.f32.mrf.mxu0
        %475 = vdwg.mxu0
        %v476 = vmax.f32 %v473, 0.0
        %v477 = vld [vmem:[%s3] sm:$0xff]
        %v478 = vld [vmem:[%s3 + $0x8] sm:$0xff]
        %v479 = vld [vmem:[%s3 + $0x10] sm:$0xff]
        %v480 = vld [vmem:[%s3 + $0x18] sm:$0xff]
        %v481 = vld [vmem:[%s4] sm:$0x1]
        %v483 = vlaneseq
        %v484 = vshrl.u32 %v483, 7
        %v485 = vsub.s32 0, %v484
        %v486 = vrot.slane %v481, %v485
        %vm488 = vcmask 261120
        %v490 = vsel %vm488, %v476, 0
        %492 = vmatprep.subr.mxu0 0.0
        %493 = vmatpush1.msra.mxu0 0.0
        %494 = vmatprep.subr.mxu0 0.0
        %495 = vmatpush1.msra.mxu0 0.0
        %496 = vmatprep.subr.mxu0 0.0
        %497 = vmatpush1.msra.mxu0 0.0
        %498 = vmatprep.subr.mxu0 0.0
        %499 = vmatpush1.msra.mxu0 0.0
        %500 = vmatprep.subr.mxu0 0.0
        %501 = vmatpush1.msra.mxu0 0.0
        %502 = vmatprep.subr.mxu0 0.0
        %503 = vmatpush1.msra.mxu0 0.0
        %504 = vmatprep.subr.mxu0 0.0
        %505 = vmatpush1.msra.mxu0 0.0
        %506 = vmatprep.subr.mxu0 0.0
        %507 = vmatpush1.msra.mxu0 0.0
        %508 = vmatprep.subr.mxu0 0.0
        %509 = vmatpush1.msra.mxu0 0.0
        %510 = vmatprep.subr.mxu0 0.0
        %511 = vmatpush1.msra.mxu0 0.0
        %512 = vmatprep.subr.mxu0 0.0
        %513 = vmatpush1.msra.mxu0 0.0
        %514 = vmatprep.subr.mxu0 0.0
        %515 = vmatpush1.msra.mxu0 0.0
        %516 = vmatprep.subr.mxu0 0.0
        %517 = vmatpush1.msra.mxu0 %v480
        %518 = vmatprep.subr.mxu0 0.0
        %519 = vmatpush1.msra.mxu0 %v479
        %520 = vmatprep.subr.mxu0 0.0
        %521 = vmatpush1.msra.mxu0 %v478
        %522 = vmatprep.subr.mxu0 0.0
        %523 = vmatpush1.msra.mxu0 %v477
        %524 = vmatprep.subr.mxu0 0.0
        %525 = vmatpush2.msra.mxu0 0.0
        %526 = vmatprep.subr.mxu0 0.0
        %527 = vmatpush2.msra.mxu0 0.0
        %528 = vmatprep.subr.mxu0 0.0
        %529 = vmatpush2.msra.mxu0 0.0
        %530 = vmatprep.subr.mxu0 0.0
        %531 = vmatpush2.msra.mxu0 0.0
        %532 = vmatprep.subr.mxu0 0.0
        %533 = vmatpush2.msra.mxu0 0.0
        %534 = vmatprep.subr.mxu0 0.0
        %535 = vmatpush2.msra.mxu0 0.0
        %536 = vmatprep.subr.mxu0 0.0
        %537 = vmatpush2.msra.mxu0 0.0
        %538 = vmatprep.subr.mxu0 0.0
        %539 = vmatpush2.msra.mxu0 0.0
        %540 = vmatprep.subr.mxu0 0.0
        %541 = vmatpush2.msra.mxu0 0.0
        %542 = vmatprep.subr.mxu0 0.0
        %543 = vmatpush2.msra.mxu0 0.0
        %544 = vmatprep.subr.mxu0 0.0
        %545 = vmatpush2.msra.mxu0 0.0
        %546 = vmatprep.subr.mxu0 0.0
        %547 = vmatpush2.msra.mxu0 0.0
        %548 = vmatprep.subr.mxu0 0.0
        %549 = vmatpush2.msra.mxu0 0.0
        %550 = vmatprep.subr.mxu0 0.0
        %551 = vmatpush2.msra.mxu0 0.0
        %552 = vmatprep.subr.mxu0 0.0
        %553 = vmatpush2.msra.mxu0 0.0
        %554 = vmatprep.subr.mxu0 0.0
        %555 = vmatpush2.msra.mxu0 0.0
        %556 = vmatprep.mubr.f32.mxu0 0.0
        %557 = vmatmul.mubr.f32.gmra.mxu0 %v490
        %v558 = vpop.f32.mrf.mxu0
        %v559 = vadd.f32 %v486, %v558
        %v560 = vpop.f32.mrf.mxu0
        %561 = vdwg.mxu0
        %v562 = vld [vmem:[#allocation8] sm:$0xff]
        %v563 = vld [vmem:[#allocation8 + $0x8] sm:$0xff]
        %v564 = vld [vmem:[#allocation8 + $0x10] sm:$0xff]
        %v565 = vld [vmem:[#allocation8 + $0x18] sm:$0xff]
        %v566 = vld [vmem:[%s6] sm:$0x1]
        %v567 = vld [vmem:[%s7] sm:$0x1]
        %v568 = vld [vmem:[#allocation2] sm:$0x3]
        %v569 = vld [vmem:[#allocation3] sm:$0x3]
        %v571 = vsel %vm488, %v568, 0
        %573 = vmatprep.subr.mxu0 0.0
        %574 = vmatpush1.msra.mxu0 0.0
        %575 = vmatprep.subr.mxu0 0.0
        %576 = vmatpush1.msra.mxu0 0.0
        %577 = vmatprep.subr.mxu0 0.0
        %578 = vmatpush1.msra.mxu0 0.0
        %579 = vmatprep.subr.mxu0 0.0
        %580 = vmatpush1.msra.mxu0 0.0
        %581 = vmatprep.subr.mxu0 0.0
        %582 = vmatpush1.msra.mxu0 0.0
        %583 = vmatprep.subr.mxu0 0.0
        %584 = vmatpush1.msra.mxu0 0.0
        %585 = vmatprep.subr.mxu0 0.0
        %586 = vmatpush1.msra.mxu0 0.0
        %587 = vmatprep.subr.mxu0 0.0
        %588 = vmatpush1.msra.mxu0 0.0
        %589 = vmatprep.subr.mxu0 0.0
        %590 = vmatpush1.msra.mxu0 0.0
        %591 = vmatprep.subr.mxu0 0.0
        %592 = vmatpush1.msra.mxu0 0.0
        %593 = vmatprep.subr.mxu0 0.0
        %594 = vmatpush1.msra.mxu0 0.0
        %595 = vmatprep.subr.mxu0 0.0
        %596 = vmatpush1.msra.mxu0 0.0
        %597 = vmatprep.subr.mxu0 0.0
        %598 = vmatpush1.msra.mxu0 %v565
        %599 = vmatprep.subr.mxu0 0.0
        %600 = vmatpush1.msra.mxu0 %v564
        %601 = vmatprep.subr.mxu0 0.0
        %602 = vmatpush1.msra.mxu0 %v563
        %603 = vmatprep.subr.mxu0 0.0
        %604 = vmatpush1.msra.mxu0 %v562
        %605 = vmatprep.subr.mxu0 0.0
        %606 = vmatpush2.msra.mxu0 0.0
        %607 = vmatprep.subr.mxu0 0.0
        %608 = vmatpush2.msra.mxu0 0.0
        %609 = vmatprep.subr.mxu0 0.0
        %610 = vmatpush2.msra.mxu0 0.0
        %611 = vmatprep.subr.mxu0 0.0
        %612 = vmatpush2.msra.mxu0 0.0
        %613 = vmatprep.subr.mxu0 0.0
        %614 = vmatpush2.msra.mxu0 0.0
        %615 = vmatprep.subr.mxu0 0.0
        %616 = vmatpush2.msra.mxu0 0.0
        %617 = vmatprep.subr.mxu0 0.0
        %618 = vmatpush2.msra.mxu0 0.0
        %619 = vmatprep.subr.mxu0 0.0
        %620 = vmatpush2.msra.mxu0 0.0
        %621 = vmatprep.subr.mxu0 0.0
        %622 = vmatpush2.msra.mxu0 0.0
        %623 = vmatprep.subr.mxu0 0.0
        %624 = vmatpush2.msra.mxu0 0.0
        %625 = vmatprep.subr.mxu0 0.0
        %626 = vmatpush2.msra.mxu0 0.0
        %627 = vmatprep.subr.mxu0 0.0
        %628 = vmatpush2.msra.mxu0 0.0
        %629 = vmatprep.subr.mxu0 0.0
        %630 = vmatpush2.msra.mxu0 0.0
        %631 = vmatprep.subr.mxu0 0.0
        %632 = vmatpush2.msra.mxu0 0.0
        %633 = vmatprep.subr.mxu0 0.0
        %634 = vmatpush2.msra.mxu0 0.0
        %635 = vmatprep.subr.mxu0 0.0
        %636 = vmatpush2.msra.mxu0 0.0
        %637 = vmatprep.mubr.f32.mxu0 0.0
        %638 = vmatmul.mubr.f32.gmra.mxu0 %v571
        %v639 = vpop.f32.mrf.mxu0
        %v640 = vadd.f32 0.0, %v639
        %v641 = vpop.f32.mrf.mxu0
        %642 = vdwg.mxu0
        %v643 = vadd.f32 %v559, %v640
        %v644 = vxor.u32 %v643, 2147483648
        %v645 = vmul.f32 %v644, 1.442695
        %v646 = vpow.pop %v645
        %v647 = vadd.f32 %v646, 1.0
        %v648 = vrcp.pop %v647
        %v649 = vmul.f32 1.0, %v648
        %v650 = vtanh.pop %v643
        %652 = vrot.lane.b32.xlu0 %v569, 32
        %v653 = vpop.permute.xlu0 %652
        %v655 = vmul.f32 %v649, %v653
        %657 = vrot.lane.b32.xlu0 %v650, 64
        %v658 = vpop.permute.xlu0 %657
        %v660 = vmul.f32 %v649, %v658
        %662 = vrot.lane.b32.xlu0 %v660, 32
        %v663 = vpop.permute.xlu0 %662
        %v665 = vadd.f32 %v655, %v663
        %v666 = vtanh.pop %v665
        %668 = vrot.lane.b32.xlu0 %v666, 64
        %v669 = vpop.permute.xlu0 %668
        %v671 = vmul.f32 %v649, %v669
        %673 = vrot.lane.b32.xlu0 %v671, 32
        %v674 = vpop.permute.xlu0 %673
        %vm676 = vcmask 254976
        %v677 = vsel %vm676, %v674, 0.0
        %678 = vadd.xlane.f32.xlu0 %v677
        %v679 = vpop.xlane.xlu0 %678
        %v680 = vmul.f32 %v679, 0.03125
        %v681 = vmul.f32 %v671, %v671
        %683 = vrot.lane.b32.xlu0 %v681, 32
        %v684 = vpop.permute.xlu0 %683
        %v686 = vsel %vm676, %v684, 0.0
        %687 = vadd.xlane.f32.xlu0 %v686
        %v688 = vpop.xlane.xlu0 %687
        %v689 = vmul.f32 %v688, 0.03125
        %v690 = vmul.f32 %v680, %v680
        %v691 = vsub.f32 %v689, %v690
        %v692 = vsub.f32 %v671, %v680
        %v693 = vadd.f32 %v691, 1e-05
        %v694 = vrsqrt.pop %v693
        %v695 = vmul.f32 %v692, %v694
        %v697 = vlaneseq
        %v698 = vshrl.u32 %v697, 7
        %v699 = vsub.s32 0, %v698
        %v700 = vrot.slane %v566, %v699
        %701 = vrot.lane.b32.xlu0 %v700, 96
        %v702 = vpop.permute.xlu0 %701
        %v704 = vmul.f32 %v695, %v702
        %v706 = vlaneseq
        %v707 = vshrl.u32 %v706, 7
        %v708 = vsub.s32 0, %v707
        %v709 = vrot.slane %v567, %v708
        %710 = vrot.lane.b32.xlu0 %v709, 96
        %v711 = vpop.permute.xlu0 %710
        %v713 = vadd.f32 %v704, %v711
        %715 = vrot.lane.b32.xlu0 %v713, 32
        %v716 = vpop.permute.xlu0 %715
        %718 = vst.msk [vmem:[#allocation4] sm:$0x3] %vm676, %v716
        %v719 = vsel %vm488, %v674, 0
        %721 = vmatprep.subr.mxu0 0.0
        %722 = vmatpush1.msra.mxu0 0.0
        %723 = vmatprep.subr.mxu0 0.0
        %724 = vmatpush1.msra.mxu0 0.0
        %725 = vmatprep.subr.mxu0 0.0
        %726 = vmatpush1.msra.mxu0 0.0
        %727 = vmatprep.subr.mxu0 0.0
        %728 = vmatpush1.msra.mxu0 0.0
        %729 = vmatprep.subr.mxu0 0.0
        %730 = vmatpush1.msra.mxu0 0.0
        %731 = vmatprep.subr.mxu0 0.0
        %732 = vmatpush1.msra.mxu0 0.0
        %733 = vmatprep.subr.mxu0 0.0
        %734 = vmatpush1.msra.mxu0 0.0
        %735 = vmatprep.subr.mxu0 0.0
        %736 = vmatpush1.msra.mxu0 0.0
        %737 = vmatprep.subr.mxu0 0.0
        %738 = vmatpush1.msra.mxu0 0.0
        %739 = vmatprep.subr.mxu0 0.0
        %740 = vmatpush1.msra.mxu0 0.0
        %741 = vmatprep.subr.mxu0 0.0
        %742 = vmatpush1.msra.mxu0 0.0
        %743 = vmatprep.subr.mxu0 0.0
        %744 = vmatpush1.msra.mxu0 0.0
        %745 = vmatprep.subr.mxu0 0.0
        %746 = vmatpush1.msra.mxu0 %v565
        %747 = vmatprep.subr.mxu0 0.0
        %748 = vmatpush1.msra.mxu0 %v564
        %749 = vmatprep.subr.mxu0 0.0
        %750 = vmatpush1.msra.mxu0 %v563
        %751 = vmatprep.subr.mxu0 0.0
        %752 = vmatpush1.msra.mxu0 %v562
        %753 = vmatprep.subr.mxu0 0.0
        %754 = vmatpush2.msra.mxu0 0.0
        %755 = vmatprep.subr.mxu0 0.0
        %756 = vmatpush2.msra.mxu0 0.0
        %757 = vmatprep.subr.mxu0 0.0
        %758 = vmatpush2.msra.mxu0 0.0
        %759 = vmatprep.subr.mxu0 0.0
        %760 = vmatpush2.msra.mxu0 0.0
        %761 = vmatprep.subr.mxu0 0.0
        %762 = vmatpush2.msra.mxu0 0.0
        %763 = vmatprep.subr.mxu0 0.0
        %764 = vmatpush2.msra.mxu0 0.0
        %765 = vmatprep.subr.mxu0 0.0
        %766 = vmatpush2.msra.mxu0 0.0
        %767 = vmatprep.subr.mxu0 0.0
        %768 = vmatpush2.msra.mxu0 0.0
        %769 = vmatprep.subr.mxu0 0.0
        %770 = vmatpush2.msra.mxu0 0.0
        %771 = vmatprep.subr.mxu0 0.0
        %772 = vmatpush2.msra.mxu0 0.0
        %773 = vmatprep.subr.mxu0 0.0
        %774 = vmatpush2.msra.mxu0 0.0
        %775 = vmatprep.subr.mxu0 0.0
        %776 = vmatpush2.msra.mxu0 0.0
        %777 = vmatprep.subr.mxu0 0.0
        %778 = vmatpush2.msra.mxu0 0.0
        %779 = vmatprep.subr.mxu0 0.0
        %780 = vmatpush2.msra.mxu0 0.0
        %781 = vmatprep.subr.mxu0 0.0
        %782 = vmatpush2.msra.mxu0 0.0
        %783 = vmatprep.subr.mxu0 0.0
        %784 = vmatpush2.msra.mxu0 0.0
        %785 = vmatprep.mubr.f32.mxu0 0.0
        %786 = vmatmul.mubr.f32.gmra.mxu0 %v719
        %v787 = vpop.f32.mrf.mxu0
        %v788 = vadd.f32 0.0, %v787
        %v789 = vpop.f32.mrf.mxu0
        %790 = vdwg.mxu0
        %v792 = vrot.slane %v788, 6
        %v794 = vadd.f32 %v559, %v792
        %v795 = vxor.u32 %v794, 2147483648
        %v796 = vmul.f32 %v795, 1.442695
        %v797 = vpow.pop %v796
        %v798 = vadd.f32 %v797, 1.0
        %v799 = vrcp.pop %v798
        %v800 = vmul.f32 1.0, %v799
        %v801 = vtanh.pop %v794
        %v803 = vrot.slane %v665, 6
        %v805 = vmul.f32 %v800, %v803
        %807 = vrot.lane.b32.xlu0 %v801, 64
        %v808 = vpop.permute.xlu0 %807
        %v810 = vmul.f32 %v800, %v808
        %812 = vrot.lane.b32.xlu0 %v810, 32
        %v813 = vpop.permute.xlu0 %812
        %v815 = vadd.f32 %v805, %v813
        %v816 = vtanh.pop %v815
        %818 = vrot.lane.b32.xlu0 %v816, 64
        %v819 = vpop.permute.xlu0 %818
        %v821 = vmul.f32 %v800, %v819
        %823 = vrot.lane.b32.xlu0 %v821, 32
        %v824 = vpop.permute.xlu0 %823
        %vm826 = vcmask 257026
        %v827 = vsel %vm826, %v824, 0.0
        %828 = vadd.xlane.f32.xlu0 %v827
        %v829 = vpop.xlane.xlu0 %828
        %v830 = vmul.f32 %v829, 0.03125
        %v831 = vmul.f32 %v821, %v821
        %833 = vrot.lane.b32.xlu0 %v831, 32
        %v834 = vpop.permute.xlu0 %833
        %v836 = vsel %vm826, %v834, 0.0
        %837 = vadd.xlane.f32.xlu0 %v836
        %v838 = vpop.xlane.xlu0 %837
        %v839 = vmul.f32 %v838, 0.03125
        %v840 = vmul.f32 %v830, %v830
        %v841 = vsub.f32 %v839, %v840
        %v842 = vsub.f32 %v821, %v830
        %v843 = vadd.f32 %v841, 1e-05
        %v844 = vrsqrt.pop %v843
        %v845 = vmul.f32 %v842, %v844
        %v846 = vmul.f32 %v845, %v702
        %v847 = vadd.f32 %v846, %v711
        %849 = vrot.lane.b32.xlu0 %v847, 32
        %v850 = vpop.permute.xlu0 %849
        %852 = vst.msk [vmem:[#allocation4] sm:$0xc] %vm826, %v850
        %v853 = vrot.slane %v821, 2
        %854 = vrot.lane.b32.xlu0 %v853, 32
        %v855 = vpop.permute.xlu0 %854
        %v856 = vsel %vm488, %v855, 0
        %858 = vmatprep.subr.mxu0 0.0
        %859 = vmatpush1.msra.mxu0 0.0
        %860 = vmatprep.subr.mxu0 0.0
        %861 = vmatpush1.msra.mxu0 0.0
        %862 = vmatprep.subr.mxu0 0.0
        %863 = vmatpush1.msra.mxu0 0.0
        %864 = vmatprep.subr.mxu0 0.0
        %865 = vmatpush1.msra.mxu0 0.0
        %866 = vmatprep.subr.mxu0 0.0
        %867 = vmatpush1.msra.mxu0 0.0
        %868 = vmatprep.subr.mxu0 0.0
        %869 = vmatpush1.msra.mxu0 0.0
        %870 = vmatprep.subr.mxu0 0.0
        %871 = vmatpush1.msra.mxu0 0.0
        %872 = vmatprep.subr.mxu0 0.0
        %873 = vmatpush1.msra.mxu0 0.0
        %874 = vmatprep.subr.mxu0 0.0
        %875 = vmatpush1.msra.mxu0 0.0
        %876 = vmatprep.subr.mxu0 0.0
        %877 = vmatpush1.msra.mxu0 0.0
        %878 = vmatprep.subr.mxu0 0.0
        %879 = vmatpush1.msra.mxu0 0.0
        %880 = vmatprep.subr.mxu0 0.0
        %881 = vmatpush1.msra.mxu0 0.0
        %882 = vmatprep.subr.mxu0 0.0
        %883 = vmatpush1.msra.mxu0 %v565
        %884 = vmatprep.subr.mxu0 0.0
        %885 = vmatpush1.msra.mxu0 %v564
        %886 = vmatprep.subr.mxu0 0.0
        %887 = vmatpush1.msra.mxu0 %v563
        %888 = vmatprep.subr.mxu0 0.0
        %889 = vmatpush1.msra.mxu0 %v562
        %890 = vmatprep.subr.mxu0 0.0
        %891 = vmatpush2.msra.mxu0 0.0
        %892 = vmatprep.subr.mxu0 0.0
        %893 = vmatpush2.msra.mxu0 0.0
        %894 = vmatprep.subr.mxu0 0.0
        %895 = vmatpush2.msra.mxu0 0.0
        %896 = vmatprep.subr.mxu0 0.0
        %897 = vmatpush2.msra.mxu0 0.0
        %898 = vmatprep.subr.mxu0 0.0
        %899 = vmatpush2.msra.mxu0 0.0
        %900 = vmatprep.subr.mxu0 0.0
        %901 = vmatpush2.msra.mxu0 0.0
        %902 = vmatprep.subr.mxu0 0.0
        %903 = vmatpush2.msra.mxu0 0.0
        %904 = vmatprep.subr.mxu0 0.0
        %905 = vmatpush2.msra.mxu0 0.0
        %906 = vmatprep.subr.mxu0 0.0
        %907 = vmatpush2.msra.mxu0 0.0
        %908 = vmatprep.subr.mxu0 0.0
        %909 = vmatpush2.msra.mxu0 0.0
        %910 = vmatprep.subr.mxu0 0.0
        %911 = vmatpush2.msra.mxu0 0.0
        %912 = vmatprep.subr.mxu0 0.0
        %913 = vmatpush2.msra.mxu0 0.0
        %914 = vmatprep.subr.mxu0 0.0
        %915 = vmatpush2.msra.mxu0 0.0
        %916 = vmatprep.subr.mxu0 0.0
        %917 = vmatpush2.msra.mxu0 0.0
        %918 = vmatprep.subr.mxu0 0.0
        %919 = vmatpush2.msra.mxu0 0.0
        %920 = vmatprep.subr.mxu0 0.0
        %921 = vmatpush2.msra.mxu0 0.0
        %922 = vmatprep.mubr.f32.mxu0 0.0
        %923 = vmatmul.mubr.f32.gmra.mxu0 %v856
        %v924 = vpop.f32.mrf.mxu0
        %v925 = vadd.f32 0.0, %v924
        %v926 = vpop.f32.mrf.mxu0
        %927 = vdwg.mxu0
        %v929 = vrot.slane %v925, 4
        %v931 = vadd.f32 %v559, %v929
        %v932 = vxor.u32 %v931, 2147483648
        %v933 = vmul.f32 %v932, 1.442695
        %v934 = vpow.pop %v933
        %v935 = vadd.f32 %v934, 1.0
        %v936 = vrcp.pop %v935
        %v937 = vmul.f32 1.0, %v936
        %v938 = vtanh.pop %v931
        %v940 = vrot.slane %v815, 6
        %v942 = vmul.f32 %v937, %v940
        %944 = vrot.lane.b32.xlu0 %v938, 64
        %v945 = vpop.permute.xlu0 %944
        %v947 = vmul.f32 %v937, %v945
        %949 = vrot.lane.b32.xlu0 %v947, 32
        %v950 = vpop.permute.xlu0 %949
        %v952 = vadd.f32 %v942, %v950
        %v953 = vtanh.pop %v952
        %955 = vrot.lane.b32.xlu0 %v953, 64
        %v956 = vpop.permute.xlu0 %955
        %v958 = vmul.f32 %v937, %v956
        %960 = vrot.lane.b32.xlu0 %v958, 32
        %v961 = vpop.permute.xlu0 %960
        %vm963 = vcmask 259076
        %v964 = vsel %vm963, %v961, 0.0
        %965 = vadd.xlane.f32.xlu0 %v964
        %v966 = vpop.xlane.xlu0 %965
        %v967 = vmul.f32 %v966, 0.03125
        %v968 = vmul.f32 %v958, %v958
        %970 = vrot.lane.b32.xlu0 %v968, 32
        %v971 = vpop.permute.xlu0 %970
        %v973 = vsel %vm963, %v971, 0.0
        %974 = vadd.xlane.f32.xlu0 %v973
        %v975 = vpop.xlane.xlu0 %974
        %v976 = vmul.f32 %v975, 0.03125
        %v977 = vmul.f32 %v967, %v967
        %v978 = vsub.f32 %v976, %v977
        %v979 = vsub.f32 %v958, %v967
        %v980 = vadd.f32 %v978, 1e-05
        %v981 = vrsqrt.pop %v980
        %v982 = vmul.f32 %v979, %v981
        %v983 = vmul.f32 %v982, %v702
        %v984 = vadd.f32 %v983, %v711
        %986 = vrot.lane.b32.xlu0 %v984, 32
        %v987 = vpop.permute.xlu0 %986
        %989 = vst.msk [vmem:[#allocation4] sm:$0x30] %vm963, %v987
        %v990 = vrot.slane %v958, 4
        %991 = vrot.lane.b32.xlu0 %v990, 32
        %v992 = vpop.permute.xlu0 %991
        %v993 = vsel %vm488, %v992, 0
        %995 = vmatprep.subr.mxu0 0.0
        %996 = vmatpush1.msra.mxu0 0.0
        %997 = vmatprep.subr.mxu0 0.0
        %998 = vmatpush1.msra.mxu0 0.0
        %999 = vmatprep.subr.mxu0 0.0
        %1000 = vmatpush1.msra.mxu0 0.0
        %1001 = vmatprep.subr.mxu0 0.0
        %1002 = vmatpush1.msra.mxu0 0.0
        %1003 = vmatprep.subr.mxu0 0.0
        %1004 = vmatpush1.msra.mxu0 0.0
        %1005 = vmatprep.subr.mxu0 0.0
        %1006 = vmatpush1.msra.mxu0 0.0
        %1007 = vmatprep.subr.mxu0 0.0
        %1008 = vmatpush1.msra.mxu0 0.0
        %1009 = vmatprep.subr.mxu0 0.0
        %1010 = vmatpush1.msra.mxu0 0.0
        %1011 = vmatprep.subr.mxu0 0.0
        %1012 = vmatpush1.msra.mxu0 0.0
        %1013 = vmatprep.subr.mxu0 0.0
        %1014 = vmatpush1.msra.mxu0 0.0
        %1015 = vmatprep.subr.mxu0 0.0
        %1016 = vmatpush1.msra.mxu0 0.0
        %1017 = vmatprep.subr.mxu0 0.0
        %1018 = vmatpush1.msra.mxu0 0.0
        %1019 = vmatprep.subr.mxu0 0.0
        %1020 = vmatpush1.msra.mxu0 %v565
        %1021 = vmatprep.subr.mxu0 0.0
        %1022 = vmatpush1.msra.mxu0 %v564
        %1023 = vmatprep.subr.mxu0 0.0
        %1024 = vmatpush1.msra.mxu0 %v563
        %1025 = vmatprep.subr.mxu0 0.0
        %1026 = vmatpush1.msra.mxu0 %v562
        %1027 = vmatprep.subr.mxu0 0.0
        %1028 = vmatpush2.msra.mxu0 0.0
        %1029 = vmatprep.subr.mxu0 0.0
        %1030 = vmatpush2.msra.mxu0 0.0
        %1031 = vmatprep.subr.mxu0 0.0
        %1032 = vmatpush2.msra.mxu0 0.0
        %1033 = vmatprep.subr.mxu0 0.0
        %1034 = vmatpush2.msra.mxu0 0.0
        %1035 = vmatprep.subr.mxu0 0.0
        %1036 = vmatpush2.msra.mxu0 0.0
        %1037 = vmatprep.subr.mxu0 0.0
        %1038 = vmatpush2.msra.mxu0 0.0
        %1039 = vmatprep.subr.mxu0 0.0
        %1040 = vmatpush2.msra.mxu0 0.0
        %1041 = vmatprep.subr.mxu0 0.0
        %1042 = vmatpush2.msra.mxu0 0.0
        %1043 = vmatprep.subr.mxu0 0.0
        %1044 = vmatpush2.msra.mxu0 0.0
        %1045 = vmatprep.subr.mxu0 0.0
        %1046 = vmatpush2.msra.mxu0 0.0
        %1047 = vmatprep.subr.mxu0 0.0
        %1048 = vmatpush2.msra.mxu0 0.0
        %1049 = vmatprep.subr.mxu0 0.0
        %1050 = vmatpush2.msra.mxu0 0.0
        %1051 = vmatprep.subr.mxu0 0.0
        %1052 = vmatpush2.msra.mxu0 0.0
        %1053 = vmatprep.subr.mxu0 0.0
        %1054 = vmatpush2.msra.mxu0 0.0
        %1055 = vmatprep.subr.mxu0 0.0
        %1056 = vmatpush2.msra.mxu0 0.0
        %1057 = vmatprep.subr.mxu0 0.0
        %1058 = vmatpush2.msra.mxu0 0.0
        %1059 = vmatprep.mubr.f32.mxu0 0.0
        %1060 = vmatmul.mubr.f32.gmra.mxu0 %v993
        %v1061 = vpop.f32.mrf.mxu0
        %v1062 = vadd.f32 0.0, %v1061
        %v1063 = vpop.f32.mrf.mxu0
        %1064 = vdwg.mxu0
        %v1066 = vrot.slane %v1062, 2
        %v1068 = vadd.f32 %v559, %v1066
        %v1069 = vxor.u32 %v1068, 2147483648
        %v1070 = vmul.f32 %v1069, 1.442695
        %v1071 = vpow.pop %v1070
        %v1072 = vadd.f32 %v1071, 1.0
        %v1073 = vrcp.pop %v1072
        %v1074 = vmul.f32 1.0, %v1073
        %v1075 = vtanh.pop %v1068
        %v1077 = vrot.slane %v952, 6
        %v1079 = vmul.f32 %v1074, %v1077
        %1081 = vrot.lane.b32.xlu0 %v1075, 64
        %v1082 = vpop.permute.xlu0 %1081
        %v1084 = vmul.f32 %v1074, %v1082
        %1086 = vrot.lane.b32.xlu0 %v1084, 32
        %v1087 = vpop.permute.xlu0 %1086
        %v1089 = vadd.f32 %v1079, %v1087
        %v1090 = vtanh.pop %v1089
        %1092 = vrot.lane.b32.xlu0 %v1090, 64
        %v1093 = vpop.permute.xlu0 %1092
        %v1095 = vmul.f32 %v1074, %v1093
        %1097 = vrot.lane.b32.xlu0 %v1095, 32
        %v1098 = vpop.permute.xlu0 %1097
        %vm1100 = vcmask 261126
        %v1101 = vsel %vm1100, %v1098, 0.0
        %1102 = vadd.xlane.f32.xlu0 %v1101
        %v1103 = vpop.xlane.xlu0 %1102
        %v1104 = vmul.f32 %v1103, 0.03125
        %v1105 = vmul.f32 %v1095, %v1095
        %1107 = vrot.lane.b32.xlu0 %v1105, 32
        %v1108 = vpop.permute.xlu0 %1107
        %v1110 = vsel %vm1100, %v1108, 0.0
        %1111 = vadd.xlane.f32.xlu0 %v1110
        %v1112 = vpop.xlane.xlu0 %1111
        %v1113 = vmul.f32 %v1112, 0.03125
        %v1114 = vmul.f32 %v1104, %v1104
        %v1115 = vsub.f32 %v1113, %v1114
        %v1116 = vsub.f32 %v1095, %v1104
        %v1117 = vadd.f32 %v1115, 1e-05
        %v1118 = vrsqrt.pop %v1117
        %v1119 = vmul.f32 %v1116, %v1118
        %v1120 = vmul.f32 %v1119, %v702
        %v1121 = vadd.f32 %v1120, %v711
        %1123 = vrot.lane.b32.xlu0 %v1121, 32
        %v1124 = vpop.permute.xlu0 %1123
        %1126 = vst.msk [vmem:[#allocation4] sm:$0xc0] %vm1100, %v1124
        %1127 = vst.msk [vmem:[#allocation2 - $0x6] sm:$0xc0] %vm1100, %v1098
        %1129 = vrot.lane.b32.xlu0 %v1089, 96
        %v1130 = vpop.permute.xlu0 %1129
        %1132 = vst.msk [vmem:[#allocation3 - $0x6] sm:$0xc0] %vm1100, %v1130
        %v1133 = vld [vmem:[#allocation4] sm:$0xff]
        %v1134 = vld [vmem:[%s8] sm:$0xff]
        %v1135 = vld [vmem:[%s8 + $0x8] sm:$0xff]
        %v1136 = vld [vmem:[%s8 + $0x10] sm:$0xff]
        %v1137 = vld [vmem:[%s8 + $0x18] sm:$0xff]
        %v1138 = vld [vmem:[%s9] sm:$0x1]
        %v1140 = vlaneseq
        %v1141 = vshrl.u32 %v1140, 7
        %v1142 = vsub.s32 0, %v1141
        %v1143 = vrot.slane %v1138, %v1142
        %v1146 = vsel %vm488, %v1133, 0
        %1148 = vmatprep.subr.mxu0 0.0
        %1149 = vmatpush1.msra.mxu0 0.0
        %1150 = vmatprep.subr.mxu0 0.0
        %1151 = vmatpush1.msra.mxu0 0.0
        %1152 = vmatprep.subr.mxu0 0.0
        %1153 = vmatpush1.msra.mxu0 0.0
        %1154 = vmatprep.subr.mxu0 0.0
        %1155 = vmatpush1.msra.mxu0 0.0
        %1156 = vmatprep.subr.mxu0 0.0
        %1157 = vmatpush1.msra.mxu0 0.0
        %1158 = vmatprep.subr.mxu0 0.0
        %1159 = vmatpush1.msra.mxu0 0.0
        %1160 = vmatprep.subr.mxu0 0.0
        %1161 = vmatpush1.msra.mxu0 0.0
        %1162 = vmatprep.subr.mxu0 0.0
        %1163 = vmatpush1.msra.mxu0 0.0
        %1164 = vmatprep.subr.mxu0 0.0
        %1165 = vmatpush1.msra.mxu0 0.0
        %1166 = vmatprep.subr.mxu0 0.0
        %1167 = vmatpush1.msra.mxu0 0.0
        %1168 = vmatprep.subr.mxu0 0.0
        %1169 = vmatpush1.msra.mxu0 0.0
        %1170 = vmatprep.subr.mxu0 0.0
        %1171 = vmatpush1.msra.mxu0 0.0
        %1172 = vmatprep.subr.mxu0 0.0
        %1173 = vmatpush1.msra.mxu0 %v1137
        %1174 = vmatprep.subr.mxu0 0.0
        %1175 = vmatpush1.msra.mxu0 %v1136
        %1176 = vmatprep.subr.mxu0 0.0
        %1177 = vmatpush1.msra.mxu0 %v1135
        %1178 = vmatprep.subr.mxu0 0.0
        %1179 = vmatpush1.msra.mxu0 %v1134
        %1180 = vmatprep.subr.mxu0 0.0
        %1181 = vmatpush2.msra.mxu0 0.0
        %1182 = vmatprep.subr.mxu0 0.0
        %1183 = vmatpush2.msra.mxu0 0.0
        %1184 = vmatprep.subr.mxu0 0.0
        %1185 = vmatpush2.msra.mxu0 0.0
        %1186 = vmatprep.subr.mxu0 0.0
        %1187 = vmatpush2.msra.mxu0 0.0
        %1188 = vmatprep.subr.mxu0 0.0
        %1189 = vmatpush2.msra.mxu0 0.0
        %1190 = vmatprep.subr.mxu0 0.0
        %1191 = vmatpush2.msra.mxu0 0.0
        %1192 = vmatprep.subr.mxu0 0.0
        %1193 = vmatpush2.msra.mxu0 0.0
        %1194 = vmatprep.subr.mxu0 0.0
        %1195 = vmatpush2.msra.mxu0 0.0
        %1196 = vmatprep.subr.mxu0 0.0
        %1197 = vmatpush2.msra.mxu0 0.0
        %1198 = vmatprep.subr.mxu0 0.0
        %1199 = vmatpush2.msra.mxu0 0.0
        %1200 = vmatprep.subr.mxu0 0.0
        %1201 = vmatpush2.msra.mxu0 0.0
        %1202 = vmatprep.subr.mxu0 0.0
        %1203 = vmatpush2.msra.mxu0 0.0
        %1204 = vmatprep.subr.mxu0 0.0
        %1205 = vmatpush2.msra.mxu0 0.0
        %1206 = vmatprep.subr.mxu0 0.0
        %1207 = vmatpush2.msra.mxu0 0.0
        %1208 = vmatprep.subr.mxu0 0.0
        %1209 = vmatpush2.msra.mxu0 0.0
        %1210 = vmatprep.subr.mxu0 0.0
        %1211 = vmatpush2.msra.mxu0 0.0
        %1212 = vmatprep.mubr.f32.mxu0 0.0
        %1213 = vmatmul.mubr.f32.gmra.mxu0 %v1146
        %v1214 = vpop.f32.mrf.mxu0
        %v1215 = vadd.f32 %v1143, %v1214
        %v1216 = vpop.f32.mrf.mxu0
        %1217 = vdwg.mxu0
        %1218 = vst.msk [vmem:[%s380] sm:$0xff] %vm402, %v1215
        %s1219 = sand.u32 %s249, 1
        %s1220 = scalar_lea.sflag [#allocation7], %s1219
        %s1221 = sand.u32 %s249, 1
        %s1222 = smul.addr %s1221, 8
        %s1223 = scalar_lea.vmem [#allocation10], %s1222
        // Predicated region
        $region73: #{tpu_custom_call.1} parent=59 // pred_check
          %p1224 = pneg %p259
        $region74: #{tpu_custom_call.1} parent=59 // pred_check_branch
          %1226 = sbr.rel (%p1224) target = $region76
        $region75: #{tpu_custom_call.1} parent=59 // pred_region
          %s1228 = ssub.s32 128, 128
          %1229 = vsyncadd %s1220, %s1228
          %s1230 = smul.addr %s26, 128
          %s1231 = scalar_lea.hbm %s10, %s1230
          %s1233 = sshll.u32 %s1223, 4
          %s1234 = int_to_ptr.vmem [resolvable:$true] %s1233
          %1236 = dma.vmem_to_hbm [thread:$0]  %s1234, 128, %s1231, %s1220
        $region76: #{tpu_custom_call.1} parent=59 // pred_fallthru
          _
      $region60: #{tpu_custom_call.1} parent=5 // pred_fallthru
        _
      %p1237 = scmp.le.s32.totalorder 2, %s21
      // Predicated region
      $region77: #{tpu_custom_call.1} parent=5 // pred_check
        %p1238 = pneg %p1237
      $region78: #{tpu_custom_call.1} parent=5 // pred_check_branch
        %1240 = sbr.rel (%p1238) target = $region80
      $region79: #{tpu_custom_call.1} parent=5 // pred_region
        %s1241 = ssub.s32 %s21, 2
        // Predicated region
        $region81: #{tpu_custom_call.1} parent=79 // pred_check
          %p1242 = pneg %p265
        $region82: #{tpu_custom_call.1} parent=79 // pred_check_branch
          %1244 = sbr.rel (%p1242) target = $region84
        $region83: #{tpu_custom_call.1} parent=79 // pred_region
          %s1245 = sand.u32 %s250, 1
          %s1246 = scalar_lea.sflag [#allocation7], %s1245
          %s1247 = sand.u32 %s250, 1
          %s1248 = smul.addr %s1247, 8
          %s1249 = scalar_lea.vmem [#allocation10], %s1248
          %1250 = dma.done %s1246, 128
        $region84: #{tpu_custom_call.1} parent=79 // pred_fallthru
          _
      $region80: #{tpu_custom_call.1} parent=5 // pred_fallthru
        _
    $region6: #{tpu_custom_call.1} parent=1 // loop_footer
      %s25 = sadd.s32 1, %s21
    $region7: #{tpu_custom_call.1} parent=1 // loop_footer_branch
      %20 = sbr.rel target = $region3
    $region8: #{tpu_custom_call.1} parent=1 // loop_exit
      _
    %1251 = vsyncpa [#allocation6], 1
    %s1252 = scalar_lea.sflag [#allocation6], 1
    %1253 = vsyncpa %s1252, 1
    %1254 = vsyncpa [#allocation9], 1
    %1255 = vsyncpa [#allocation7], 1
    %s1256 = scalar_lea.sflag [#allocation7], 1
    %1257 = vsyncpa %s1256, 1

// kernel: tpu_custom_call.1
$region0: #{tpu_custom_call.1}
  #allocation0 [shape = 'u32[]', space=smem, size = 0x4, offset = 0x4, fixed_abs, tag = 'smem constant byte address 0x4 - core index']
  #allocation1 [shape = 'u32[144,128]{1,0:T(1,128)}', space=vmem, size = 0x12000, scoped, tag = 'internal scratch']
  #allocation2 [shape = 'f32[2,32]{1,0:T(2,128)}', space=vmem, size = 0x400, scoped, tag = 'scratch operand']
  #allocation3 [shape = 'f32[2,32]{1,0:T(2,128)}', space=vmem, size = 0x400, scoped, tag = 'scratch operand']
  #allocation4 [shape = 'f32[8,32]{1,0:T(8,128)}', space=vmem, size = 0x1000, scoped, tag = 'scratch operand']
  %s0 = inlined_call_operand.vmem [shape: f32[16,16], index: 0, kind: input, shape index: {}]
  %s1 = inlined_call_operand.hbm [shape: f32[16,32], index: 1, kind: input, shape index: {}]
  %s2 = inlined_call_operand.vmem [shape: f32[1,32], index: 2, kind: input, shape index: {}]
  %s3 = inlined_call_operand.vmem [shape: f32[32,128], index: 3, kind: input, shape index: {}]
  %s4 = inlined_call_operand.vmem [shape: f32[1,128], index: 4, kind: input, shape index: {}]
  %s5 = inlined_call_operand.hbm [shape: f32[32,128], index: 5, kind: input, shape index: {}]
  %s6 = inlined_call_operand.vmem [shape: f32[1,32], index: 6, kind: input, shape index: {}]
  %s7 = inlined_call_operand.vmem [shape: f32[1,32], index: 7, kind: input, shape index: {}]
  %s8 = inlined_call_operand.vmem [shape: f32[32,16], index: 8, kind: input, shape index: {}]
  %s9 = inlined_call_operand.vmem [shape: f32[1,16], index: 9, kind: input, shape index: {}]
  %s10 = inlined_call_operand.hbm [shape: f32[16,16], index: 10, kind: output, shape index: {}]
  %s11 = sld [smem:[#allocation0]]
  $region85: #{tpu_custom_call.1} parent=0
    _
  %s13 = ssub.s32 1, %s11
  %s14 = scalar_select 0, %s13, %s11
  $region1: #{tpu_custom_call.1} parent=0
    #allocation5 [shape = 'u8[8192]{0}', space=vmem, size = 0x2000, scoped, tag = 'input window, operand 1, single buffered']
    #allocation6 [shape = 's32[2]{0}', space=sflag, size = 0x8, scoped, tag = 'scoped memory for tpu_custom_call.1']
    #allocation7 [shape = 's32[2]{0}', space=sflag, size = 0x8, scoped, tag = 'scoped memory for tpu_custom_call.1']
    #allocation8 [shape = 'u8[16384]{0}', space=vmem, size = 0x4000, scoped, tag = 'input window, operand 5, single buffered']
    #allocation9 [shape = 's32[1]{0}', space=sflag, size = 0x4, scoped, tag = 'scoped memory for tpu_custom_call.1']
    #allocation10 [shape = 'u8[8192]{0}', space=vmem, size = 0x2000, scoped, tag = 'output window, operand 0']
    %15 = vsyncpa [#allocation6], 0
    %16 = vsyncpa [#allocation9], 0
    %17 = vsyncpa [#allocation7], 0
    %s18 = scalar_lea.sflag [#allocation7], 1
    %19 = vsyncpa %s18, 0
    loop: start=0, step=1, limit=4
    $region2: #{tpu_custom_call.1} parent=1 // loop_pre_header
      _
    $region3: #{tpu_custom_call.1} parent=1 // loop_header
      %s21 = sphi 0, %s25
      %p22 = scmp.ge.s32.totalorder %s21, 4
      %s31 = sphi 0, %s33
      %s34 = sphi 0, %s31
      %s35 = sphi 0, %s34
      %s51 = sphi 0, %s35
      %s55 = sphi 0, %s55
      %s57 = sphi 0, %s55
      %s58 = sphi 0, %s57
      %s72 = sphi 0, %s58
      %s76 = sphi 0, %s76
      %s78 = sphi 0, %s76
      %s79 = sphi 0, %s78
      %s93 = sphi 0, %s79
      %s97 = sphi 0, %s97
      %s99 = sphi 0, %s97
      %s100 = sphi 0, %s99
      %s114 = sphi 0, %s100
      %s118 = sphi 0, %s118
      %s120 = sphi 0, %s118
      %s121 = sphi 0, %s120
      %s135 = sphi 0, %s121
      %s139 = sphi 0, %s139
      %s141 = sphi 0, %s139
      %s142 = sphi 0, %s141
      %s156 = sphi 0, %s142
      %s160 = sphi 0, %s160
      %s162 = sphi 0, %s160
      %s163 = sphi 0, %s162
      %s177 = sphi 0, %s163
      %s181 = sphi 0, %s181
      %s183 = sphi 0, %s181
      %s184 = sphi 0, %s183
      %s198 = sphi 0, %s184
      %s202 = sphi 0, %s202
      %s204 = sphi 0, %s202
      %s205 = sphi 0, %s204
      %s219 = sphi 0, %s205
      %s223 = sphi 0, %s223
      %s225 = sphi 0, %s223
      %s226 = sphi 0, %s225
      %s240 = sphi 0, %s226
      %s246 = sphi 0, %s248
      %s249 = sphi 0, %s246
      %s250 = sphi 0, %s249
      %s266 = sphi 0, %s250
    $region4: #{tpu_custom_call.1} parent=1 // loop_header_branch
      %24 = sbr.rel (%p22) target = $region8
    $region5: #{tpu_custom_call.1} parent=1 // loop_body
      %s26 = ssub.s32 %s21, 1
      %s27 = ssub.s32 %s21, 2
      %s28 = sadd.s32 %s21, 1
      %s29 = ssub.s32 %s21, %s28
      %p30 = scmp.eq.s32.totalorder %s29, 0
      %s32 = sadd.s32 %s31, 1
      %s33 = scalar_select %p30, %s31, %s32
      %p36 = pneg %p30
      %p37 = scmp.eq.s32.totalorder %s21, 1
      %p38 = por %p36, %p37
      %p39 = scmp.ne.s32.totalorder %s31, %s34
      %p40 = scmp.eq.s32.totalorder %s21, 0
      %p41 = por %p39, %p40
      %p42 = scmp.ne.s32.totalorder %s31, %s34
      %p43 = scmp.eq.s32.totalorder %s26, 1
      %p44 = por %p42, %p43
      %p45 = scmp.ne.s32.totalorder %s34, %s35
      %p46 = scmp.eq.s32.totalorder %s26, 0
      %p47 = por %p45, %p46
      %p48 = scmp.ne.s32.totalorder %s34, %s35
      %p49 = scmp.eq.s32.totalorder %s27, 1
      %p50 = por %p48, %p49
      %p52 = scmp.ne.s32.totalorder %s35, %s51
      %p53 = scmp.eq.s32.totalorder %s27, 0
      %p54 = por %p52, %p53
      %s56 = sadd.s32 %s55, 1
      %p59 = scmp.eq.s32.totalorder %s21, 1
      %p60 = scmp.ne.s32.totalorder %s55, %s57
      %p61 = scmp.eq.s32.totalorder %s21, 0
      %p62 = por %p60, %p61
      %p63 = scmp.ne.s32.totalorder %s55, %s57
      %p64 = scmp.eq.s32.totalorder %s26, 1
      %p65 = por %p63, %p64
      %p66 = scmp.ne.s32.totalorder %s57, %s58
      %p67 = scmp.eq.s32.totalorder %s26, 0
      %p68 = por %p66, %p67
      %p69 = scmp.ne.s32.totalorder %s57, %s58
      %p70 = scmp.eq.s32.totalorder %s27, 1
      %p71 = por %p69, %p70
      %p73 = scmp.ne.s32.totalorder %s58, %s72
      %p74 = scmp.eq.s32.totalorder %s27, 0
      %p75 = por %p73, %p74
      %s77 = sadd.s32 %s76, 1
      %p80 = scmp.eq.s32.totalorder %s21, 1
      %p81 = scmp.ne.s32.totalorder %s76, %s78
      %p82 = scmp.eq.s32.totalorder %s21, 0
      %p83 = por %p81, %p82
      %p84 = scmp.ne.s32.totalorder %s76, %s78
      %p85 = scmp.eq.s32.totalorder %s26, 1
      %p86 = por %p84, %p85
      %p87 = scmp.ne.s32.totalorder %s78, %s79
      %p88 = scmp.eq.s32.totalorder %s26, 0
      %p89 = por %p87, %p88
      %p90 = scmp.ne.s32.totalorder %s78, %s79
      %p91 = scmp.eq.s32.totalorder %s27, 1
      %p92 = por %p90, %p91
      %p94 = scmp.ne.s32.totalorder %s79, %s93
      %p95 = scmp.eq.s32.totalorder %s27, 0
      %p96 = por %p94, %p95
      %s98 = sadd.s32 %s97, 1
      %p101 = scmp.eq.s32.totalorder %s21, 1
      %p102 = scmp.ne.s32.totalorder %s97, %s99
      %p103 = scmp.eq.s32.totalorder %s21, 0
      %p104 = por %p102, %p103
      %p105 = scmp.ne.s32.totalorder %s97, %s99
      %p106 = scmp.eq.s32.totalorder %s26, 1
      %p107 = por %p105, %p106
      %p108 = scmp.ne.s32.totalorder %s99, %s100
      %p109 = scmp.eq.s32.totalorder %s26, 0
      %p110 = por %p108, %p109
      %p111 = scmp.ne.s32.totalorder %s99, %s100
      %p112 = scmp.eq.s32.totalorder %s27, 1
      %p113 = por %p111, %p112
      %p115 = scmp.ne.s32.totalorder %s100, %s114
      %p116 = scmp.eq.s32.totalorder %s27, 0
      %p117 = por %p115, %p116
      %s119 = sadd.s32 %s118, 1
      %p122 = scmp.eq.s32.totalorder %s21, 1
      %p123 = scmp.ne.s32.totalorder %s118, %s120
      %p124 = scmp.eq.s32.totalorder %s21, 0
      %p125 = por %p123, %p124
      %p126 = scmp.ne.s32.totalorder %s118, %s120
      %p127 = scmp.eq.s32.totalorder %s26, 1
      %p128 = por %p126, %p127
      %p129 = scmp.ne.s32.totalorder %s120, %s121
      %p130 = scmp.eq.s32.totalorder %s26, 0
      %p131 = por %p129, %p130
      %p132 = scmp.ne.s32.totalorder %s120, %s121
      %p133 = scmp.eq.s32.totalorder %s27, 1
      %p134 = por %p132, %p133
      %p136 = scmp.ne.s32.totalorder %s121, %s135
      %p137 = scmp.eq.s32.totalorder %s27, 0
      %p138 = por %p136, %p137
      %s140 = sadd.s32 %s139, 1
      %p143 = scmp.eq.s32.totalorder %s21, 1
      %p144 = scmp.ne.s32.totalorder %s139, %s141
      %p145 = scmp.eq.s32.totalorder %s21, 0
      %p146 = por %p144, %p145
      %p147 = scmp.ne.s32.totalorder %s139, %s141
      %p148 = scmp.eq.s32.totalorder %s26, 1
      %p149 = por %p147, %p148
      %p150 = scmp.ne.s32.totalorder %s141, %s142
      %p151 = scmp.eq.s32.totalorder %s26, 0
      %p152 = por %p150, %p151
      %p153 = scmp.ne.s32.totalorder %s141, %s142
      %p154 = scmp.eq.s32.totalorder %s27, 1
      %p155 = por %p153, %p154
      %p157 = scmp.ne.s32.totalorder %s142, %s156
      %p158 = scmp.eq.s32.totalorder %s27, 0
      %p159 = por %p157, %p158
      %s161 = sadd.s32 %s160, 1
      %p164 = scmp.eq.s32.totalorder %s21, 1
      %p165 = scmp.ne.s32.totalorder %s160, %s162
      %p166 = scmp.eq.s32.totalorder %s21, 0
      %p167 = por %p165, %p166
      %p168 = scmp.ne.s32.totalorder %s160, %s162
      %p169 = scmp.eq.s32.totalorder %s26, 1
      %p170 = por %p168, %p169
      %p171 = scmp.ne.s32.totalorder %s162, %s163
      %p172 = scmp.eq.s32.totalorder %s26, 0
      %p173 = por %p171, %p172
      %p174 = scmp.ne.s32.totalorder %s162, %s163
      %p175 = scmp.eq.s32.totalorder %s27, 1
      %p176 = por %p174, %p175
      %p178 = scmp.ne.s32.totalorder %s163, %s177
      %p179 = scmp.eq.s32.totalorder %s27, 0
      %p180 = por %p178, %p179
      %s182 = sadd.s32 %s181, 1
      %p185 = scmp.eq.s32.totalorder %s21, 1
      %p186 = scmp.ne.s32.totalorder %s181, %s183
      %p187 = scmp.eq.s32.totalorder %s21, 0
      %p188 = por %p186, %p187
      %p189 = scmp.ne.s32.totalorder %s181, %s183
      %p190 = scmp.eq.s32.totalorder %s26, 1
      %p191 = por %p189, %p190
      %p192 = scmp.ne.s32.totalorder %s183, %s184
      %p193 = scmp.eq.s32.totalorder %s26, 0
      %p194 = por %p192, %p193
      %p195 = scmp.ne.s32.totalorder %s183, %s184
      %p196 = scmp.eq.s32.totalorder %s27, 1
      %p197 = por %p195, %p196
      %p199 = scmp.ne.s32.totalorder %s184, %s198
      %p200 = scmp.eq.s32.totalorder %s27, 0
      %p201 = por %p199, %p200
      %s203 = sadd.s32 %s202, 1
      %p206 = scmp.eq.s32.totalorder %s21, 1
      %p207 = scmp.ne.s32.totalorder %s202, %s204
      %p208 = scmp.eq.s32.totalorder %s21, 0
      %p209 = por %p207, %p208
      %p210 = scmp.ne.s32.totalorder %s202, %s204
      %p211 = scmp.eq.s32.totalorder %s26, 1
      %p212 = por %p210, %p211
      %p213 = scmp.ne.s32.totalorder %s204, %s205
      %p214 = scmp.eq.s32.totalorder %s26, 0
      %p215 = por %p213, %p214
      %p216 = scmp.ne.s32.totalorder %s204, %s205
      %p217 = scmp.eq.s32.totalorder %s27, 1
      %p218 = por %p216, %p217
      %p220 = scmp.ne.s32.totalorder %s205, %s219
      %p221 = scmp.eq.s32.totalorder %s27, 0
      %p222 = por %p220, %p221
      %s224 = sadd.s32 %s223, 1
      %p227 = scmp.eq.s32.totalorder %s21, 1
      %p228 = scmp.ne.s32.totalorder %s223, %s225
      %p229 = scmp.eq.s32.totalorder %s21, 0
      %p230 = por %p228, %p229
      %p231 = scmp.ne.s32.totalorder %s223, %s225
      %p232 = scmp.eq.s32.totalorder %s26, 1
      %p233 = por %p231, %p232
      %p234 = scmp.ne.s32.totalorder %s225, %s226
      %p235 = scmp.eq.s32.totalorder %s26, 0
      %p236 = por %p234, %p235
      %p237 = scmp.ne.s32.totalorder %s225, %s226
      %p238 = scmp.eq.s32.totalorder %s27, 1
      %p239 = por %p237, %p238
      %p241 = scmp.ne.s32.totalorder %s226, %s240
      %p242 = scmp.eq.s32.totalorder %s27, 0
      %p243 = por %p241, %p242
      %s244 = ssub.s32 %s21, %s28
      %p245 = scmp.eq.s32.totalorder %s244, 0
      %s247 = sadd.s32 %s246, 1
      %s248 = scalar_select %p245, %s246, %s247
      %p251 = pneg %p245
      %p252 = scmp.eq.s32.totalorder %s21, 1
      %p253 = por %p251, %p252
      %p254 = scmp.ne.s32.totalorder %s246, %s249
      %p255 = scmp.eq.s32.totalorder %s21, 0
      %p256 = por %p254, %p255
      %p257 = scmp.ne.s32.totalorder %s246, %s249
      %p258 = scmp.eq.s32.totalorder %s26, 1
      %p259 = por %p257, %p258
      %p260 = scmp.ne.s32.totalorder %s249, %s250
      %p261 = scmp.eq.s32.totalorder %s26, 0
      %p262 = por %p260, %p261
      %p263 = scmp.ne.s32.totalorder %s249, %s250
      %p264 = scmp.eq.s32.totalorder %s27, 1
      %p265 = por %p263, %p264
      %p267 = scmp.ne.s32.totalorder %s250, %s266
      %p268 = scmp.eq.s32.totalorder %s27, 0
      %p269 = por %p267, %p268
      %p270 = scmp.le.s32.totalorder 1, %s21
      %p271 = scmp.lt.s32.totalorder %s21, 3
      %p272 = pnand %p270, %p271
      %p273 = pneg %p272
      // Predicated region
      $region9: #{tpu_custom_call.1} parent=5 // pred_check
        _
      $region10: #{tpu_custom_call.1} parent=5 // pred_check_branch
        %275 = sbr.rel (%p272) target = $region12
      $region11: #{tpu_custom_call.1} parent=5 // pred_region
        %s276 = ssub.s32 %s21, 1
        // Predicated region
        $region13: #{tpu_custom_call.1} parent=11 // pred_check
          %p277 = pneg %p68
        $region14: #{tpu_custom_call.1} parent=11 // pred_check_branch
          %279 = sbr.rel (%p277) target = $region16
        $region15: #{tpu_custom_call.1} parent=11 // pred_region
          %s281 = ssub.s32 256, 256
          %282 = vsyncadd [#allocation6], %s281
          %s283 = sshll.u32 [#allocation5], 4
          %s284 = int_to_ptr.vmem [resolvable:$true] %s283
          %289 = dma.hbm_to_vmem [thread:$0]  %s1, 256, %s284, [#allocation6], 128, 128, 8
        $region16: #{tpu_custom_call.1} parent=11 // pred_fallthru
          _
        // Predicated region
        $region17: #{tpu_custom_call.1} parent=11 // pred_check
          %p290 = pneg %p89
        $region18: #{tpu_custom_call.1} parent=11 // pred_check_branch
          %292 = sbr.rel (%p290) target = $region20
        $region19: #{tpu_custom_call.1} parent=11 // pred_region
          _
        $region20: #{tpu_custom_call.1} parent=11 // pred_fallthru
          _
        // Predicated region
        $region21: #{tpu_custom_call.1} parent=11 // pred_check
          %p293 = pneg %p110
        $region22: #{tpu_custom_call.1} parent=11 // pred_check_branch
          %295 = sbr.rel (%p293) target = $region24
        $region23: #{tpu_custom_call.1} parent=11 // pred_region
          _
        $region24: #{tpu_custom_call.1} parent=11 // pred_fallthru
          _
        // Predicated region
        $region25: #{tpu_custom_call.1} parent=11 // pred_check
          %p296 = pneg %p131
        $region26: #{tpu_custom_call.1} parent=11 // pred_check_branch
          %298 = sbr.rel (%p296) target = $region28
        $region27: #{tpu_custom_call.1} parent=11 // pred_region
          _
        $region28: #{tpu_custom_call.1} parent=11 // pred_fallthru
          _
        // Predicated region
        $region29: #{tpu_custom_call.1} parent=11 // pred_check
          %p299 = pneg %p152
        $region30: #{tpu_custom_call.1} parent=11 // pred_check_branch
          %301 = sbr.rel (%p299) target = $region32
        $region31: #{tpu_custom_call.1} parent=11 // pred_region
          %s303 = ssub.s32 512, 512
          %304 = vsyncadd [#allocation9], %s303
          %s305 = sshll.u32 [#allocation8], 4
          %s306 = int_to_ptr.vmem [resolvable:$true] %s305
          %311 = dma.hbm_to_vmem [thread:$0]  %s5, 512, %s306, [#allocation9], 128, 128, 8
        $region32: #{tpu_custom_call.1} parent=11 // pred_fallthru
          _
        // Predicated region
        $region33: #{tpu_custom_call.1} parent=11 // pred_check
          %p312 = pneg %p173
        $region34: #{tpu_custom_call.1} parent=11 // pred_check_branch
          %314 = sbr.rel (%p312) target = $region36
        $region35: #{tpu_custom_call.1} parent=11 // pred_region
          _
        $region36: #{tpu_custom_call.1} parent=11 // pred_fallthru
          _
        // Predicated region
        $region37: #{tpu_custom_call.1} parent=11 // pred_check
          %p315 = pneg %p194
        $region38: #{tpu_custom_call.1} parent=11 // pred_check_branch
          %317 = sbr.rel (%p315) target = $region40
        $region39: #{tpu_custom_call.1} parent=11 // pred_region
          _
        $region40: #{tpu_custom_call.1} parent=11 // pred_fallthru
          _
        // Predicated region
        $region41: #{tpu_custom_call.1} parent=11 // pred_check
          %p318 = pneg %p215
        $region42: #{tpu_custom_call.1} parent=11 // pred_check_branch
          %320 = sbr.rel (%p318) target = $region44
        $region43: #{tpu_custom_call.1} parent=11 // pred_region
          _
        $region44: #{tpu_custom_call.1} parent=11 // pred_fallthru
          _
        // Predicated region
        $region45: #{tpu_custom_call.1} parent=11 // pred_check
          %p321 = pneg %p236
        $region46: #{tpu_custom_call.1} parent=11 // pred_check_branch
          %323 = sbr.rel (%p321) target = $region48
        $region47: #{tpu_custom_call.1} parent=11 // pred_region
          _
        $region48: #{tpu_custom_call.1} parent=11 // pred_fallthru
          _
      $region12: #{tpu_custom_call.1} parent=5 // pred_fallthru
        _
      %p324 = scmp.lt.s32.totalorder %s21, 2
      // Predicated region
      $region49: #{tpu_custom_call.1} parent=5 // pred_check
        %p325 = pneg %p324
      $region50: #{tpu_custom_call.1} parent=5 // pred_check_branch
        %327 = sbr.rel (%p325) target = $region52
      $region51: #{tpu_custom_call.1} parent=5 // pred_region
        // Predicated region
        $region53: #{tpu_custom_call.1} parent=51 // pred_check
          %p328 = pneg %p41
        $region54: #{tpu_custom_call.1} parent=51 // pred_check_branch
          %330 = sbr.rel (%p328) target = $region56
        $region55: #{tpu_custom_call.1} parent=51 // pred_region
          %p331 = scmp.lt.s32.totalorder %s21, 1
          %s332 = scalar_select %p331, %s21, 1
          %s333 = smul.addr %s332, 8
          %s334 = scalar_lea.vmem %s0, %s333
        $region56: #{tpu_custom_call.1} parent=51 // pred_fallthru
          _
      $region52: #{tpu_custom_call.1} parent=5 // pred_fallthru
        _
      %p335 = scmp.le.s32.totalorder 1, %s21
      %p336 = scmp.lt.s32.totalorder %s21, 3
      %p337 = pnand %p335, %p336
      %p338 = pneg %p337
      // Predicated region
      $region57: #{tpu_custom_call.1} parent=5 // pred_check
        _
      $region58: #{tpu_custom_call.1} parent=5 // pred_check_branch
        %340 = sbr.rel (%p337) target = $region60
      $region59: #{tpu_custom_call.1} parent=5 // pred_region
        %s341 = ssub.s32 %s21, 1
        // Predicated region
        $region61: #{tpu_custom_call.1} parent=59 // pred_check
          %p342 = pneg %p68
        $region62: #{tpu_custom_call.1} parent=59 // pred_check_branch
          %344 = sbr.rel (%p342) target = $region64
        $region63: #{tpu_custom_call.1} parent=59 // pred_region
          %345 = dma.done [#allocation6], 256
        $region64: #{tpu_custom_call.1} parent=59 // pred_fallthru
          _
        // Predicated region
        $region65: #{tpu_custom_call.1} parent=59 // pred_check
          %p346 = pneg %p152
        $region66: #{tpu_custom_call.1} parent=59 // pred_check_branch
          %348 = sbr.rel (%p346) target = $region68
        $region67: #{tpu_custom_call.1} parent=59 // pred_region
          %349 = dma.done [#allocation9], 512
        $region68: #{tpu_custom_call.1} parent=59 // pred_fallthru
          _
        %p350 = scmp.lt.s32.totalorder %s26, 1
        %s351 = scalar_select %p350, %s26, 1
        %s352 = smul.addr %s351, 8
        %s353 = scalar_lea.vmem %s0, %s352
        %p354 = pneg %p47
        %p355 = pneg %p44
        %p356 = pneg %p68
        %p357 = pneg %p65
        %p358 = pneg %p89
        %p359 = pneg %p86
        %p360 = pneg %p110
        %p361 = pneg %p107
        %p362 = pneg %p131
        %p363 = pneg %p128
        %p364 = pneg %p152
        %p365 = pneg %p149
        %p366 = pneg %p173
        %p367 = pneg %p170
        %p368 = pneg %p194
        %p369 = pneg %p191
        %p370 = pneg %p215
        %p371 = pneg %p212
        %p372 = pneg %p236
        %p373 = pneg %p233
        %p374 = pneg %p262
        %p375 = pneg %p259
        %s376 = sand.u32 %s249, 1
        %s377 = scalar_lea.sflag [#allocation7], %s376
        %s378 = sand.u32 %s249, 1
        %s379 = smul.addr %s378, 8
        %s380 = scalar_lea.vmem [#allocation10], %s379
        %p381 = scmp.lt.s32.totalorder %s26, 1
        %s382 = scalar_select %p381, %s26, 1
        %s383 = smul.addr %s382, 8
        %s384 = scalar_lea.vmem %s0, %s383
        %p385 = scmp.eq.s32.totalorder %s26, 0
        // Predicated region
        $region69: #{tpu_custom_call.1} parent=59 // pred_check
          %p386 = pneg %p385
        $region70: #{tpu_custom_call.1} parent=59 // pred_check_branch
          %388 = sbr.rel (%p386) target = $region72
        $region71: #{tpu_custom_call.1} parent=59 // pred_region
          %vm389 = vcmask 254976
          %390 = vst.msk [vmem:[#allocation2] sm:$0x3] %vm389, 0.0
          %391 = vst.msk [vmem:[#allocation3] sm:$0x3] %vm389, 0.0
        $region72: #{tpu_custom_call.1} parent=59 // pred_fallthru
          _
        %v392 = vld [vmem:[%s384] sm:$0xff]
        %v393 = vld [vmem:[#allocation5] sm:$0xff]
        %v394 = vld [vmem:[#allocation5 + $0x8] sm:$0xff]
        %v395 = vld [vmem:[%s2] sm:$0x1]
        %v397 = vlaneseq
        %v398 = vshrl.u32 %v397, 7
        %v399 = vsub.s32 0, %v398
        %v400 = vrot.slane %v395, %v399
        %vm402 = vcmask 130048
        %v404 = vsel %vm402, %v392, 0
        %406 = vmatprep.subr.mxu0 0.0
        %407 = vmatpush1.msra.mxu0 0.0
        %408 = vmatprep.subr.mxu0 0.0
        %409 = vmatpush1.msra.mxu0 0.0
        %410 = vmatprep.subr.mxu0 0.0
        %411 = vmatpush1.msra.mxu0 0.0
        %412 = vmatprep.subr.mxu0 0.0
        %413 = vmatpush1.msra.mxu0 0.0
        %414 = vmatprep.subr.mxu0 0.0
        %415 = vmatpush1.msra.mxu0 0.0
        %416 = vmatprep.subr.mxu0 0.0
        %417 = vmatpush1.msra.mxu0 0.0
        %418 = vmatprep.subr.mxu0 0.0
        %419 = vmatpush1.msra.mxu0 0.0
        %420 = vmatprep.subr.mxu0 0.0
        %421 = vmatpush1.msra.mxu0 0.0
        %422 = vmatprep.subr.mxu0 0.0
        %423 = vmatpush1.msra.mxu0 0.0
        %424 = vmatprep.subr.mxu0 0.0
        %425 = vmatpush1.msra.mxu0 0.0
        %426 = vmatprep.subr.mxu0 0.0
        %427 = vmatpush1.msra.mxu0 0.0
        %428 = vmatprep.subr.mxu0 0.0
        %429 = vmatpush1.msra.mxu0 0.0
        %430 = vmatprep.subr.mxu0 0.0
        %431 = vmatpush1.msra.mxu0 0.0
        %432 = vmatprep.subr.mxu0 0.0
        %433 = vmatpush1.msra.mxu0 0.0
        %434 = vmatprep.subr.mxu0 0.0
        %435 = vmatpush1.msra.mxu0 %v394
        %436 = vmatprep.subr.mxu0 0.0
        %437 = vmatpush1.msra.mxu0 %v393
        %438 = vmatprep.subr.mxu0 0.0
        %439 = vmatpush2.msra.mxu0 0.0
        %440 = vmatprep.subr.mxu0 0.0
        %441 = vmatpush2.msra.mxu0 0.0
        %442 = vmatprep.subr.mxu0 0.0
        %443 = vmatpush2.msra.mxu0 0.0
        %444 = vmatprep.subr.mxu0 0.0
        %445 = vmatpush2.msra.mxu0 0.0
        %446 = vmatprep.subr.mxu0 0.0
        %447 = vmatpush2.msra.mxu0 0.0
        %448 = vmatprep.subr.mxu0 0.0
        %449 = vmatpush2.msra.mxu0 0.0
        %450 = vmatprep.subr.mxu0 0.0
        %451 = vmatpush2.msra.mxu0 0.0
        %452 = vmatprep.subr.mxu0 0.0
        %453 = vmatpush2.msra.mxu0 0.0
        %454 = vmatprep.subr.mxu0 0.0
        %455 = vmatpush2.msra.mxu0 0.0
        %456 = vmatprep.subr.mxu0 0.0
        %457 = vmatpush2.msra.mxu0 0.0
        %458 = vmatprep.subr.mxu0 0.0
        %459 = vmatpush2.msra.mxu0 0.0
        %460 = vmatprep.subr.mxu0 0.0
        %461 = vmatpush2.msra.mxu0 0.0
        %462 = vmatprep.subr.mxu0 0.0
        %463 = vmatpush2.msra.mxu0 0.0
        %464 = vmatprep.subr.mxu0 0.0
        %465 = vmatpush2.msra.mxu0 0.0
        %466 = vmatprep.subr.mxu0 0.0
        %467 = vmatpush2.msra.mxu0 0.0
        %468 = vmatprep.subr.mxu0 0.0
        %469 = vmatpush2.msra.mxu0 0.0
        %470 = vmatprep.mubr.f32.mxu0 0.0
        %471 = vmatmul.mubr.f32.gmra.mxu0 %v404
        %v472 = vpop.f32.mrf.mxu0
        %v473 = vadd.f32 %v400, %v472
        %v474 = vpop.f32.mrf.mxu0
        %475 = vdwg.mxu0
        %v476 = vmax.f32 %v473, 0.0
        %v477 = vld [vmem:[%s3] sm:$0xff]
        %v478 = vld [vmem:[%s3 + $0x8] sm:$0xff]
        %v479 = vld [vmem:[%s3 + $0x10] sm:$0xff]
        %v480 = vld [vmem:[%s3 + $0x18] sm:$0xff]
        %v481 = vld [vmem:[%s4] sm:$0x1]
        %v483 = vlaneseq
        %v484 = vshrl.u32 %v483, 7
        %v485 = vsub.s32 0, %v484
        %v486 = vrot.slane %v481, %v485
        %vm488 = vcmask 261120
        %v490 = vsel %vm488, %v476, 0
        %492 = vmatprep.subr.mxu0 0.0
        %493 = vmatpush1.msra.mxu0 0.0
        %494 = vmatprep.subr.mxu0 0.0
        %495 = vmatpush1.msra.mxu0 0.0
        %496 = vmatprep.subr.mxu0 0.0
        %497 = vmatpush1.msra.mxu0 0.0
        %498 = vmatprep.subr.mxu0 0.0
        %499 = vmatpush1.msra.mxu0 0.0
        %500 = vmatprep.subr.mxu0 0.0
        %501 = vmatpush1.msra.mxu0 0.0
        %502 = vmatprep.subr.mxu0 0.0
        %503 = vmatpush1.msra.mxu0 0.0
        %504 = vmatprep.subr.mxu0 0.0
        %505 = vmatpush1.msra.mxu0 0.0
        %506 = vmatprep.subr.mxu0 0.0
        %507 = vmatpush1.msra.mxu0 0.0
        %508 = vmatprep.subr.mxu0 0.0
        %509 = vmatpush1.msra.mxu0 0.0
        %510 = vmatprep.subr.mxu0 0.0
        %511 = vmatpush1.msra.mxu0 0.0
        %512 = vmatprep.subr.mxu0 0.0
        %513 = vmatpush1.msra.mxu0 0.0
        %514 = vmatprep.subr.mxu0 0.0
        %515 = vmatpush1.msra.mxu0 0.0
        %516 = vmatprep.subr.mxu0 0.0
        %517 = vmatpush1.msra.mxu0 %v480
        %518 = vmatprep.subr.mxu0 0.0
        %519 = vmatpush1.msra.mxu0 %v479
        %520 = vmatprep.subr.mxu0 0.0
        %521 = vmatpush1.msra.mxu0 %v478
        %522 = vmatprep.subr.mxu0 0.0
        %523 = vmatpush1.msra.mxu0 %v477
        %524 = vmatprep.subr.mxu0 0.0
        %525 = vmatpush2.msra.mxu0 0.0
        %526 = vmatprep.subr.mxu0 0.0
        %527 = vmatpush2.msra.mxu0 0.0
        %528 = vmatprep.subr.mxu0 0.0
        %529 = vmatpush2.msra.mxu0 0.0
        %530 = vmatprep.subr.mxu0 0.0
        %531 = vmatpush2.msra.mxu0 0.0
        %532 = vmatprep.subr.mxu0 0.0
        %533 = vmatpush2.msra.mxu0 0.0
        %534 = vmatprep.subr.mxu0 0.0
        %535 = vmatpush2.msra.mxu0 0.0
        %536 = vmatprep.subr.mxu0 0.0
        %537 = vmatpush2.msra.mxu0 0.0
        %538 = vmatprep.subr.mxu0 0.0
        %539 = vmatpush2.msra.mxu0 0.0
        %540 = vmatprep.subr.mxu0 0.0
        %541 = vmatpush2.msra.mxu0 0.0
        %542 = vmatprep.subr.mxu0 0.0
        %543 = vmatpush2.msra.mxu0 0.0
        %544 = vmatprep.subr.mxu0 0.0
        %545 = vmatpush2.msra.mxu0 0.0
        %546 = vmatprep.subr.mxu0 0.0
        %547 = vmatpush2.msra.mxu0 0.0
        %548 = vmatprep.subr.mxu0 0.0
        %549 = vmatpush2.msra.mxu0 0.0
        %550 = vmatprep.subr.mxu0 0.0
        %551 = vmatpush2.msra.mxu0 0.0
        %552 = vmatprep.subr.mxu0 0.0
        %553 = vmatpush2.msra.mxu0 0.0
        %554 = vmatprep.subr.mxu0 0.0
        %555 = vmatpush2.msra.mxu0 0.0
        %556 = vmatprep.mubr.f32.mxu0 0.0
        %557 = vmatmul.mubr.f32.gmra.mxu0 %v490
        %v558 = vpop.f32.mrf.mxu0
        %v559 = vadd.f32 %v486, %v558
        %v560 = vpop.f32.mrf.mxu0
        %561 = vdwg.mxu0
        %v562 = vld [vmem:[#allocation8] sm:$0xff]
        %v563 = vld [vmem:[#allocation8 + $0x8] sm:$0xff]
        %v564 = vld [vmem:[#allocation8 + $0x10] sm:$0xff]
        %v565 = vld [vmem:[#allocation8 + $0x18] sm:$0xff]
        %v566 = vld [vmem:[%s6] sm:$0x1]
        %v567 = vld [vmem:[%s7] sm:$0x1]
        %v568 = vld [vmem:[#allocation2] sm:$0x3]
        %v569 = vld [vmem:[#allocation3] sm:$0x3]
        %v571 = vsel %vm488, %v568, 0
        %573 = vmatprep.subr.mxu0 0.0
        %574 = vmatpush1.msra.mxu0 0.0
        %575 = vmatprep.subr.mxu0 0.0
        %576 = vmatpush1.msra.mxu0 0.0
        %577 = vmatprep.subr.mxu0 0.0
        %578 = vmatpush1.msra.mxu0 0.0
        %579 = vmatprep.subr.mxu0 0.0
        %580 = vmatpush1.msra.mxu0 0.0
        %581 = vmatprep.subr.mxu0 0.0
        %582 = vmatpush1.msra.mxu0 0.0
        %583 = vmatprep.subr.mxu0 0.0
        %584 = vmatpush1.msra.mxu0 0.0
        %585 = vmatprep.subr.mxu0 0.0
        %586 = vmatpush1.msra.mxu0 0.0
        %587 = vmatprep.subr.mxu0 0.0
        %588 = vmatpush1.msra.mxu0 0.0
        %589 = vmatprep.subr.mxu0 0.0
        %590 = vmatpush1.msra.mxu0 0.0
        %591 = vmatprep.subr.mxu0 0.0
        %592 = vmatpush1.msra.mxu0 0.0
        %593 = vmatprep.subr.mxu0 0.0
        %594 = vmatpush1.msra.mxu0 0.0
        %595 = vmatprep.subr.mxu0 0.0
        %596 = vmatpush1.msra.mxu0 0.0
        %597 = vmatprep.subr.mxu0 0.0
        %598 = vmatpush1.msra.mxu0 %v565
        %599 = vmatprep.subr.mxu0 0.0
        %600 = vmatpush1.msra.mxu0 %v564
        %601 = vmatprep.subr.mxu0 0.0
        %602 = vmatpush1.msra.mxu0 %v563
        %603 = vmatprep.subr.mxu0 0.0
        %604 = vmatpush1.msra.mxu0 %v562
        %605 = vmatprep.subr.mxu0 0.0
        %606 = vmatpush2.msra.mxu0 0.0
        %607 = vmatprep.subr.mxu0 0.0
        %608 = vmatpush2.msra.mxu0 0.0
        %609 = vmatprep.subr.mxu0 0.0
        %610 = vmatpush2.msra.mxu0 0.0
        %611 = vmatprep.subr.mxu0 0.0
        %612 = vmatpush2.msra.mxu0 0.0
        %613 = vmatprep.subr.mxu0 0.0
        %614 = vmatpush2.msra.mxu0 0.0
        %615 = vmatprep.subr.mxu0 0.0
        %616 = vmatpush2.msra.mxu0 0.0
        %617 = vmatprep.subr.mxu0 0.0
        %618 = vmatpush2.msra.mxu0 0.0
        %619 = vmatprep.subr.mxu0 0.0
        %620 = vmatpush2.msra.mxu0 0.0
        %621 = vmatprep.subr.mxu0 0.0
        %622 = vmatpush2.msra.mxu0 0.0
        %623 = vmatprep.subr.mxu0 0.0
        %624 = vmatpush2.msra.mxu0 0.0
        %625 = vmatprep.subr.mxu0 0.0
        %626 = vmatpush2.msra.mxu0 0.0
        %627 = vmatprep.subr.mxu0 0.0
        %628 = vmatpush2.msra.mxu0 0.0
        %629 = vmatprep.subr.mxu0 0.0
        %630 = vmatpush2.msra.mxu0 0.0
        %631 = vmatprep.subr.mxu0 0.0
        %632 = vmatpush2.msra.mxu0 0.0
        %633 = vmatprep.subr.mxu0 0.0
        %634 = vmatpush2.msra.mxu0 0.0
        %635 = vmatprep.subr.mxu0 0.0
        %636 = vmatpush2.msra.mxu0 0.0
        %637 = vmatprep.mubr.f32.mxu0 0.0
        %638 = vmatmul.mubr.f32.gmra.mxu0 %v571
        %v639 = vpop.f32.mrf.mxu0
        %v640 = vadd.f32 0.0, %v639
        %v641 = vpop.f32.mrf.mxu0
        %642 = vdwg.mxu0
        %v643 = vadd.f32 %v559, %v640
        %v644 = vxor.u32 %v643, 2147483648
        %v645 = vmul.f32 %v644, 1.442695
        %v646 = vpow.pop %v645
        %v647 = vadd.f32 %v646, 1.0
        %v648 = vrcp.pop %v647
        %v649 = vmul.f32 1.0, %v648
        %v650 = vtanh.pop %v643
        %652 = vrot.lane.b32.xlu0 %v569, 32
        %v653 = vpop.permute.xlu0 %652
        %v655 = vmul.f32 %v649, %v653
        %657 = vrot.lane.b32.xlu0 %v650, 64
        %v658 = vpop.permute.xlu0 %657
        %v660 = vmul.f32 %v649, %v658
        %662 = vrot.lane.b32.xlu0 %v660, 32
        %v663 = vpop.permute.xlu0 %662
        %v665 = vadd.f32 %v655, %v663
        %v666 = vtanh.pop %v665
        %668 = vrot.lane.b32.xlu0 %v666, 64
        %v669 = vpop.permute.xlu0 %668
        %v671 = vmul.f32 %v649, %v669
        %673 = vrot.lane.b32.xlu0 %v671, 32
        %v674 = vpop.permute.xlu0 %673
        %vm676 = vcmask 254976
        %v677 = vsel %vm676, %v674, 0.0
        %678 = vadd.xlane.f32.xlu0 %v677
        %v679 = vpop.xlane.xlu0 %678
        %v680 = vmul.f32 %v679, 0.03125
        %v681 = vmul.f32 %v671, %v671
        %683 = vrot.lane.b32.xlu0 %v681, 32
        %v684 = vpop.permute.xlu0 %683
        %v686 = vsel %vm676, %v684, 0.0
        %687 = vadd.xlane.f32.xlu0 %v686
        %v688 = vpop.xlane.xlu0 %687
        %v689 = vmul.f32 %v688, 0.03125
        %v690 = vmul.f32 %v680, %v680
        %v691 = vsub.f32 %v689, %v690
        %v692 = vsub.f32 %v671, %v680
        %v693 = vadd.f32 %v691, 1e-05
        %v694 = vrsqrt.pop %v693
        %v695 = vmul.f32 %v692, %v694
        %v697 = vlaneseq
        %v698 = vshrl.u32 %v697, 7
        %v699 = vsub.s32 0, %v698
        %v700 = vrot.slane %v566, %v699
        %701 = vrot.lane.b32.xlu0 %v700, 96
        %v702 = vpop.permute.xlu0 %701
        %v704 = vmul.f32 %v695, %v702
        %v706 = vlaneseq
        %v707 = vshrl.u32 %v706, 7
        %v708 = vsub.s32 0, %v707
        %v709 = vrot.slane %v567, %v708
        %710 = vrot.lane.b32.xlu0 %v709, 96
        %v711 = vpop.permute.xlu0 %710
        %v713 = vadd.f32 %v704, %v711
        %715 = vrot.lane.b32.xlu0 %v713, 32
        %v716 = vpop.permute.xlu0 %715
        %718 = vst.msk [vmem:[#allocation4] sm:$0x3] %vm676, %v716
        %v719 = vsel %vm488, %v674, 0
        %721 = vmatprep.subr.mxu0 0.0
        %722 = vmatpush1.msra.mxu0 0.0
        %723 = vmatprep.subr.mxu0 0.0
        %724 = vmatpush1.msra.mxu0 0.0
        %725 = vmatprep.subr.mxu0 0.0
        %726 = vmatpush1.msra.mxu0 0.0
        %727 = vmatprep.subr.mxu0 0.0
        %728 = vmatpush1.msra.mxu0 0.0
        %729 = vmatprep.subr.mxu0 0.0
        %730 = vmatpush1.msra.mxu0 0.0
        %731 = vmatprep.subr.mxu0 0.0
        %732 = vmatpush1.msra.mxu0 0.0
        %733 = vmatprep.subr.mxu0 0.0
        %734 = vmatpush1.msra.mxu0 0.0
        %735 = vmatprep.subr.mxu0 0.0
        %736 = vmatpush1.msra.mxu0 0.0
        %737 = vmatprep.subr.mxu0 0.0
        %738 = vmatpush1.msra.mxu0 0.0
        %739 = vmatprep.subr.mxu0 0.0
        %740 = vmatpush1.msra.mxu0 0.0
        %741 = vmatprep.subr.mxu0 0.0
        %742 = vmatpush1.msra.mxu0 0.0
        %743 = vmatprep.subr.mxu0 0.0
        %744 = vmatpush1.msra.mxu0 0.0
        %745 = vmatprep.subr.mxu0 0.0
        %746 = vmatpush1.msra.mxu0 %v565
        %747 = vmatprep.subr.mxu0 0.0
        %748 = vmatpush1.msra.mxu0 %v564
        %749 = vmatprep.subr.mxu0 0.0
        %750 = vmatpush1.msra.mxu0 %v563
        %751 = vmatprep.subr.mxu0 0.0
        %752 = vmatpush1.msra.mxu0 %v562
        %753 = vmatprep.subr.mxu0 0.0
        %754 = vmatpush2.msra.mxu0 0.0
        %755 = vmatprep.subr.mxu0 0.0
        %756 = vmatpush2.msra.mxu0 0.0
        %757 = vmatprep.subr.mxu0 0.0
        %758 = vmatpush2.msra.mxu0 0.0
        %759 = vmatprep.subr.mxu0 0.0
        %760 = vmatpush2.msra.mxu0 0.0
        %761 = vmatprep.subr.mxu0 0.0
        %762 = vmatpush2.msra.mxu0 0.0
        %763 = vmatprep.subr.mxu0 0.0
        %764 = vmatpush2.msra.mxu0 0.0
        %765 = vmatprep.subr.mxu0 0.0
        %766 = vmatpush2.msra.mxu0 0.0
        %767 = vmatprep.subr.mxu0 0.0
        %768 = vmatpush2.msra.mxu0 0.0
        %769 = vmatprep.subr.mxu0 0.0
        %770 = vmatpush2.msra.mxu0 0.0
        %771 = vmatprep.subr.mxu0 0.0
        %772 = vmatpush2.msra.mxu0 0.0
        %773 = vmatprep.subr.mxu0 0.0
        %774 = vmatpush2.msra.mxu0 0.0
        %775 = vmatprep.subr.mxu0 0.0
        %776 = vmatpush2.msra.mxu0 0.0
        %777 = vmatprep.subr.mxu0 0.0
        %778 = vmatpush2.msra.mxu0 0.0
        %779 = vmatprep.subr.mxu0 0.0
        %780 = vmatpush2.msra.mxu0 0.0
        %781 = vmatprep.subr.mxu0 0.0
        %782 = vmatpush2.msra.mxu0 0.0
        %783 = vmatprep.subr.mxu0 0.0
        %784 = vmatpush2.msra.mxu0 0.0
        %785 = vmatprep.mubr.f32.mxu0 0.0
        %786 = vmatmul.mubr.f32.gmra.mxu0 %v719
        %v787 = vpop.f32.mrf.mxu0
        %v788 = vadd.f32 0.0, %v787
        %v789 = vpop.f32.mrf.mxu0
        %790 = vdwg.mxu0
        %v792 = vrot.slane %v788, 6
        %v794 = vadd.f32 %v559, %v792
        %v795 = vxor.u32 %v794, 2147483648
        %v796 = vmul.f32 %v795, 1.442695
        %v797 = vpow.pop %v796
        %v798 = vadd.f32 %v797, 1.0
        %v799 = vrcp.pop %v798
        %v800 = vmul.f32 1.0, %v799
        %v801 = vtanh.pop %v794
        %v803 = vrot.slane %v665, 6
        %v805 = vmul.f32 %v800, %v803
        %807 = vrot.lane.b32.xlu0 %v801, 64
        %v808 = vpop.permute.xlu0 %807
        %v810 = vmul.f32 %v800, %v808
        %812 = vrot.lane.b32.xlu0 %v810, 32
        %v813 = vpop.permute.xlu0 %812
        %v815 = vadd.f32 %v805, %v813
        %v816 = vtanh.pop %v815
        %818 = vrot.lane.b32.xlu0 %v816, 64
        %v819 = vpop.permute.xlu0 %818
        %v821 = vmul.f32 %v800, %v819
        %823 = vrot.lane.b32.xlu0 %v821, 32
        %v824 = vpop.permute.xlu0 %823
        %vm826 = vcmask 257026
        %v827 = vsel %vm826, %v824, 0.0
        %828 = vadd.xlane.f32.xlu0 %v827
        %v829 = vpop.xlane.xlu0 %828
        %v830 = vmul.f32 %v829, 0.03125
        %v831 = vmul.f32 %v821, %v821
        %833 = vrot.lane.b32.xlu0 %v831, 32
        %v834 = vpop.permute.xlu0 %833
        %v836 = vsel %vm826, %v834, 0.0
        %837 = vadd.xlane.f32.xlu0 %v836
        %v838 = vpop.xlane.xlu0 %837
        %v839 = vmul.f32 %v838, 0.03125
        %v840 = vmul.f32 %v830, %v830
        %v841 = vsub.f32 %v839, %v840
        %v842 = vsub.f32 %v821, %v830
        %v843 = vadd.f32 %v841, 1e-05
        %v844 = vrsqrt.pop %v843
        %v845 = vmul.f32 %v842, %v844
        %v846 = vmul.f32 %v845, %v702
        %v847 = vadd.f32 %v846, %v711
        %849 = vrot.lane.b32.xlu0 %v847, 32
        %v850 = vpop.permute.xlu0 %849
        %852 = vst.msk [vmem:[#allocation4] sm:$0xc] %vm826, %v850
        %v853 = vrot.slane %v821, 2
        %854 = vrot.lane.b32.xlu0 %v853, 32
        %v855 = vpop.permute.xlu0 %854
        %v856 = vsel %vm488, %v855, 0
        %858 = vmatprep.subr.mxu0 0.0
        %859 = vmatpush1.msra.mxu0 0.0
        %860 = vmatprep.subr.mxu0 0.0
        %861 = vmatpush1.msra.mxu0 0.0
        %862 = vmatprep.subr.mxu0 0.0
        %863 = vmatpush1.msra.mxu0 0.0
        %864 = vmatprep.subr.mxu0 0.0
        %865 = vmatpush1.msra.mxu0 0.0
        %866 = vmatprep.subr.mxu0 0.0
        %867 = vmatpush1.msra.mxu0 0.0
        %868 = vmatprep.subr.mxu0 0.0
        %869 = vmatpush1.msra.mxu0 0.0
        %870 = vmatprep.subr.mxu0 0.0
        %871 = vmatpush1.msra.mxu0 0.0
        %872 = vmatprep.subr.mxu0 0.0
        %873 = vmatpush1.msra.mxu0 0.0
        %874 = vmatprep.subr.mxu0 0.0
        %875 = vmatpush1.msra.mxu0 0.0
        %876 = vmatprep.subr.mxu0 0.0
        %877 = vmatpush1.msra.mxu0 0.0
        %878 = vmatprep.subr.mxu0 0.0
        %879 = vmatpush1.msra.mxu0 0.0
        %880 = vmatprep.subr.mxu0 0.0
        %881 = vmatpush1.msra.mxu0 0.0
        %882 = vmatprep.subr.mxu0 0.0
        %883 = vmatpush1.msra.mxu0 %v565
        %884 = vmatprep.subr.mxu0 0.0
        %885 = vmatpush1.msra.mxu0 %v564
        %886 = vmatprep.subr.mxu0 0.0
        %887 = vmatpush1.msra.mxu0 %v563
        %888 = vmatprep.subr.mxu0 0.0
        %889 = vmatpush1.msra.mxu0 %v562
        %890 = vmatprep.subr.mxu0 0.0
        %891 = vmatpush2.msra.mxu0 0.0
        %892 = vmatprep.subr.mxu0 0.0
        %893 = vmatpush2.msra.mxu0 0.0
        %894 = vmatprep.subr.mxu0 0.0
        %895 = vmatpush2.msra.mxu0 0.0
        %896 = vmatprep.subr.mxu0 0.0
        %897 = vmatpush2.msra.mxu0 0.0
        %898 = vmatprep.subr.mxu0 0.0
        %899 = vmatpush2.msra.mxu0 0.0
        %900 = vmatprep.subr.mxu0 0.0
        %901 = vmatpush2.msra.mxu0 0.0
        %902 = vmatprep.subr.mxu0 0.0
        %903 = vmatpush2.msra.mxu0 0.0
        %904 = vmatprep.subr.mxu0 0.0
        %905 = vmatpush2.msra.mxu0 0.0
        %906 = vmatprep.subr.mxu0 0.0
        %907 = vmatpush2.msra.mxu0 0.0
        %908 = vmatprep.subr.mxu0 0.0
        %909 = vmatpush2.msra.mxu0 0.0
        %910 = vmatprep.subr.mxu0 0.0
        %911 = vmatpush2.msra.mxu0 0.0
        %912 = vmatprep.subr.mxu0 0.0
        %913 = vmatpush2.msra.mxu0 0.0
        %914 = vmatprep.subr.mxu0 0.0
        %915 = vmatpush2.msra.mxu0 0.0
        %916 = vmatprep.subr.mxu0 0.0
        %917 = vmatpush2.msra.mxu0 0.0
        %918 = vmatprep.subr.mxu0 0.0
        %919 = vmatpush2.msra.mxu0 0.0
        %920 = vmatprep.subr.mxu0 0.0
        %921 = vmatpush2.msra.mxu0 0.0
        %922 = vmatprep.mubr.f32.mxu0 0.0
        %923 = vmatmul.mubr.f32.gmra.mxu0 %v856
        %v924 = vpop.f32.mrf.mxu0
        %v925 = vadd.f32 0.0, %v924
        %v926 = vpop.f32.mrf.mxu0
        %927 = vdwg.mxu0
        %v929 = vrot.slane %v925, 4
        %v931 = vadd.f32 %v559, %v929
        %v932 = vxor.u32 %v931, 2147483648
        %v933 = vmul.f32 %v932, 1.442695
        %v934 = vpow.pop %v933
        %v935 = vadd.f32 %v934, 1.0
        %v936 = vrcp.pop %v935
        %v937 = vmul.f32 1.0, %v936
        %v938 = vtanh.pop %v931
        %v940 = vrot.slane %v815, 6
        %v942 = vmul.f32 %v937, %v940
        %944 = vrot.lane.b32.xlu0 %v938, 64
        %v945 = vpop.permute.xlu0 %944
        %v947 = vmul.f32 %v937, %v945
        %949 = vrot.lane.b32.xlu0 %v947, 32
        %v950 = vpop.permute.xlu0 %949
        %v952 = vadd.f32 %v942, %v950
        %v953 = vtanh.pop %v952
        %955 = vrot.lane.b32.xlu0 %v953, 64
        %v956 = vpop.permute.xlu0 %955
        %v958 = vmul.f32 %v937, %v956
        %960 = vrot.lane.b32.xlu0 %v958, 32
        %v961 = vpop.permute.xlu0 %960
        %vm963 = vcmask 259076
        %v964 = vsel %vm963, %v961, 0.0
        %965 = vadd.xlane.f32.xlu0 %v964
        %v966 = vpop.xlane.xlu0 %965
        %v967 = vmul.f32 %v966, 0.03125
        %v968 = vmul.f32 %v958, %v958
        %970 = vrot.lane.b32.xlu0 %v968, 32
        %v971 = vpop.permute.xlu0 %970
        %v973 = vsel %vm963, %v971, 0.0
        %974 = vadd.xlane.f32.xlu0 %v973
        %v975 = vpop.xlane.xlu0 %974
        %v976 = vmul.f32 %v975, 0.03125
        %v977 = vmul.f32 %v967, %v967
        %v978 = vsub.f32 %v976, %v977
        %v979 = vsub.f32 %v958, %v967
        %v980 = vadd.f32 %v978, 1e-05
        %v981 = vrsqrt.pop %v980
        %v982 = vmul.f32 %v979, %v981
        %v983 = vmul.f32 %v982, %v702
        %v984 = vadd.f32 %v983, %v711
        %986 = vrot.lane.b32.xlu0 %v984, 32
        %v987 = vpop.permute.xlu0 %986
        %989 = vst.msk [vmem:[#allocation4] sm:$0x30] %vm963, %v987
        %v990 = vrot.slane %v958, 4
        %991 = vrot.lane.b32.xlu0 %v990, 32
        %v992 = vpop.permute.xlu0 %991
        %v993 = vsel %vm488, %v992, 0
        %995 = vmatprep.subr.mxu0 0.0
        %996 = vmatpush1.msra.mxu0 0.0
        %997 = vmatprep.subr.mxu0 0.0
        %998 = vmatpush1.msra.mxu0 0.0
        %999 = vmatprep.subr.mxu0 0.0
        %1000 = vmatpush1.msra.mxu0 0.0
        %1001 = vmatprep.subr.mxu0 0.0
        %1002 = vmatpush1.msra.mxu0 0.0
        %1003 = vmatprep.subr.mxu0 0.0
        %1004 = vmatpush1.msra.mxu0 0.0
        %1005 = vmatprep.subr.mxu0 0.0
        %1006 = vmatpush1.msra.mxu0 0.0
        %1007 = vmatprep.subr.mxu0 0.0
        %1008 = vmatpush1.msra.mxu0 0.0
        %1009 = vmatprep.subr.mxu0 0.0
        %1010 = vmatpush1.msra.mxu0 0.0
        %1011 = vmatprep.subr.mxu0 0.0
        %1012 = vmatpush1.msra.mxu0 0.0
        %1013 = vmatprep.subr.mxu0 0.0
        %1014 = vmatpush1.msra.mxu0 0.0
        %1015 = vmatprep.subr.mxu0 0.0
        %1016 = vmatpush1.msra.mxu0 0.0
        %1017 = vmatprep.subr.mxu0 0.0
        %1018 = vmatpush1.msra.mxu0 0.0
        %1019 = vmatprep.subr.mxu0 0.0
        %1020 = vmatpush1.msra.mxu0 %v565
        %1021 = vmatprep.subr.mxu0 0.0
        %1022 = vmatpush1.msra.mxu0 %v564
        %1023 = vmatprep.subr.mxu0 0.0
        %1024 = vmatpush1.msra.mxu0 %v563
        %1025 = vmatprep.subr.mxu0 0.0
        %1026 = vmatpush1.msra.mxu0 %v562
        %1027 = vmatprep.subr.mxu0 0.0
        %1028 = vmatpush2.msra.mxu0 0.0
        %1029 = vmatprep.subr.mxu0 0.0
        %1030 = vmatpush2.msra.mxu0 0.0
        %1031 = vmatprep.subr.mxu0 0.0
        %1032 = vmatpush2.msra.mxu0 0.0
        %1033 = vmatprep.subr.mxu0 0.0
        %1034 = vmatpush2.msra.mxu0 0.0
        %1035 = vmatprep.subr.mxu0 0.0
        %1036 = vmatpush2.msra.mxu0 0.0
        %1037 = vmatprep.subr.mxu0 0.0
        %1038 = vmatpush2.msra.mxu0 0.0
        %1039 = vmatprep.subr.mxu0 0.0
        %1040 = vmatpush2.msra.mxu0 0.0
        %1041 = vmatprep.subr.mxu0 0.0
        %1042 = vmatpush2.msra.mxu0 0.0
        %1043 = vmatprep.subr.mxu0 0.0
        %1044 = vmatpush2.msra.mxu0 0.0
        %1045 = vmatprep.subr.mxu0 0.0
        %1046 = vmatpush2.msra.mxu0 0.0
        %1047 = vmatprep.subr.mxu0 0.0
        %1048 = vmatpush2.msra.mxu0 0.0
        %1049 = vmatprep.subr.mxu0 0.0
        %1050 = vmatpush2.msra.mxu0 0.0
        %1051 = vmatprep.subr.mxu0 0.0
        %1052 = vmatpush2.msra.mxu0 0.0
        %1053 = vmatprep.subr.mxu0 0.0
        %1054 = vmatpush2.msra.mxu0 0.0
        %1055 = vmatprep.subr.mxu0 0.0
        %1056 = vmatpush2.msra.mxu0 0.0
        %1057 = vmatprep.subr.mxu0 0.0
        %1058 = vmatpush2.msra.mxu0 0.0
        %1059 = vmatprep.mubr.f32.mxu0 0.0
        %1060 = vmatmul.mubr.f32.gmra.mxu0 %v993
        %v1061 = vpop.f32.mrf.mxu0
        %v1062 = vadd.f32 0.0, %v1061
        %v1063 = vpop.f32.mrf.mxu0
        %1064 = vdwg.mxu0
        %v1066 = vrot.slane %v1062, 2
        %v1068 = vadd.f32 %v559, %v1066
        %v1069 = vxor.u32 %v1068, 2147483648
        %v1070 = vmul.f32 %v1069, 1.442695
        %v1071 = vpow.pop %v1070
        %v1072 = vadd.f32 %v1071, 1.0
        %v1073 = vrcp.pop %v1072
        %v1074 = vmul.f32 1.0, %v1073
        %v1075 = vtanh.pop %v1068
        %v1077 = vrot.slane %v952, 6
        %v1079 = vmul.f32 %v1074, %v1077
        %1081 = vrot.lane.b32.xlu0 %v1075, 64
        %v1082 = vpop.permute.xlu0 %1081
        %v1084 = vmul.f32 %v1074, %v1082
        %1086 = vrot.lane.b32.xlu0 %v1084, 32
        %v1087 = vpop.permute.xlu0 %1086
        %v1089 = vadd.f32 %v1079, %v1087
        %v1090 = vtanh.pop %v1089
        %1092 = vrot.lane.b32.xlu0 %v1090, 64
        %v1093 = vpop.permute.xlu0 %1092
        %v1095 = vmul.f32 %v1074, %v1093
        %1097 = vrot.lane.b32.xlu0 %v1095, 32
        %v1098 = vpop.permute.xlu0 %1097
        %vm1100 = vcmask 261126
        %v1101 = vsel %vm1100, %v1098, 0.0
        %1102 = vadd.xlane.f32.xlu0 %v1101
        %v1103 = vpop.xlane.xlu0 %1102
        %v1104 = vmul.f32 %v1103, 0.03125
        %v1105 = vmul.f32 %v1095, %v1095
        %1107 = vrot.lane.b32.xlu0 %v1105, 32
        %v1108 = vpop.permute.xlu0 %1107
        %v1110 = vsel %vm1100, %v1108, 0.0
        %1111 = vadd.xlane.f32.xlu0 %v1110
        %v1112 = vpop.xlane.xlu0 %1111
        %v1113 = vmul.f32 %v1112, 0.03125
        %v1114 = vmul.f32 %v1104, %v1104
        %v1115 = vsub.f32 %v1113, %v1114
        %v1116 = vsub.f32 %v1095, %v1104
        %v1117 = vadd.f32 %v1115, 1e-05
        %v1118 = vrsqrt.pop %v1117
        %v1119 = vmul.f32 %v1116, %v1118
        %v1120 = vmul.f32 %v1119, %v702
        %v1121 = vadd.f32 %v1120, %v711
        %1123 = vrot.lane.b32.xlu0 %v1121, 32
        %v1124 = vpop.permute.xlu0 %1123
        %1126 = vst.msk [vmem:[#allocation4] sm:$0xc0] %vm1100, %v1124
        %1127 = vst.msk [vmem:[#allocation2 - $0x6] sm:$0xc0] %vm1100, %v1098
        %1129 = vrot.lane.b32.xlu0 %v1089, 96
        %v1130 = vpop.permute.xlu0 %1129
        %1132 = vst.msk [vmem:[#allocation3 - $0x6] sm:$0xc0] %vm1100, %v1130
        %v1133 = vld [vmem:[#allocation4] sm:$0xff]
        %v1134 = vld [vmem:[%s8] sm:$0xff]
        %v1135 = vld [vmem:[%s8 + $0x8] sm:$0xff]
        %v1136 = vld [vmem:[%s8 + $0x10] sm:$0xff]
        %v1137 = vld [vmem:[%s8 + $0x18] sm:$0xff]
        %v1138 = vld [vmem:[%s9] sm:$0x1]
        %v1140 = vlaneseq
        %v1141 = vshrl.u32 %v1140, 7
        %v1142 = vsub.s32 0, %v1141
        %v1143 = vrot.slane %v1138, %v1142
        %v1146 = vsel %vm488, %v1133, 0
        %1148 = vmatprep.subr.mxu0 0.0
        %1149 = vmatpush1.msra.mxu0 0.0
        %1150 = vmatprep.subr.mxu0 0.0
        %1151 = vmatpush1.msra.mxu0 0.0
        %1152 = vmatprep.subr.mxu0 0.0
        %1153 = vmatpush1.msra.mxu0 0.0
        %1154 = vmatprep.subr.mxu0 0.0
        %1155 = vmatpush1.msra.mxu0 0.0
        %1156 = vmatprep.subr.mxu0 0.0
        %1157 = vmatpush1.msra.mxu0 0.0
        %1158 = vmatprep.subr.mxu0 0.0
        %1159 = vmatpush1.msra.mxu0 0.0
        %1160 = vmatprep.subr.mxu0 0.0
        %1161 = vmatpush1.msra.mxu0 0.0
        %1162 = vmatprep.subr.mxu0 0.0
        %1163 = vmatpush1.msra.mxu0 0.0
        %1164 = vmatprep.subr.mxu0 0.0
        %1165 = vmatpush1.msra.mxu0 0.0
        %1166 = vmatprep.subr.mxu0 0.0
        %1167 = vmatpush1.msra.mxu0 0.0
        %1168 = vmatprep.subr.mxu0 0.0
        %1169 = vmatpush1.msra.mxu0 0.0
        %1170 = vmatprep.subr.mxu0 0.0
        %1171 = vmatpush1.msra.mxu0 0.0
        %1172 = vmatprep.subr.mxu0 0.0
        %1173 = vmatpush1.msra.mxu0 %v1137
        %1174 = vmatprep.subr.mxu0 0.0
        %1175 = vmatpush1.msra.mxu0 %v1136
        %1176 = vmatprep.subr.mxu0 0.0
        %1177 = vmatpush1.msra.mxu0 %v1135
        %1178 = vmatprep.subr.mxu0 0.0
        %1179 = vmatpush1.msra.mxu0 %v1134
        %1180 = vmatprep.subr.mxu0 0.0
        %1181 = vmatpush2.msra.mxu0 0.0
        %1182 = vmatprep.subr.mxu0 0.0
        %1183 = vmatpush2.msra.mxu0 0.0
        %1184 = vmatprep.subr.mxu0 0.0
        %1185 = vmatpush2.msra.mxu0 0.0
        %1186 = vmatprep.subr.mxu0 0.0
        %1187 = vmatpush2.msra.mxu0 0.0
        %1188 = vmatprep.subr.mxu0 0.0
        %1189 = vmatpush2.msra.mxu0 0.0
        %1190 = vmatprep.subr.mxu0 0.0
        %1191 = vmatpush2.msra.mxu0 0.0
        %1192 = vmatprep.subr.mxu0 0.0
        %1193 = vmatpush2.msra.mxu0 0.0
        %1194 = vmatprep.subr.mxu0 0.0
        %1195 = vmatpush2.msra.mxu0 0.0
        %1196 = vmatprep.subr.mxu0 0.0
        %1197 = vmatpush2.msra.mxu0 0.0
        %1198 = vmatprep.subr.mxu0 0.0
        %1199 = vmatpush2.msra.mxu0 0.0
        %1200 = vmatprep.subr.mxu0 0.0
        %1201 = vmatpush2.msra.mxu0 0.0
        %1202 = vmatprep.subr.mxu0 0.0
        %1203 = vmatpush2.msra.mxu0 0.0
        %1204 = vmatprep.subr.mxu0 0.0
        %1205 = vmatpush2.msra.mxu0 0.0
        %1206 = vmatprep.subr.mxu0 0.0
        %1207 = vmatpush2.msra.mxu0 0.0
        %1208 = vmatprep.subr.mxu0 0.0
        %1209 = vmatpush2.msra.mxu0 0.0
        %1210 = vmatprep.subr.mxu0 0.0
        %1211 = vmatpush2.msra.mxu0 0.0
        %1212 = vmatprep.mubr.f32.mxu0 0.0
        %1213 = vmatmul.mubr.f32.gmra.mxu0 %v1146
        %v1214 = vpop.f32.mrf.mxu0
        %v1215 = vadd.f32 %v1143, %v1214
        %v1216 = vpop.f32.mrf.mxu0
        %1217 = vdwg.mxu0
        %1218 = vst.msk [vmem:[%s380] sm:$0xff] %vm402, %v1215
        %s1219 = sand.u32 %s249, 1
        %s1220 = scalar_lea.sflag [#allocation7], %s1219
        %s1221 = sand.u32 %s249, 1
        %s1222 = smul.addr %s1221, 8
        %s1223 = scalar_lea.vmem [#allocation10], %s1222
        // Predicated region
        $region73: #{tpu_custom_call.1} parent=59 // pred_check
          %p1224 = pneg %p259
        $region74: #{tpu_custom_call.1} parent=59 // pred_check_branch
          %1226 = sbr.rel (%p1224) target = $region76
        $region75: #{tpu_custom_call.1} parent=59 // pred_region
          %s1228 = ssub.s32 128, 128
          %1229 = vsyncadd %s1220, %s1228
          %s1230 = smul.addr %s26, 128
          %s1231 = scalar_lea.hbm %s10, %s1230
          %s1233 = sshll.u32 %s1223, 4
          %s1234 = int_to_ptr.vmem [resolvable:$true] %s1233
          %1236 = dma.vmem_to_hbm [thread:$0]  %s1234, 128, %s1231, %s1220
        $region76: #{tpu_custom_call.1} parent=59 // pred_fallthru
          _
      $region60: #{tpu_custom_call.1} parent=5 // pred_fallthru
        _
      %p1237 = scmp.le.s32.totalorder 2, %s21
      // Predicated region
      $region77: #{tpu_custom_call.1} parent=5 // pred_check
        %p1238 = pneg %p1237
      $region78: #{tpu_custom_call.1} parent=5 // pred_check_branch
        %1240 = sbr.rel (%p1238) target = $region80
      $region79: #{tpu_custom_call.1} parent=5 // pred_region
        %s1241 = ssub.s32 %s21, 2
        // Predicated region
        $region81: #{tpu_custom_call.1} parent=79 // pred_check
          %p1242 = pneg %p265
        $region82: #{tpu_custom_call.1} parent=79 // pred_check_branch
          %1244 = sbr.rel (%p1242) target = $region84
        $region83: #{tpu_custom_call.1} parent=79 // pred_region
          %s1245 = sand.u32 %s250, 1
          %s1246 = scalar_lea.sflag [#allocation7], %s1245
          %s1247 = sand.u32 %s250, 1
          %s1248 = smul.addr %s1247, 8
          %s1249 = scalar_lea.vmem [#allocation10], %s1248
          %1250 = dma.done %s1246, 128
        $region84: #{tpu_custom_call.1} parent=79 // pred_fallthru
          _
      $region80: #{tpu_custom_call.1} parent=5 // pred_fallthru
        _
    $region6: #{tpu_custom_call.1} parent=1 // loop_footer
      %s25 = sadd.s32 1, %s21
    $region7: #{tpu_custom_call.1} parent=1 // loop_footer_branch
      %20 = sbr.rel target = $region3
    $region8: #{tpu_custom_call.1} parent=1 // loop_exit
      _
    %1251 = vsyncpa [#allocation6], 1
    %s1252 = scalar_lea.sflag [#allocation6], 1
    %1253 = vsyncpa %s1252, 1
    %1254 = vsyncpa [#allocation9], 1
    %1255 = vsyncpa [#allocation7], 1
    %s1256 = scalar_lea.sflag [#allocation7], 1
    %1257 = vsyncpa %s1256, 1

</llo_original>
